<compile_context>
chip_gen: v7x
topology: tpu7x:2x2x1
jax: 0.10.0
libtpu: 0.0.40
codegen_flags: <defaults>
</compile_context>

<pallas_src>
import math

import jax
import jax.numpy as jnp
from jax import lax
from jax.experimental import pallas as pl
from jax.experimental.pallas import tpu as pltpu


# ----------------------------------------------------------------------------
# VMEM / tiling helpers (all static at trace time)
# ----------------------------------------------------------------------------
def _vmem_capacity_bytes():
    try:
        return int(pltpu.get_tpu_info().vmem_capacity_bytes)
    except Exception:
        return 64 * 1024 * 1024          # v7x floor; safe lower bound


def _padded_bytes(shape, itemsize):
    """Bytes of a VMEM tile, padded to the (sublane, 128-lane) layout grid."""
    shape = tuple(int(s) for s in shape)
    if len(shape) == 1:
        shape = (1,) + shape
    *lead, sub, lane = shape
    sub_pad = 8 * max(1, 4 // itemsize)          # f32 -> 8, bf16 -> 16
    sub = -(-sub // sub_pad) * sub_pad
    lane = -(-lane // 128) * 128
    n = 1
    for d in lead:
        n *= d
    return n * sub * lane * itemsize


def _layer_vmem_bytes(t_blk, tb, in_dim, hidden, out_dim, fused):
    """Estimated VMEM footprint of one fused-layer pallas_call."""
    g = 4 * hidden
    rows = t_blk * tb
    total = 0
    # pipeline blocks (double-buffered)
    total += 2 * _padded_bytes((rows, in_dim), 4)
    total += 2 * _padded_bytes((rows, out_dim if fused else hidden), 4)
    # resident weights (constant index map, still double-buffered by default)
    total += 2 * (_padded_bytes((in_dim, g), 2) + _padded_bytes((hidden, g), 2)
                  + _padded_bytes((1, g), 4))
    if fused:
        total += 2 * (_padded_bytes((hidden, out_dim), 2)
                      + _padded_bytes((1, out_dim), 4))
    # scratch
    total += 2 * _padded_bytes((tb, hidden), 4)               # h, c carries
    total += t_blk * _padded_bytes((tb, g), 4)                # gate slab
    total += t_blk * _padded_bytes((tb, hidden), 4)           # hidden slab
    return total


def _choose_batch_tile(batch):
    """Batch rows per grid step; >1 tile lets megacore shard the recurrence."""
    if batch <= 8:
        return batch
    start = (min(batch, 256) // 8) * 8
    for tb in range(start, 7, -8):
        if batch % tb == 0 and batch // tb >= 2:
            return tb
    return batch


def _choose_time_block(seq, tb, in_dim, hidden, out_dim, fused, budget):
    """Largest divisor of seq whose fused-layer footprint fits the budget."""
    # TODO(synk): pad T (with masking) when seq has no VMEM-friendly divisor.
    chosen = seq
    for cand in range(seq, 0, -1):
        if seq % cand:
            continue
        if cand != seq and (cand * tb) % 16 != 0:   # keep blocks (16,128)-tileable
            continue
        chosen = cand
        if _layer_vmem_bytes(cand, tb, in_dim, hidden, out_dim, fused) <= budget:
            return cand
    return chosen


# ----------------------------------------------------------------------------
# Fused LSTM-layer kernel (input projection + recurrence [+ Linear head])
# ----------------------------------------------------------------------------
def _make_fused_layer_kernel(hidden, t_blk, tb, fused_head):
    H = hidden

    def lstm_block(x_ref, wih_ref, whh_ref, b_ref, out_ref,
                   h_scr, c_scr, g_scr, hblk_scr, fcw_ref=None, fcb_ref=None):
        t_idx = pl.program_id(1)

        @pl.when(t_idx == 0)                 # new batch tile -> h0 = c0 = 0
        def _():
            h_scr[...] = jnp.zeros_like(h_scr)
            c_scr[...] = jnp.zeros_like(c_scr)

        # --- whole-block input projection: gates never touch HBM ------------
        x2d = x_ref[0].astype(jnp.bfloat16)                       # (rows, D)
        gates_blk = (jnp.dot(x2d, wih_ref[...],
                             preferred_element_type=jnp.float32)
                     + b_ref[...])                                 # (rows, 4H) f32
        # Stage into a time-major 3-D scratch so the serial loop uses cheap
        # leading-axis indexing (static slices; outside the recurrence chain).
        for t in range(t_blk):
            g_scr[t] = gates_blk[t * tb:(t + 1) * tb, :]

        whh = whh_ref[...]                                         # (H, 4H) bf16

        # --- serial recurrence: only h @ W_hh + elementwise per step --------
        def step(t, carry):
            h, c = carry
            g = g_scr[t] + jnp.dot(h.astype(jnp.bfloat16), whh,
                                   preferred_element_type=jnp.float32)
            i_g = jax.nn.sigmoid(g[:, 0 * H:1 * H])
            f_g = jax.nn.sigmoid(g[:, 1 * H:2 * H])
            g_g = jnp.tanh(g[:, 2 * H:3 * H])
            o_g = jax.nn.sigmoid(g[:, 3 * H:4 * H])
            c_new = f_g * c + i_g * g_g
            h_new = o_g * jnp.tanh(c_new)
            hblk_scr[t] = h_new
            return h_new, c_new

        h_fin, c_fin = lax.fori_loop(0, t_blk, step,
                                     (h_scr[...], c_scr[...]),
                                     unroll=min(t_blk, 8))
        h_scr[...] = h_fin
        c_scr[...] = c_fin

        # --- drain the block: one wide store (+ one batched head GEMM) ------
        h_cat = jnp.concatenate([hblk_scr[t] for t in range(t_blk)], axis=0)
        if fused_head:
            y = (jnp.dot(h_cat.astype(jnp.bfloat16), fcw_ref[...],
                         preferred_element_type=jnp.float32) + fcb_ref[...])
            out_ref[0] = y.astype(out_ref.dtype)
        else:
            out_ref[0] = h_cat.astype(out_ref.dtype)

    if fused_head:
        def kernel(x_ref, wih_ref, whh_ref, b_ref, fcw_ref, fcb_ref, out_ref,
                   h_scr, c_scr, g_scr, hblk_scr):
            lstm_block(x_ref, wih_ref, whh_ref, b_ref, out_ref,
                       h_scr, c_scr, g_scr, hblk_scr, fcw_ref, fcb_ref)
    else:
        def kernel(x_ref, wih_ref, whh_ref, b_ref, out_ref,
                   h_scr, c_scr, g_scr, hblk_scr):
            lstm_block(x_ref, wih_ref, whh_ref, b_ref, out_ref,
                       h_scr, c_scr, g_scr, hblk_scr)

    return kernel


def run_fused_lstm_layer(x_grp, w_ih, w_hh, b, fc_w=None, fc_b=None,
                         *, t_blk, tb, out_dtype):
    """x_grp: (nb, T*TB, D) time-major batch-tiled activations -> same layout
    with last dim H (plain layer) or O (fused-head last layer)."""
    nb, rows_total, in_dim = x_grp.shape
    seq = rows_total // tb
    hidden = w_hh.shape[0]
    gdim = w_hh.shape[1]
    fused = fc_w is not None
    out_dim = fc_w.shape[1] if fused else hidden
    rows = t_blk * tb

    kernel = _make_fused_layer_kernel(hidden, t_blk, tb, fused)

    in_specs = [
        pl.BlockSpec((1, rows, in_dim), lambda bi, ti: (bi, ti, 0)),  # x slab
        pl.BlockSpec((in_dim, gdim), lambda bi, ti: (0, 0)),          # W_ih
        pl.BlockSpec((hidden, gdim), lambda bi, ti: (0, 0)),          # W_hh
        pl.BlockSpec((1, gdim), lambda bi, ti: (0, 0)),               # b_ih+b_hh
    ]
    operands = [x_grp, w_ih, w_hh, b]
    if fused:
        in_specs += [
            pl.BlockSpec((hidden, out_dim), lambda bi, ti: (0, 0)),   # fc_w
            pl.BlockSpec((1, out_dim), lambda bi, ti: (0, 0)),        # fc_b
        ]
        operands += [fc_w, fc_b]

    vmem_need = _layer_vmem_bytes(t_blk, tb, in_dim, hidden, out_dim, fused)
    vmem_limit = int(min(max(vmem_need * 5 // 4 + (4 << 20), 16 << 20),
                         _vmem_capacity_bytes()))

    return pl.pallas_call(
        kernel,
        out_shape=jax.ShapeDtypeStruct((nb, rows_total, out_dim), out_dtype),
        grid=(nb, seq // t_blk),
        in_specs=in_specs,
        out_specs=pl.BlockSpec((1, rows, out_dim), lambda bi, ti: (bi, ti, 0)),
        scratch_shapes=[
            pltpu.VMEM((tb, hidden), jnp.float32),          # h carry
            pltpu.VMEM((tb, hidden), jnp.float32),          # c carry
            pltpu.VMEM((t_blk, tb, gdim), jnp.float32),     # gate slab
            pltpu.VMEM((t_blk, tb, hidden), jnp.float32),   # hidden slab
        ],
        compiler_params=pltpu.CompilerParams(
            dimension_semantics=("parallel", "arbitrary"),
            vmem_limit_bytes=vmem_limit),
    )(*operands)


# ----------------------------------------------------------------------------
# Full module forward (stacked LSTM + Linear head)
# ----------------------------------------------------------------------------
@jax.jit
def lstm_model_forward(x_btd, params):
    batch, seq, in0 = x_btd.shape
    hidden = params["lstm"][0][1].shape[0]
    out_dim = params["fc_w"].shape[1]
    n_layers = len(params["lstm"])

    tb = _choose_batch_tile(batch)
    nb = batch // tb
    budget = int(0.6 * _vmem_capacity_bytes())

    # One layout pass at entry: batch-first -> time-major, batch-tiled groups.
    #   x_grp[n, t*tb + j, :] == x_btd[n*tb + j, t, :]
    x_grp = (jnp.transpose(x_btd, (1, 0, 2))
             .reshape(seq, nb, tb, in0)
             .transpose(1, 0, 2, 3)
             .reshape(nb, seq * tb, in0))

    h = x_grp
    for li, (w_ih, w_hh, b) in enumerate(params["lstm"]):
        last = li == n_layers - 1
        in_dim = h.shape[-1]
        t_blk = _choose_time_block(seq, tb, in_dim, hidden,
                                   out_dim if last else hidden, last, budget)
        w_ih16 = w_ih.astype(jnp.bfloat16)
        w_hh16 = w_hh.astype(jnp.bfloat16)
        if last:
            h = run_fused_lstm_layer(
                h, w_ih16, w_hh16, b,
                params["fc_w"].astype(jnp.bfloat16), params["fc_b"],
                t_blk=t_blk, tb=tb, out_dtype=jnp.float32)
        else:
            # Inter-layer activations in bf16: halves inter-layer HBM traffic.
            h = run_fused_lstm_layer(h, w_ih16, w_hh16, b,
                                     t_blk=t_blk, tb=tb, out_dtype=jnp.bfloat16)

    # Inverse layout pass at exit -> (B, T, O) batch-first.
    out = (h.reshape(nb, seq, tb, out_dim)
            .transpose(1, 0, 2, 3)
            .reshape(seq, batch, out_dim)
            .transpose(1, 0, 2))
    return out


# ----------------------------------------------------------------------------
# Deterministic parameter construction (PyTorch-style uniform(-k, k) init)
# ----------------------------------------------------------------------------
def init_params(key, input_dim, hidden_dim, num_layers, output_dim):
    k = 1.0 / math.sqrt(hidden_dim)
    params = {"lstm": []}
    for layer in range(num_layers):
        d_in = input_dim if layer == 0 else hidden_dim
        key, k1, k2, k3, k4 = jax.random.split(key, 5)
        # PyTorch stores (4H, D); pre-transpose to (D, 4H); gate order i,f,g,o.
        w_ih = jax.random.uniform(k1, (4 * hidden_dim, d_in), jnp.float32, -k, k).T
        w_hh = jax.random.uniform(k2, (4 * hidden_dim, hidden_dim), jnp.float32, -k, k).T
        b_ih = jax.random.uniform(k3, (4 * hidden_dim,), jnp.float32, -k, k)
        b_hh = jax.random.uniform(k4, (4 * hidden_dim,), jnp.float32, -k, k)
        params["lstm"].append((w_ih, w_hh, (b_ih + b_hh).reshape(1, -1)))
    key, k5, k6 = jax.random.split(key, 3)
    kf = 1.0 / math.sqrt(hidden_dim)
    params["fc_w"] = jax.random.uniform(
        k5, (output_dim, hidden_dim), jnp.float32, -kf, kf).T       # (H, O)
    params["fc_b"] = jax.random.uniform(
        k6, (output_dim,), jnp.float32, -kf, kf).reshape(1, -1)     # (1, O)
    return params


# ----------------------------------------------------------------------------
# Pure-JAX f32 reference (lax.scan) for a sanity check
# ----------------------------------------------------------------------------
def reference_forward(x_btd, params):
    h_seq = jnp.transpose(x_btd, (1, 0, 2))        # (T, B, D)
    for (w_ih, w_hh, b) in params["lstm"]:
        H = w_hh.shape[0]
        B = h_seq.shape[1]

        def step(carry, x_t):
            h, c = carry
            g = x_t @ w_ih + h @ w_hh + b
            i = jax.nn.sigmoid(g[:, 0 * H:1 * H])
            f = jax.nn.sigmoid(g[:, 1 * H:2 * H])
            gg = jnp.tanh(g[:, 2 * H:3 * H])
            o = jax.nn.sigmoid(g[:, 3 * H:4 * H])
            c = f * c + i * gg
            h = o * jnp.tanh(c)
            return (h, c), h

        init = (jnp.zeros((B, H), jnp.float32), jnp.zeros((B, H), jnp.float32))
        _, h_seq = jax.lax.scan(step, init, h_seq)
    out = h_seq @ params["fc_w"] + params["fc_b"]
    return jnp.transpose(out, (1, 0, 2))


# ----------------------------------------------------------------------------
if __name__ == "__main__":
    B, T = 2, 8
    input_dim, hidden_dim, num_layers, output_dim = 8, 32, 2, 4

    key = jax.random.PRNGKey(0)
    key, xk = jax.random.split(key)
    x = jax.random.normal(xk, (B, T, input_dim), jnp.float32)

    params = init_params(key, input_dim, hidden_dim, num_layers, output_dim)

    out = jax.block_until_ready(lstm_model_forward(x, params))
    assert out.shape == (B, T, output_dim), out.shape

    ref = jax.block_until_ready(reference_forward(x, params))
    max_diff = float(jnp.max(jnp.abs(out - ref)))
    # bf16 weights / inter-layer activations (f32 accumulation) -> small drift
    # vs. the pure-f32 reference; tolerance loosened accordingly.
    assert jnp.allclose(out, ref, rtol=5e-2, atol=5e-2), max_diff

    print("KERNEL_OK")
</pallas_src>

<mosaic_0001>
module attributes {stable_mosaic.version = 11 : i64} {
  func.func @kernel(%arg0: i32, %arg1: i32, %arg2: memref<1x16x8xf32, #tpu.memory_space<vmem>>, %arg3: memref<8x128xbf16, #tpu.memory_space<vmem>>, %arg4: memref<32x128xbf16, #tpu.memory_space<vmem>>, %arg5: memref<1x128xf32, #tpu.memory_space<vmem>>, %arg6: memref<1x16x32xbf16, #tpu.memory_space<vmem>>, %arg7: memref<2x32xf32, #tpu.memory_space<vmem>>, %arg8: memref<2x32xf32, #tpu.memory_space<vmem>>, %arg9: memref<8x2x128xf32, #tpu.memory_space<vmem>>, %arg10: memref<8x2x32xf32, #tpu.memory_space<vmem>>) attributes {dimension_semantics = [#tpu.dimension_semantics<parallel>, #tpu.dimension_semantics<arbitrary>], iteration_bounds = array<i64: 1, 1>, scalar_prefetch = 0 : i64, scratch_operands = 4 : i64, tpu.core_type = #tpu.core_type<tc>, window_params = [{transform_indices = @transform_0, window_bounds = array<i64: 1, 16, 8>}, {pipeline_mode = #tpu.pipeline_mode<synchronous>, transform_indices = @transform_1, window_bounds = array<i64: 8, 128>}, {pipeline_mode = #tpu.pipeline_mode<synchronous>, transform_indices = @transform_2, window_bounds = array<i64: 32, 128>}, {pipeline_mode = #tpu.pipeline_mode<synchronous>, transform_indices = @transform_3, window_bounds = array<i64: 1, 128>}, {transform_indices = @transform_4, window_bounds = array<i64: 1, 16, 32>}]} {
    %c0_i32 = arith.constant 0 : i32
    %0 = arith.cmpi eq, %arg1, %c0_i32 : i32
    %1 = arith.extui %0 : i1 to i32
    %c0_i32_0 = arith.constant 0 : i32
    %2 = arith.cmpi ne, %1, %c0_i32_0 : i32
    scf.if %2 {
      %cst_126 = arith.constant 0.000000e+00 : f32
      %349 = vector.broadcast %cst_126 : f32 to vector<2x32xf32>
      %c0_127 = arith.constant 0 : index
      %c0_128 = arith.constant 0 : index
      %350 = vector.load %arg7[%c0_127, %c0_128] : memref<2x32xf32, #tpu.memory_space<vmem>>, vector<2x32xf32>
      tpu.vector_store %arg7[%c0_127, %c0_128], %349 {strides = array<i32>} : memref<2x32xf32, #tpu.memory_space<vmem>>, vector<2x32xf32>,
      %cst_129 = arith.constant 0.000000e+00 : f32
      %351 = vector.broadcast %cst_129 : f32 to vector<2x32xf32>
      %c0_130 = arith.constant 0 : index
      %c0_131 = arith.constant 0 : index
      %352 = vector.load %arg8[%c0_130, %c0_131] : memref<2x32xf32, #tpu.memory_space<vmem>>, vector<2x32xf32>
      tpu.vector_store %arg8[%c0_130, %c0_131], %351 {strides = array<i32>} : memref<2x32xf32, #tpu.memory_space<vmem>>, vector<2x32xf32>,
    } else {
    }
    %c0 = arith.constant 0 : index
    %c0_1 = arith.constant 0 : index
    %c0_2 = arith.constant 0 : index
    %3 = vector.load %arg2[%c0, %c0_1, %c0_2] : memref<1x16x8xf32, #tpu.memory_space<vmem>>, vector<1x16x8xf32>
    %4 = vector.shape_cast %3 : vector<1x16x8xf32> to vector<16x8xf32>
    %5 = arith.truncf %4 : vector<16x8xf32> to vector<16x8xbf16>
    %c0_3 = arith.constant 0 : index
    %c0_4 = arith.constant 0 : index
    %6 = vector.load %arg3[%c0_3, %c0_4] : memref<8x128xbf16, #tpu.memory_space<vmem>>, vector<8x128xbf16>
    %cst = arith.constant dense<0.000000e+00> : vector<16x128xf32>
    %7 = tpu.matmul %5, %6, %cst {dimension_numbers = #tpu.dot_dimension_numbers<[1], [0], [0], [1], [0, 0, 1, 1], [], []>} : vector<16x8xbf16>, vector<8x128xbf16>, vector<16x128xf32> -> vector<16x128xf32>
    %c0_5 = arith.constant 0 : index
    %c0_6 = arith.constant 0 : index
    %8 = vector.load %arg5[%c0_5, %c0_6] : memref<1x128xf32, #tpu.memory_space<vmem>>, vector<1x128xf32>
    %9 = vector.broadcast %8 : vector<1x128xf32> to vector<16x128xf32>
    %10 = arith.addf %7, %9 : vector<16x128xf32>
    %11 = vector.extract_strided_slice %10 {offsets = [0, 0], sizes = [2, 128], strides = [1, 1]} : vector<16x128xf32> to vector<2x128xf32>
    %c0_7 = arith.constant 0 : index
    %c0_8 = arith.constant 0 : index
    %c0_9 = arith.constant 0 : index
    %12 = vector.load %arg9[%c0_7, %c0_8, %c0_9] : memref<8x2x128xf32, #tpu.memory_space<vmem>>, vector<1x2x128xf32>
    %13 = vector.shape_cast %12 : vector<1x2x128xf32> to vector<2x128xf32>
    %14 = vector.shape_cast %11 : vector<2x128xf32> to vector<1x2x128xf32>
    tpu.vector_store %arg9[%c0_7, %c0_8, %c0_9], %14 {strides = array<i32>} : memref<8x2x128xf32, #tpu.memory_space<vmem>>, vector<1x2x128xf32>,
    %15 = vector.extract_strided_slice %10 {offsets = [2, 0], sizes = [2, 128], strides = [1, 1]} : vector<16x128xf32> to vector<2x128xf32>
    %c1 = arith.constant 1 : index
    %c0_10 = arith.constant 0 : index
    %c0_11 = arith.constant 0 : index
    %16 = vector.load %arg9[%c1, %c0_10, %c0_11] : memref<8x2x128xf32, #tpu.memory_space<vmem>>, vector<1x2x128xf32>
    %17 = vector.shape_cast %16 : vector<1x2x128xf32> to vector<2x128xf32>
    %18 = vector.shape_cast %15 : vector<2x128xf32> to vector<1x2x128xf32>
    tpu.vector_store %arg9[%c1, %c0_10, %c0_11], %18 {strides = array<i32>} : memref<8x2x128xf32, #tpu.memory_space<vmem>>, vector<1x2x128xf32>,
    %19 = vector.extract_strided_slice %10 {offsets = [4, 0], sizes = [2, 128], strides = [1, 1]} : vector<16x128xf32> to vector<2x128xf32>
    %c2 = arith.constant 2 : index
    %c0_12 = arith.constant 0 : index
    %c0_13 = arith.constant 0 : index
    %20 = vector.load %arg9[%c2, %c0_12, %c0_13] : memref<8x2x128xf32, #tpu.memory_space<vmem>>, vector<1x2x128xf32>
    %21 = vector.shape_cast %20 : vector<1x2x128xf32> to vector<2x128xf32>
    %22 = vector.shape_cast %19 : vector<2x128xf32> to vector<1x2x128xf32>
    tpu.vector_store %arg9[%c2, %c0_12, %c0_13], %22 {strides = array<i32>} : memref<8x2x128xf32, #tpu.memory_space<vmem>>, vector<1x2x128xf32>,
    %23 = vector.extract_strided_slice %10 {offsets = [6, 0], sizes = [2, 128], strides = [1, 1]} : vector<16x128xf32> to vector<2x128xf32>
    %c3 = arith.constant 3 : index
    %c0_14 = arith.constant 0 : index
    %c0_15 = arith.constant 0 : index
    %24 = vector.load %arg9[%c3, %c0_14, %c0_15] : memref<8x2x128xf32, #tpu.memory_space<vmem>>, vector<1x2x128xf32>
    %25 = vector.shape_cast %24 : vector<1x2x128xf32> to vector<2x128xf32>
    %26 = vector.shape_cast %23 : vector<2x128xf32> to vector<1x2x128xf32>
    tpu.vector_store %arg9[%c3, %c0_14, %c0_15], %26 {strides = array<i32>} : memref<8x2x128xf32, #tpu.memory_space<vmem>>, vector<1x2x128xf32>,
    %27 = vector.extract_strided_slice %10 {offsets = [8, 0], sizes = [2, 128], strides = [1, 1]} : vector<16x128xf32> to vector<2x128xf32>
    %c4 = arith.constant 4 : index
    %c0_16 = arith.constant 0 : index
    %c0_17 = arith.constant 0 : index
    %28 = vector.load %arg9[%c4, %c0_16, %c0_17] : memref<8x2x128xf32, #tpu.memory_space<vmem>>, vector<1x2x128xf32>
    %29 = vector.shape_cast %28 : vector<1x2x128xf32> to vector<2x128xf32>
    %30 = vector.shape_cast %27 : vector<2x128xf32> to vector<1x2x128xf32>
    tpu.vector_store %arg9[%c4, %c0_16, %c0_17], %30 {strides = array<i32>} : memref<8x2x128xf32, #tpu.memory_space<vmem>>, vector<1x2x128xf32>,
    %31 = vector.extract_strided_slice %10 {offsets = [10, 0], sizes = [2, 128], strides = [1, 1]} : vector<16x128xf32> to vector<2x128xf32>
    %c5 = arith.constant 5 : index
    %c0_18 = arith.constant 0 : index
    %c0_19 = arith.constant 0 : index
    %32 = vector.load %arg9[%c5, %c0_18, %c0_19] : memref<8x2x128xf32, #tpu.memory_space<vmem>>, vector<1x2x128xf32>
    %33 = vector.shape_cast %32 : vector<1x2x128xf32> to vector<2x128xf32>
    %34 = vector.shape_cast %31 : vector<2x128xf32> to vector<1x2x128xf32>
    tpu.vector_store %arg9[%c5, %c0_18, %c0_19], %34 {strides = array<i32>} : memref<8x2x128xf32, #tpu.memory_space<vmem>>, vector<1x2x128xf32>,
    %35 = vector.extract_strided_slice %10 {offsets = [12, 0], sizes = [2, 128], strides = [1, 1]} : vector<16x128xf32> to vector<2x128xf32>
    %c6 = arith.constant 6 : index
    %c0_20 = arith.constant 0 : index
    %c0_21 = arith.constant 0 : index
    %36 = vector.load %arg9[%c6, %c0_20, %c0_21] : memref<8x2x128xf32, #tpu.memory_space<vmem>>, vector<1x2x128xf32>
    %37 = vector.shape_cast %36 : vector<1x2x128xf32> to vector<2x128xf32>
    %38 = vector.shape_cast %35 : vector<2x128xf32> to vector<1x2x128xf32>
    tpu.vector_store %arg9[%c6, %c0_20, %c0_21], %38 {strides = array<i32>} : memref<8x2x128xf32, #tpu.memory_space<vmem>>, vector<1x2x128xf32>,
    %39 = vector.extract_strided_slice %10 {offsets = [14, 0], sizes = [2, 128], strides = [1, 1]} : vector<16x128xf32> to vector<2x128xf32>
    %c7 = arith.constant 7 : index
    %c0_22 = arith.constant 0 : index
    %c0_23 = arith.constant 0 : index
    %40 = vector.load %arg9[%c7, %c0_22, %c0_23] : memref<8x2x128xf32, #tpu.memory_space<vmem>>, vector<1x2x128xf32>
    %41 = vector.shape_cast %40 : vector<1x2x128xf32> to vector<2x128xf32>
    %42 = vector.shape_cast %39 : vector<2x128xf32> to vector<1x2x128xf32>
    tpu.vector_store %arg9[%c7, %c0_22, %c0_23], %42 {strides = array<i32>} : memref<8x2x128xf32, #tpu.memory_space<vmem>>, vector<1x2x128xf32>,
    %c0_24 = arith.constant 0 : index
    %c0_25 = arith.constant 0 : index
    %43 = vector.load %arg4[%c0_24, %c0_25] : memref<32x128xbf16, #tpu.memory_space<vmem>>, vector<32x128xbf16>
    %c0_26 = arith.constant 0 : index
    %c0_27 = arith.constant 0 : index
    %44 = vector.load %arg7[%c0_26, %c0_27] : memref<2x32xf32, #tpu.memory_space<vmem>>, vector<2x32xf32>
    %c0_28 = arith.constant 0 : index
    %c0_29 = arith.constant 0 : index
    %45 = vector.load %arg8[%c0_28, %c0_29] : memref<2x32xf32, #tpu.memory_space<vmem>>, vector<2x32xf32>
    %c0_i32_30 = arith.constant 0 : i32
    %46 = arith.index_cast %c0_i32_30 : i32 to index
    %c0_31 = arith.constant 0 : index
    %c0_32 = arith.constant 0 : index
    %47 = vector.load %arg9[%46, %c0_31, %c0_32] : memref<8x2x128xf32, #tpu.memory_space<vmem>>, vector<1x2x128xf32>
    %48 = vector.shape_cast %47 : vector<1x2x128xf32> to vector<2x128xf32>
    %49 = arith.truncf %44 : vector<2x32xf32> to vector<2x32xbf16>
    %cst_33 = arith.constant dense<0.000000e+00> : vector<2x128xf32>
    %50 = tpu.matmul %49, %43, %cst_33 {dimension_numbers = #tpu.dot_dimension_numbers<[1], [0], [0], [1], [0, 0, 1, 1], [], []>} : vector<2x32xbf16>, vector<32x128xbf16>, vector<2x128xf32> -> vector<2x128xf32>
    %51 = arith.addf %48, %50 : vector<2x128xf32>
    %52 = vector.extract_strided_slice %51 {offsets = [0, 0], sizes = [2, 32], strides = [1, 1]} : vector<2x128xf32> to vector<2x32xf32>
    %53 = arith.negf %52 : vector<2x32xf32>
    %54 = math.exp %53 : vector<2x32xf32>
    %cst_34 = arith.constant 1.000000e+00 : f32
    %55 = vector.broadcast %cst_34 : f32 to vector<2x32xf32>
    %56 = arith.addf %55, %54 : vector<2x32xf32>
    %57 = arith.divf %55, %56 : vector<2x32xf32>
    %58 = vector.extract_strided_slice %51 {offsets = [0, 32], sizes = [2, 32], strides = [1, 1]} : vector<2x128xf32> to vector<2x32xf32>
    %59 = arith.negf %58 : vector<2x32xf32>
    %60 = math.exp %59 : vector<2x32xf32>
    %cst_35 = arith.constant 1.000000e+00 : f32
    %61 = vector.broadcast %cst_35 : f32 to vector<2x32xf32>
    %62 = arith.addf %61, %60 : vector<2x32xf32>
    %63 = arith.divf %61, %62 : vector<2x32xf32>
    %64 = vector.extract_strided_slice %51 {offsets = [0, 64], sizes = [2, 32], strides = [1, 1]} : vector<2x128xf32> to vector<2x32xf32>
    %65 = math.tanh %64 : vector<2x32xf32>
    %66 = vector.extract_strided_slice %51 {offsets = [0, 96], sizes = [2, 32], strides = [1, 1]} : vector<2x128xf32> to vector<2x32xf32>
    %67 = arith.negf %66 : vector<2x32xf32>
    %68 = math.exp %67 : vector<2x32xf32>
    %cst_36 = arith.constant 1.000000e+00 : f32
    %69 = vector.broadcast %cst_36 : f32 to vector<2x32xf32>
    %70 = arith.addf %69, %68 : vector<2x32xf32>
    %71 = arith.divf %69, %70 : vector<2x32xf32>
    %72 = arith.mulf %63, %45 : vector<2x32xf32>
    %73 = arith.mulf %57, %65 : vector<2x32xf32>
    %74 = arith.addf %72, %73 : vector<2x32xf32>
    %75 = math.tanh %74 : vector<2x32xf32>
    %76 = arith.mulf %71, %75 : vector<2x32xf32>
    %77 = arith.index_cast %c0_i32_30 : i32 to index
    %c0_37 = arith.constant 0 : index
    %c0_38 = arith.constant 0 : index
    %78 = vector.load %arg10[%77, %c0_37, %c0_38] : memref<8x2x32xf32, #tpu.memory_space<vmem>>, vector<1x2x32xf32>
    %79 = vector.shape_cast %78 : vector<1x2x32xf32> to vector<2x32xf32>
    %80 = vector.shape_cast %76 : vector<2x32xf32> to vector<1x2x32xf32>
    tpu.vector_store %arg10[%77, %c0_37, %c0_38], %80 {strides = array<i32>} : memref<8x2x32xf32, #tpu.memory_space<vmem>>, vector<1x2x32xf32>,
    %c1_i32 = arith.constant 1 : i32
    %81 = arith.index_cast %c1_i32 : i32 to index
    %c0_39 = arith.constant 0 : index
    %c0_40 = arith.constant 0 : index
    %82 = vector.load %arg9[%81, %c0_39, %c0_40] : memref<8x2x128xf32, #tpu.memory_space<vmem>>, vector<1x2x128xf32>
    %83 = vector.shape_cast %82 : vector<1x2x128xf32> to vector<2x128xf32>
    %84 = arith.truncf %76 : vector<2x32xf32> to vector<2x32xbf16>
    %cst_41 = arith.constant dense<0.000000e+00> : vector<2x128xf32>
    %85 = tpu.matmul %84, %43, %cst_41 {dimension_numbers = #tpu.dot_dimension_numbers<[1], [0], [0], [1], [0, 0, 1, 1], [], []>} : vector<2x32xbf16>, vector<32x128xbf16>, vector<2x128xf32> -> vector<2x128xf32>
    %86 = arith.addf %83, %85 : vector<2x128xf32>
    %87 = vector.extract_strided_slice %86 {offsets = [0, 0], sizes = [2, 32], strides = [1, 1]} : vector<2x128xf32> to vector<2x32xf32>
    %88 = arith.negf %87 : vector<2x32xf32>
    %89 = math.exp %88 : vector<2x32xf32>
    %cst_42 = arith.constant 1.000000e+00 : f32
    %90 = vector.broadcast %cst_42 : f32 to vector<2x32xf32>
    %91 = arith.addf %90, %89 : vector<2x32xf32>
    %92 = arith.divf %90, %91 : vector<2x32xf32>
    %93 = vector.extract_strided_slice %86 {offsets = [0, 32], sizes = [2, 32], strides = [1, 1]} : vector<2x128xf32> to vector<2x32xf32>
    %94 = arith.negf %93 : vector<2x32xf32>
    %95 = math.exp %94 : vector<2x32xf32>
    %cst_43 = arith.constant 1.000000e+00 : f32
    %96 = vector.broadcast %cst_43 : f32 to vector<2x32xf32>
    %97 = arith.addf %96, %95 : vector<2x32xf32>
    %98 = arith.divf %96, %97 : vector<2x32xf32>
    %99 = vector.extract_strided_slice %86 {offsets = [0, 64], sizes = [2, 32], strides = [1, 1]} : vector<2x128xf32> to vector<2x32xf32>
    %100 = math.tanh %99 : vector<2x32xf32>
    %101 = vector.extract_strided_slice %86 {offsets = [0, 96], sizes = [2, 32], strides = [1, 1]} : vector<2x128xf32> to vector<2x32xf32>
    %102 = arith.negf %101 : vector<2x32xf32>
    %103 = math.exp %102 : vector<2x32xf32>
    %cst_44 = arith.constant 1.000000e+00 : f32
    %104 = vector.broadcast %cst_44 : f32 to vector<2x32xf32>
    %105 = arith.addf %104, %103 : vector<2x32xf32>
    %106 = arith.divf %104, %105 : vector<2x32xf32>
    %107 = arith.mulf %98, %74 : vector<2x32xf32>
    %108 = arith.mulf %92, %100 : vector<2x32xf32>
    %109 = arith.addf %107, %108 : vector<2x32xf32>
    %110 = math.tanh %109 : vector<2x32xf32>
    %111 = arith.mulf %106, %110 : vector<2x32xf32>
    %112 = arith.index_cast %c1_i32 : i32 to index
    %c0_45 = arith.constant 0 : index
    %c0_46 = arith.constant 0 : index
    %113 = vector.load %arg10[%112, %c0_45, %c0_46] : memref<8x2x32xf32, #tpu.memory_space<vmem>>, vector<1x2x32xf32>
    %114 = vector.shape_cast %113 : vector<1x2x32xf32> to vector<2x32xf32>
    %115 = vector.shape_cast %111 : vector<2x32xf32> to vector<1x2x32xf32>
    tpu.vector_store %arg10[%112, %c0_45, %c0_46], %115 {strides = array<i32>} : memref<8x2x32xf32, #tpu.memory_space<vmem>>, vector<1x2x32xf32>,
    %c2_i32 = arith.constant 2 : i32
    %116 = arith.index_cast %c2_i32 : i32 to index
    %c0_47 = arith.constant 0 : index
    %c0_48 = arith.constant 0 : index
    %117 = vector.load %arg9[%116, %c0_47, %c0_48] : memref<8x2x128xf32, #tpu.memory_space<vmem>>, vector<1x2x128xf32>
    %118 = vector.shape_cast %117 : vector<1x2x128xf32> to vector<2x128xf32>
    %119 = arith.truncf %111 : vector<2x32xf32> to vector<2x32xbf16>
    %cst_49 = arith.constant dense<0.000000e+00> : vector<2x128xf32>
    %120 = tpu.matmul %119, %43, %cst_49 {dimension_numbers = #tpu.dot_dimension_numbers<[1], [0], [0], [1], [0, 0, 1, 1], [], []>} : vector<2x32xbf16>, vector<32x128xbf16>, vector<2x128xf32> -> vector<2x128xf32>
    %121 = arith.addf %118, %120 : vector<2x128xf32>
    %122 = vector.extract_strided_slice %121 {offsets = [0, 0], sizes = [2, 32], strides = [1, 1]} : vector<2x128xf32> to vector<2x32xf32>
    %123 = arith.negf %122 : vector<2x32xf32>
    %124 = math.exp %123 : vector<2x32xf32>
    %cst_50 = arith.constant 1.000000e+00 : f32
    %125 = vector.broadcast %cst_50 : f32 to vector<2x32xf32>
    %126 = arith.addf %125, %124 : vector<2x32xf32>
    %127 = arith.divf %125, %126 : vector<2x32xf32>
    %128 = vector.extract_strided_slice %121 {offsets = [0, 32], sizes = [2, 32], strides = [1, 1]} : vector<2x128xf32> to vector<2x32xf32>
    %129 = arith.negf %128 : vector<2x32xf32>
    %130 = math.exp %129 : vector<2x32xf32>
    %cst_51 = arith.constant 1.000000e+00 : f32
    %131 = vector.broadcast %cst_51 : f32 to vector<2x32xf32>
    %132 = arith.addf %131, %130 : vector<2x32xf32>
    %133 = arith.divf %131, %132 : vector<2x32xf32>
    %134 = vector.extract_strided_slice %121 {offsets = [0, 64], sizes = [2, 32], strides = [1, 1]} : vector<2x128xf32> to vector<2x32xf32>
    %135 = math.tanh %134 : vector<2x32xf32>
    %136 = vector.extract_strided_slice %121 {offsets = [0, 96], sizes = [2, 32], strides = [1, 1]} : vector<2x128xf32> to vector<2x32xf32>
    %137 = arith.negf %136 : vector<2x32xf32>
    %138 = math.exp %137 : vector<2x32xf32>
    %cst_52 = arith.constant 1.000000e+00 : f32
    %139 = vector.broadcast %cst_52 : f32 to vector<2x32xf32>
    %140 = arith.addf %139, %138 : vector<2x32xf32>
    %141 = arith.divf %139, %140 : vector<2x32xf32>
    %142 = arith.mulf %133, %109 : vector<2x32xf32>
    %143 = arith.mulf %127, %135 : vector<2x32xf32>
    %144 = arith.addf %142, %143 : vector<2x32xf32>
    %145 = math.tanh %144 : vector<2x32xf32>
    %146 = arith.mulf %141, %145 : vector<2x32xf32>
    %147 = arith.index_cast %c2_i32 : i32 to index
    %c0_53 = arith.constant 0 : index
    %c0_54 = arith.constant 0 : index
    %148 = vector.load %arg10[%147, %c0_53, %c0_54] : memref<8x2x32xf32, #tpu.memory_space<vmem>>, vector<1x2x32xf32>
    %149 = vector.shape_cast %148 : vector<1x2x32xf32> to vector<2x32xf32>
    %150 = vector.shape_cast %146 : vector<2x32xf32> to vector<1x2x32xf32>
    tpu.vector_store %arg10[%147, %c0_53, %c0_54], %150 {strides = array<i32>} : memref<8x2x32xf32, #tpu.memory_space<vmem>>, vector<1x2x32xf32>,
    %c3_i32 = arith.constant 3 : i32
    %151 = arith.index_cast %c3_i32 : i32 to index
    %c0_55 = arith.constant 0 : index
    %c0_56 = arith.constant 0 : index
    %152 = vector.load %arg9[%151, %c0_55, %c0_56] : memref<8x2x128xf32, #tpu.memory_space<vmem>>, vector<1x2x128xf32>
    %153 = vector.shape_cast %152 : vector<1x2x128xf32> to vector<2x128xf32>
    %154 = arith.truncf %146 : vector<2x32xf32> to vector<2x32xbf16>
    %cst_57 = arith.constant dense<0.000000e+00> : vector<2x128xf32>
    %155 = tpu.matmul %154, %43, %cst_57 {dimension_numbers = #tpu.dot_dimension_numbers<[1], [0], [0], [1], [0, 0, 1, 1], [], []>} : vector<2x32xbf16>, vector<32x128xbf16>, vector<2x128xf32> -> vector<2x128xf32>
    %156 = arith.addf %153, %155 : vector<2x128xf32>
    %157 = vector.extract_strided_slice %156 {offsets = [0, 0], sizes = [2, 32], strides = [1, 1]} : vector<2x128xf32> to vector<2x32xf32>
    %158 = arith.negf %157 : vector<2x32xf32>
    %159 = math.exp %158 : vector<2x32xf32>
    %cst_58 = arith.constant 1.000000e+00 : f32
    %160 = vector.broadcast %cst_58 : f32 to vector<2x32xf32>
    %161 = arith.addf %160, %159 : vector<2x32xf32>
    %162 = arith.divf %160, %161 : vector<2x32xf32>
    %163 = vector.extract_strided_slice %156 {offsets = [0, 32], sizes = [2, 32], strides = [1, 1]} : vector<2x128xf32> to vector<2x32xf32>
    %164 = arith.negf %163 : vector<2x32xf32>
    %165 = math.exp %164 : vector<2x32xf32>
    %cst_59 = arith.constant 1.000000e+00 : f32
    %166 = vector.broadcast %cst_59 : f32 to vector<2x32xf32>
    %167 = arith.addf %166, %165 : vector<2x32xf32>
    %168 = arith.divf %166, %167 : vector<2x32xf32>
    %169 = vector.extract_strided_slice %156 {offsets = [0, 64], sizes = [2, 32], strides = [1, 1]} : vector<2x128xf32> to vector<2x32xf32>
    %170 = math.tanh %169 : vector<2x32xf32>
    %171 = vector.extract_strided_slice %156 {offsets = [0, 96], sizes = [2, 32], strides = [1, 1]} : vector<2x128xf32> to vector<2x32xf32>
    %172 = arith.negf %171 : vector<2x32xf32>
    %173 = math.exp %172 : vector<2x32xf32>
    %cst_60 = arith.constant 1.000000e+00 : f32
    %174 = vector.broadcast %cst_60 : f32 to vector<2x32xf32>
    %175 = arith.addf %174, %173 : vector<2x32xf32>
    %176 = arith.divf %174, %175 : vector<2x32xf32>
    %177 = arith.mulf %168, %144 : vector<2x32xf32>
    %178 = arith.mulf %162, %170 : vector<2x32xf32>
    %179 = arith.addf %177, %178 : vector<2x32xf32>
    %180 = math.tanh %179 : vector<2x32xf32>
    %181 = arith.mulf %176, %180 : vector<2x32xf32>
    %182 = arith.index_cast %c3_i32 : i32 to index
    %c0_61 = arith.constant 0 : index
    %c0_62 = arith.constant 0 : index
    %183 = vector.load %arg10[%182, %c0_61, %c0_62] : memref<8x2x32xf32, #tpu.memory_space<vmem>>, vector<1x2x32xf32>
    %184 = vector.shape_cast %183 : vector<1x2x32xf32> to vector<2x32xf32>
    %185 = vector.shape_cast %181 : vector<2x32xf32> to vector<1x2x32xf32>
    tpu.vector_store %arg10[%182, %c0_61, %c0_62], %185 {strides = array<i32>} : memref<8x2x32xf32, #tpu.memory_space<vmem>>, vector<1x2x32xf32>,
    %c4_i32 = arith.constant 4 : i32
    %186 = arith.index_cast %c4_i32 : i32 to index
    %c0_63 = arith.constant 0 : index
    %c0_64 = arith.constant 0 : index
    %187 = vector.load %arg9[%186, %c0_63, %c0_64] : memref<8x2x128xf32, #tpu.memory_space<vmem>>, vector<1x2x128xf32>
    %188 = vector.shape_cast %187 : vector<1x2x128xf32> to vector<2x128xf32>
    %189 = arith.truncf %181 : vector<2x32xf32> to vector<2x32xbf16>
    %cst_65 = arith.constant dense<0.000000e+00> : vector<2x128xf32>
    %190 = tpu.matmul %189, %43, %cst_65 {dimension_numbers = #tpu.dot_dimension_numbers<[1], [0], [0], [1], [0, 0, 1, 1], [], []>} : vector<2x32xbf16>, vector<32x128xbf16>, vector<2x128xf32> -> vector<2x128xf32>
    %191 = arith.addf %188, %190 : vector<2x128xf32>
    %192 = vector.extract_strided_slice %191 {offsets = [0, 0], sizes = [2, 32], strides = [1, 1]} : vector<2x128xf32> to vector<2x32xf32>
    %193 = arith.negf %192 : vector<2x32xf32>
    %194 = math.exp %193 : vector<2x32xf32>
    %cst_66 = arith.constant 1.000000e+00 : f32
    %195 = vector.broadcast %cst_66 : f32 to vector<2x32xf32>
    %196 = arith.addf %195, %194 : vector<2x32xf32>
    %197 = arith.divf %195, %196 : vector<2x32xf32>
    %198 = vector.extract_strided_slice %191 {offsets = [0, 32], sizes = [2, 32], strides = [1, 1]} : vector<2x128xf32> to vector<2x32xf32>
    %199 = arith.negf %198 : vector<2x32xf32>
    %200 = math.exp %199 : vector<2x32xf32>
    %cst_67 = arith.constant 1.000000e+00 : f32
    %201 = vector.broadcast %cst_67 : f32 to vector<2x32xf32>
    %202 = arith.addf %201, %200 : vector<2x32xf32>
    %203 = arith.divf %201, %202 : vector<2x32xf32>
    %204 = vector.extract_strided_slice %191 {offsets = [0, 64], sizes = [2, 32], strides = [1, 1]} : vector<2x128xf32> to vector<2x32xf32>
    %205 = math.tanh %204 : vector<2x32xf32>
    %206 = vector.extract_strided_slice %191 {offsets = [0, 96], sizes = [2, 32], strides = [1, 1]} : vector<2x128xf32> to vector<2x32xf32>
    %207 = arith.negf %206 : vector<2x32xf32>
    %208 = math.exp %207 : vector<2x32xf32>
    %cst_68 = arith.constant 1.000000e+00 : f32
    %209 = vector.broadcast %cst_68 : f32 to vector<2x32xf32>
    %210 = arith.addf %209, %208 : vector<2x32xf32>
    %211 = arith.divf %209, %210 : vector<2x32xf32>
    %212 = arith.mulf %203, %179 : vector<2x32xf32>
    %213 = arith.mulf %197, %205 : vector<2x32xf32>
    %214 = arith.addf %212, %213 : vector<2x32xf32>
    %215 = math.tanh %214 : vector<2x32xf32>
    %216 = arith.mulf %211, %215 : vector<2x32xf32>
    %217 = arith.index_cast %c4_i32 : i32 to index
    %c0_69 = arith.constant 0 : index
    %c0_70 = arith.constant 0 : index
    %218 = vector.load %arg10[%217, %c0_69, %c0_70] : memref<8x2x32xf32, #tpu.memory_space<vmem>>, vector<1x2x32xf32>
    %219 = vector.shape_cast %218 : vector<1x2x32xf32> to vector<2x32xf32>
    %220 = vector.shape_cast %216 : vector<2x32xf32> to vector<1x2x32xf32>
    tpu.vector_store %arg10[%217, %c0_69, %c0_70], %220 {strides = array<i32>} : memref<8x2x32xf32, #tpu.memory_space<vmem>>, vector<1x2x32xf32>,
    %c5_i32 = arith.constant 5 : i32
    %221 = arith.index_cast %c5_i32 : i32 to index
    %c0_71 = arith.constant 0 : index
    %c0_72 = arith.constant 0 : index
    %222 = vector.load %arg9[%221, %c0_71, %c0_72] : memref<8x2x128xf32, #tpu.memory_space<vmem>>, vector<1x2x128xf32>
    %223 = vector.shape_cast %222 : vector<1x2x128xf32> to vector<2x128xf32>
    %224 = arith.truncf %216 : vector<2x32xf32> to vector<2x32xbf16>
    %cst_73 = arith.constant dense<0.000000e+00> : vector<2x128xf32>
    %225 = tpu.matmul %224, %43, %cst_73 {dimension_numbers = #tpu.dot_dimension_numbers<[1], [0], [0], [1], [0, 0, 1, 1], [], []>} : vector<2x32xbf16>, vector<32x128xbf16>, vector<2x128xf32> -> vector<2x128xf32>
    %226 = arith.addf %223, %225 : vector<2x128xf32>
    %227 = vector.extract_strided_slice %226 {offsets = [0, 0], sizes = [2, 32], strides = [1, 1]} : vector<2x128xf32> to vector<2x32xf32>
    %228 = arith.negf %227 : vector<2x32xf32>
    %229 = math.exp %228 : vector<2x32xf32>
    %cst_74 = arith.constant 1.000000e+00 : f32
    %230 = vector.broadcast %cst_74 : f32 to vector<2x32xf32>
    %231 = arith.addf %230, %229 : vector<2x32xf32>
    %232 = arith.divf %230, %231 : vector<2x32xf32>
    %233 = vector.extract_strided_slice %226 {offsets = [0, 32], sizes = [2, 32], strides = [1, 1]} : vector<2x128xf32> to vector<2x32xf32>
    %234 = arith.negf %233 : vector<2x32xf32>
    %235 = math.exp %234 : vector<2x32xf32>
    %cst_75 = arith.constant 1.000000e+00 : f32
    %236 = vector.broadcast %cst_75 : f32 to vector<2x32xf32>
    %237 = arith.addf %236, %235 : vector<2x32xf32>
    %238 = arith.divf %236, %237 : vector<2x32xf32>
    %239 = vector.extract_strided_slice %226 {offsets = [0, 64], sizes = [2, 32], strides = [1, 1]} : vector<2x128xf32> to vector<2x32xf32>
    %240 = math.tanh %239 : vector<2x32xf32>
    %241 = vector.extract_strided_slice %226 {offsets = [0, 96], sizes = [2, 32], strides = [1, 1]} : vector<2x128xf32> to vector<2x32xf32>
    %242 = arith.negf %241 : vector<2x32xf32>
    %243 = math.exp %242 : vector<2x32xf32>
    %cst_76 = arith.constant 1.000000e+00 : f32
    %244 = vector.broadcast %cst_76 : f32 to vector<2x32xf32>
    %245 = arith.addf %244, %243 : vector<2x32xf32>
    %246 = arith.divf %244, %245 : vector<2x32xf32>
    %247 = arith.mulf %238, %214 : vector<2x32xf32>
    %248 = arith.mulf %232, %240 : vector<2x32xf32>
    %249 = arith.addf %247, %248 : vector<2x32xf32>
    %250 = math.tanh %249 : vector<2x32xf32>
    %251 = arith.mulf %246, %250 : vector<2x32xf32>
    %252 = arith.index_cast %c5_i32 : i32 to index
    %c0_77 = arith.constant 0 : index
    %c0_78 = arith.constant 0 : index
    %253 = vector.load %arg10[%252, %c0_77, %c0_78] : memref<8x2x32xf32, #tpu.memory_space<vmem>>, vector<1x2x32xf32>
    %254 = vector.shape_cast %253 : vector<1x2x32xf32> to vector<2x32xf32>
    %255 = vector.shape_cast %251 : vector<2x32xf32> to vector<1x2x32xf32>
    tpu.vector_store %arg10[%252, %c0_77, %c0_78], %255 {strides = array<i32>} : memref<8x2x32xf32, #tpu.memory_space<vmem>>, vector<1x2x32xf32>,
    %c6_i32 = arith.constant 6 : i32
    %256 = arith.index_cast %c6_i32 : i32 to index
    %c0_79 = arith.constant 0 : index
    %c0_80 = arith.constant 0 : index
    %257 = vector.load %arg9[%256, %c0_79, %c0_80] : memref<8x2x128xf32, #tpu.memory_space<vmem>>, vector<1x2x128xf32>
    %258 = vector.shape_cast %257 : vector<1x2x128xf32> to vector<2x128xf32>
    %259 = arith.truncf %251 : vector<2x32xf32> to vector<2x32xbf16>
    %cst_81 = arith.constant dense<0.000000e+00> : vector<2x128xf32>
    %260 = tpu.matmul %259, %43, %cst_81 {dimension_numbers = #tpu.dot_dimension_numbers<[1], [0], [0], [1], [0, 0, 1, 1], [], []>} : vector<2x32xbf16>, vector<32x128xbf16>, vector<2x128xf32> -> vector<2x128xf32>
    %261 = arith.addf %258, %260 : vector<2x128xf32>
    %262 = vector.extract_strided_slice %261 {offsets = [0, 0], sizes = [2, 32], strides = [1, 1]} : vector<2x128xf32> to vector<2x32xf32>
    %263 = arith.negf %262 : vector<2x32xf32>
    %264 = math.exp %263 : vector<2x32xf32>
    %cst_82 = arith.constant 1.000000e+00 : f32
    %265 = vector.broadcast %cst_82 : f32 to vector<2x32xf32>
    %266 = arith.addf %265, %264 : vector<2x32xf32>
    %267 = arith.divf %265, %266 : vector<2x32xf32>
    %268 = vector.extract_strided_slice %261 {offsets = [0, 32], sizes = [2, 32], strides = [1, 1]} : vector<2x128xf32> to vector<2x32xf32>
    %269 = arith.negf %268 : vector<2x32xf32>
    %270 = math.exp %269 : vector<2x32xf32>
    %cst_83 = arith.constant 1.000000e+00 : f32
    %271 = vector.broadcast %cst_83 : f32 to vector<2x32xf32>
    %272 = arith.addf %271, %270 : vector<2x32xf32>
    %273 = arith.divf %271, %272 : vector<2x32xf32>
    %274 = vector.extract_strided_slice %261 {offsets = [0, 64], sizes = [2, 32], strides = [1, 1]} : vector<2x128xf32> to vector<2x32xf32>
    %275 = math.tanh %274 : vector<2x32xf32>
    %276 = vector.extract_strided_slice %261 {offsets = [0, 96], sizes = [2, 32], strides = [1, 1]} : vector<2x128xf32> to vector<2x32xf32>
    %277 = arith.negf %276 : vector<2x32xf32>
    %278 = math.exp %277 : vector<2x32xf32>
    %cst_84 = arith.constant 1.000000e+00 : f32
    %279 = vector.broadcast %cst_84 : f32 to vector<2x32xf32>
    %280 = arith.addf %279, %278 : vector<2x32xf32>
    %281 = arith.divf %279, %280 : vector<2x32xf32>
    %282 = arith.mulf %273, %249 : vector<2x32xf32>
    %283 = arith.mulf %267, %275 : vector<2x32xf32>
    %284 = arith.addf %282, %283 : vector<2x32xf32>
    %285 = math.tanh %284 : vector<2x32xf32>
    %286 = arith.mulf %281, %285 : vector<2x32xf32>
    %287 = arith.index_cast %c6_i32 : i32 to index
    %c0_85 = arith.constant 0 : index
    %c0_86 = arith.constant 0 : index
    %288 = vector.load %arg10[%287, %c0_85, %c0_86] : memref<8x2x32xf32, #tpu.memory_space<vmem>>, vector<1x2x32xf32>
    %289 = vector.shape_cast %288 : vector<1x2x32xf32> to vector<2x32xf32>
    %290 = vector.shape_cast %286 : vector<2x32xf32> to vector<1x2x32xf32>
    tpu.vector_store %arg10[%287, %c0_85, %c0_86], %290 {strides = array<i32>} : memref<8x2x32xf32, #tpu.memory_space<vmem>>, vector<1x2x32xf32>,
    %c7_i32 = arith.constant 7 : i32
    %291 = arith.index_cast %c7_i32 : i32 to index
    %c0_87 = arith.constant 0 : index
    %c0_88 = arith.constant 0 : index
    %292 = vector.load %arg9[%291, %c0_87, %c0_88] : memref<8x2x128xf32, #tpu.memory_space<vmem>>, vector<1x2x128xf32>
    %293 = vector.shape_cast %292 : vector<1x2x128xf32> to vector<2x128xf32>
    %294 = arith.truncf %286 : vector<2x32xf32> to vector<2x32xbf16>
    %cst_89 = arith.constant dense<0.000000e+00> : vector<2x128xf32>
    %295 = tpu.matmul %294, %43, %cst_89 {dimension_numbers = #tpu.dot_dimension_numbers<[1], [0], [0], [1], [0, 0, 1, 1], [], []>} : vector<2x32xbf16>, vector<32x128xbf16>, vector<2x128xf32> -> vector<2x128xf32>
    %296 = arith.addf %293, %295 : vector<2x128xf32>
    %297 = vector.extract_strided_slice %296 {offsets = [0, 0], sizes = [2, 32], strides = [1, 1]} : vector<2x128xf32> to vector<2x32xf32>
    %298 = arith.negf %297 : vector<2x32xf32>
    %299 = math.exp %298 : vector<2x32xf32>
    %cst_90 = arith.constant 1.000000e+00 : f32
    %300 = vector.broadcast %cst_90 : f32 to vector<2x32xf32>
    %301 = arith.addf %300, %299 : vector<2x32xf32>
    %302 = arith.divf %300, %301 : vector<2x32xf32>
    %303 = vector.extract_strided_slice %296 {offsets = [0, 32], sizes = [2, 32], strides = [1, 1]} : vector<2x128xf32> to vector<2x32xf32>
    %304 = arith.negf %303 : vector<2x32xf32>
    %305 = math.exp %304 : vector<2x32xf32>
    %cst_91 = arith.constant 1.000000e+00 : f32
    %306 = vector.broadcast %cst_91 : f32 to vector<2x32xf32>
    %307 = arith.addf %306, %305 : vector<2x32xf32>
    %308 = arith.divf %306, %307 : vector<2x32xf32>
    %309 = vector.extract_strided_slice %296 {offsets = [0, 64], sizes = [2, 32], strides = [1, 1]} : vector<2x128xf32> to vector<2x32xf32>
    %310 = math.tanh %309 : vector<2x32xf32>
    %311 = vector.extract_strided_slice %296 {offsets = [0, 96], sizes = [2, 32], strides = [1, 1]} : vector<2x128xf32> to vector<2x32xf32>
    %312 = arith.negf %311 : vector<2x32xf32>
    %313 = math.exp %312 : vector<2x32xf32>
    %cst_92 = arith.constant 1.000000e+00 : f32
    %314 = vector.broadcast %cst_92 : f32 to vector<2x32xf32>
    %315 = arith.addf %314, %313 : vector<2x32xf32>
    %316 = arith.divf %314, %315 : vector<2x32xf32>
    %317 = arith.mulf %308, %284 : vector<2x32xf32>
    %318 = arith.mulf %302, %310 : vector<2x32xf32>
    %319 = arith.addf %317, %318 : vector<2x32xf32>
    %320 = math.tanh %319 : vector<2x32xf32>
    %321 = arith.mulf %316, %320 : vector<2x32xf32>
    %322 = arith.index_cast %c7_i32 : i32 to index
    %c0_93 = arith.constant 0 : index
    %c0_94 = arith.constant 0 : index
    %323 = vector.load %arg10[%322, %c0_93, %c0_94] : memref<8x2x32xf32, #tpu.memory_space<vmem>>, vector<1x2x32xf32>
    %324 = vector.shape_cast %323 : vector<1x2x32xf32> to vector<2x32xf32>
    %325 = vector.shape_cast %321 : vector<2x32xf32> to vector<1x2x32xf32>
    tpu.vector_store %arg10[%322, %c0_93, %c0_94], %325 {strides = array<i32>} : memref<8x2x32xf32, #tpu.memory_space<vmem>>, vector<1x2x32xf32>,
    %c8_i32 = arith.constant 8 : i32
    %c0_95 = arith.constant 0 : index
    %c0_96 = arith.constant 0 : index
    %326 = vector.load %arg7[%c0_95, %c0_96] : memref<2x32xf32, #tpu.memory_space<vmem>>, vector<2x32xf32>
    tpu.vector_store %arg7[%c0_95, %c0_96], %321 {strides = array<i32>} : memref<2x32xf32, #tpu.memory_space<vmem>>, vector<2x32xf32>,
    %c0_97 = arith.constant 0 : index
    %c0_98 = arith.constant 0 : index
    %327 = vector.load %arg8[%c0_97, %c0_98] : memref<2x32xf32, #tpu.memory_space<vmem>>, vector<2x32xf32>
    tpu.vector_store %arg8[%c0_97, %c0_98], %319 {strides = array<i32>} : memref<2x32xf32, #tpu.memory_space<vmem>>, vector<2x32xf32>,
    %c0_99 = arith.constant 0 : index
    %c0_100 = arith.constant 0 : index
    %c0_101 = arith.constant 0 : index
    %328 = vector.load %arg10[%c0_99, %c0_100, %c0_101] : memref<8x2x32xf32, #tpu.memory_space<vmem>>, vector<1x2x32xf32>
    %329 = vector.shape_cast %328 : vector<1x2x32xf32> to vector<2x32xf32>
    %c1_102 = arith.constant 1 : index
    %c0_103 = arith.constant 0 : index
    %c0_104 = arith.constant 0 : index
    %330 = vector.load %arg10[%c1_102, %c0_103, %c0_104] : memref<8x2x32xf32, #tpu.memory_space<vmem>>, vector<1x2x32xf32>
    %331 = vector.shape_cast %330 : vector<1x2x32xf32> to vector<2x32xf32>
    %c2_105 = arith.constant 2 : index
    %c0_106 = arith.constant 0 : index
    %c0_107 = arith.constant 0 : index
    %332 = vector.load %arg10[%c2_105, %c0_106, %c0_107] : memref<8x2x32xf32, #tpu.memory_space<vmem>>, vector<1x2x32xf32>
    %333 = vector.shape_cast %332 : vector<1x2x32xf32> to vector<2x32xf32>
    %c3_108 = arith.constant 3 : index
    %c0_109 = arith.constant 0 : index
    %c0_110 = arith.constant 0 : index
    %334 = vector.load %arg10[%c3_108, %c0_109, %c0_110] : memref<8x2x32xf32, #tpu.memory_space<vmem>>, vector<1x2x32xf32>
    %335 = vector.shape_cast %334 : vector<1x2x32xf32> to vector<2x32xf32>
    %c4_111 = arith.constant 4 : index
    %c0_112 = arith.constant 0 : index
    %c0_113 = arith.constant 0 : index
    %336 = vector.load %arg10[%c4_111, %c0_112, %c0_113] : memref<8x2x32xf32, #tpu.memory_space<vmem>>, vector<1x2x32xf32>
    %337 = vector.shape_cast %336 : vector<1x2x32xf32> to vector<2x32xf32>
    %c5_114 = arith.constant 5 : index
    %c0_115 = arith.constant 0 : index
    %c0_116 = arith.constant 0 : index
    %338 = vector.load %arg10[%c5_114, %c0_115, %c0_116] : memref<8x2x32xf32, #tpu.memory_space<vmem>>, vector<1x2x32xf32>
    %339 = vector.shape_cast %338 : vector<1x2x32xf32> to vector<2x32xf32>
    %c6_117 = arith.constant 6 : index
    %c0_118 = arith.constant 0 : index
    %c0_119 = arith.constant 0 : index
    %340 = vector.load %arg10[%c6_117, %c0_118, %c0_119] : memref<8x2x32xf32, #tpu.memory_space<vmem>>, vector<1x2x32xf32>
    %341 = vector.shape_cast %340 : vector<1x2x32xf32> to vector<2x32xf32>
    %c7_120 = arith.constant 7 : index
    %c0_121 = arith.constant 0 : index
    %c0_122 = arith.constant 0 : index
    %342 = vector.load %arg10[%c7_120, %c0_121, %c0_122] : memref<8x2x32xf32, #tpu.memory_space<vmem>>, vector<1x2x32xf32>
    %343 = vector.shape_cast %342 : vector<1x2x32xf32> to vector<2x32xf32>
    %344 = tpu.concatenate %329, %331, %333, %335, %337, %339, %341, %343 in 0 : vector<2x32xf32>, vector<2x32xf32>, vector<2x32xf32>, vector<2x32xf32>, vector<2x32xf32>, vector<2x32xf32>, vector<2x32xf32>, vector<2x32xf32> -> vector<16x32xf32>
    %345 = arith.truncf %344 : vector<16x32xf32> to vector<16x32xbf16>
    %c0_123 = arith.constant 0 : index
    %c0_124 = arith.constant 0 : index
    %c0_125 = arith.constant 0 : index
    %346 = vector.load %arg6[%c0_123, %c0_124, %c0_125] : memref<1x16x32xbf16, #tpu.memory_space<vmem>>, vector<1x16x32xbf16>
    %347 = vector.shape_cast %346 : vector<1x16x32xbf16> to vector<16x32xbf16>
    %348 = vector.shape_cast %345 : vector<16x32xbf16> to vector<1x16x32xbf16>
    tpu.vector_store %arg6[%c0_123, %c0_124, %c0_125], %348 {strides = array<i32>} : memref<1x16x32xbf16, #tpu.memory_space<vmem>>, vector<1x16x32xbf16>,
    return
  }
  func.func @transform_0(%arg0: i32, %arg1: i32) -> (i32, i32, i32) {
    %c0_i32 = arith.constant 0 : i32
    %c0_i32_0 = arith.constant 0 : i32
    return %arg0, %arg1, %c0_i32 : i32, i32, i32
  }
  func.func @transform_1(%arg0: i32, %arg1: i32) -> (i32, i32) {
    %c0_i32 = arith.constant 0 : i32
    %c0_i32_0 = arith.constant 0 : i32
    %c0_i32_1 = arith.constant 0 : i32
    return %c0_i32, %c0_i32_0 : i32, i32
  }
  func.func @transform_2(%arg0: i32, %arg1: i32) -> (i32, i32) {
    %c0_i32 = arith.constant 0 : i32
    %c0_i32_0 = arith.constant 0 : i32
    %c0_i32_1 = arith.constant 0 : i32
    return %c0_i32, %c0_i32_0 : i32, i32
  }
  func.func @transform_3(%arg0: i32, %arg1: i32) -> (i32, i32) {
    %c0_i32 = arith.constant 0 : i32
    %c0_i32_0 = arith.constant 0 : i32
    %c0_i32_1 = arith.constant 0 : i32
    return %c0_i32, %c0_i32_0 : i32, i32
  }
  func.func @transform_4(%arg0: i32, %arg1: i32) -> (i32, i32, i32) {
    %c0_i32 = arith.constant 0 : i32
    %c0_i32_0 = arith.constant 0 : i32
    return %arg0, %arg1, %c0_i32 : i32, i32, i32
  }
}

module attributes {stable_mosaic.version = 11 : i64} {
  func.func @kernel(%arg0: i32, %arg1: i32, %arg2: memref<1x16x32xbf16, #tpu.memory_space<vmem>>, %arg3: memref<32x128xbf16, #tpu.memory_space<vmem>>, %arg4: memref<32x128xbf16, #tpu.memory_space<vmem>>, %arg5: memref<1x128xf32, #tpu.memory_space<vmem>>, %arg6: memref<32x4xbf16, #tpu.memory_space<vmem>>, %arg7: memref<1x4xf32, #tpu.memory_space<vmem>>, %arg8: memref<1x16x4xf32, #tpu.memory_space<vmem>>, %arg9: memref<2x32xf32, #tpu.memory_space<vmem>>, %arg10: memref<2x32xf32, #tpu.memory_space<vmem>>, %arg11: memref<8x2x128xf32, #tpu.memory_space<vmem>>, %arg12: memref<8x2x32xf32, #tpu.memory_space<vmem>>) attributes {dimension_semantics = [#tpu.dimension_semantics<parallel>, #tpu.dimension_semantics<arbitrary>], iteration_bounds = array<i64: 1, 1>, scalar_prefetch = 0 : i64, scratch_operands = 4 : i64, tpu.core_type = #tpu.core_type<tc>, window_params = [{transform_indices = @transform_0, window_bounds = array<i64: 1, 16, 32>}, {pipeline_mode = #tpu.pipeline_mode<synchronous>, transform_indices = @transform_1, window_bounds = array<i64: 32, 128>}, {pipeline_mode = #tpu.pipeline_mode<synchronous>, transform_indices = @transform_2, window_bounds = array<i64: 32, 128>}, {pipeline_mode = #tpu.pipeline_mode<synchronous>, transform_indices = @transform_3, window_bounds = array<i64: 1, 128>}, {pipeline_mode = #tpu.pipeline_mode<synchronous>, transform_indices = @transform_4, window_bounds = array<i64: 32, 4>}, {pipeline_mode = #tpu.pipeline_mode<synchronous>, transform_indices = @transform_5, window_bounds = array<i64: 1, 4>}, {transform_indices = @transform_6, window_bounds = array<i64: 1, 16, 4>}]} {
    %c0_i32 = arith.constant 0 : i32
    %0 = arith.cmpi eq, %arg1, %c0_i32 : i32
    %1 = arith.extui %0 : i1 to i32
    %c0_i32_0 = arith.constant 0 : i32
    %2 = arith.cmpi ne, %1, %c0_i32_0 : i32
    scf.if %2 {
      %cst_131 = arith.constant 0.000000e+00 : f32
      %353 = vector.broadcast %cst_131 : f32 to vector<2x32xf32>
      %c0_132 = arith.constant 0 : index
      %c0_133 = arith.constant 0 : index
      %354 = vector.load %arg9[%c0_132, %c0_133] : memref<2x32xf32, #tpu.memory_space<vmem>>, vector<2x32xf32>
      tpu.vector_store %arg9[%c0_132, %c0_133], %353 {strides = array<i32>} : memref<2x32xf32, #tpu.memory_space<vmem>>, vector<2x32xf32>,
      %cst_134 = arith.constant 0.000000e+00 : f32
      %355 = vector.broadcast %cst_134 : f32 to vector<2x32xf32>
      %c0_135 = arith.constant 0 : index
      %c0_136 = arith.constant 0 : index
      %356 = vector.load %arg10[%c0_135, %c0_136] : memref<2x32xf32, #tpu.memory_space<vmem>>, vector<2x32xf32>
      tpu.vector_store %arg10[%c0_135, %c0_136], %355 {strides = array<i32>} : memref<2x32xf32, #tpu.memory_space<vmem>>, vector<2x32xf32>,
    } else {
    }
    %c0 = arith.constant 0 : index
    %c0_1 = arith.constant 0 : index
    %c0_2 = arith.constant 0 : index
    %3 = vector.load %arg2[%c0, %c0_1, %c0_2] : memref<1x16x32xbf16, #tpu.memory_space<vmem>>, vector<1x16x32xbf16>
    %4 = vector.shape_cast %3 : vector<1x16x32xbf16> to vector<16x32xbf16>
    %c0_3 = arith.constant 0 : index
    %c0_4 = arith.constant 0 : index
    %5 = vector.load %arg3[%c0_3, %c0_4] : memref<32x128xbf16, #tpu.memory_space<vmem>>, vector<32x128xbf16>
    %cst = arith.constant dense<0.000000e+00> : vector<16x128xf32>
    %6 = tpu.matmul %4, %5, %cst {dimension_numbers = #tpu.dot_dimension_numbers<[1], [0], [0], [1], [0, 0, 1, 1], [], []>} : vector<16x32xbf16>, vector<32x128xbf16>, vector<16x128xf32> -> vector<16x128xf32>
    %c0_5 = arith.constant 0 : index
    %c0_6 = arith.constant 0 : index
    %7 = vector.load %arg5[%c0_5, %c0_6] : memref<1x128xf32, #tpu.memory_space<vmem>>, vector<1x128xf32>
    %8 = vector.broadcast %7 : vector<1x128xf32> to vector<16x128xf32>
    %9 = arith.addf %6, %8 : vector<16x128xf32>
    %10 = vector.extract_strided_slice %9 {offsets = [0, 0], sizes = [2, 128], strides = [1, 1]} : vector<16x128xf32> to vector<2x128xf32>
    %c0_7 = arith.constant 0 : index
    %c0_8 = arith.constant 0 : index
    %c0_9 = arith.constant 0 : index
    %11 = vector.load %arg11[%c0_7, %c0_8, %c0_9] : memref<8x2x128xf32, #tpu.memory_space<vmem>>, vector<1x2x128xf32>
    %12 = vector.shape_cast %11 : vector<1x2x128xf32> to vector<2x128xf32>
    %13 = vector.shape_cast %10 : vector<2x128xf32> to vector<1x2x128xf32>
    tpu.vector_store %arg11[%c0_7, %c0_8, %c0_9], %13 {strides = array<i32>} : memref<8x2x128xf32, #tpu.memory_space<vmem>>, vector<1x2x128xf32>,
    %14 = vector.extract_strided_slice %9 {offsets = [2, 0], sizes = [2, 128], strides = [1, 1]} : vector<16x128xf32> to vector<2x128xf32>
    %c1 = arith.constant 1 : index
    %c0_10 = arith.constant 0 : index
    %c0_11 = arith.constant 0 : index
    %15 = vector.load %arg11[%c1, %c0_10, %c0_11] : memref<8x2x128xf32, #tpu.memory_space<vmem>>, vector<1x2x128xf32>
    %16 = vector.shape_cast %15 : vector<1x2x128xf32> to vector<2x128xf32>
    %17 = vector.shape_cast %14 : vector<2x128xf32> to vector<1x2x128xf32>
    tpu.vector_store %arg11[%c1, %c0_10, %c0_11], %17 {strides = array<i32>} : memref<8x2x128xf32, #tpu.memory_space<vmem>>, vector<1x2x128xf32>,
    %18 = vector.extract_strided_slice %9 {offsets = [4, 0], sizes = [2, 128], strides = [1, 1]} : vector<16x128xf32> to vector<2x128xf32>
    %c2 = arith.constant 2 : index
    %c0_12 = arith.constant 0 : index
    %c0_13 = arith.constant 0 : index
    %19 = vector.load %arg11[%c2, %c0_12, %c0_13] : memref<8x2x128xf32, #tpu.memory_space<vmem>>, vector<1x2x128xf32>
    %20 = vector.shape_cast %19 : vector<1x2x128xf32> to vector<2x128xf32>
    %21 = vector.shape_cast %18 : vector<2x128xf32> to vector<1x2x128xf32>
    tpu.vector_store %arg11[%c2, %c0_12, %c0_13], %21 {strides = array<i32>} : memref<8x2x128xf32, #tpu.memory_space<vmem>>, vector<1x2x128xf32>,
    %22 = vector.extract_strided_slice %9 {offsets = [6, 0], sizes = [2, 128], strides = [1, 1]} : vector<16x128xf32> to vector<2x128xf32>
    %c3 = arith.constant 3 : index
    %c0_14 = arith.constant 0 : index
    %c0_15 = arith.constant 0 : index
    %23 = vector.load %arg11[%c3, %c0_14, %c0_15] : memref<8x2x128xf32, #tpu.memory_space<vmem>>, vector<1x2x128xf32>
    %24 = vector.shape_cast %23 : vector<1x2x128xf32> to vector<2x128xf32>
    %25 = vector.shape_cast %22 : vector<2x128xf32> to vector<1x2x128xf32>
    tpu.vector_store %arg11[%c3, %c0_14, %c0_15], %25 {strides = array<i32>} : memref<8x2x128xf32, #tpu.memory_space<vmem>>, vector<1x2x128xf32>,
    %26 = vector.extract_strided_slice %9 {offsets = [8, 0], sizes = [2, 128], strides = [1, 1]} : vector<16x128xf32> to vector<2x128xf32>
    %c4 = arith.constant 4 : index
    %c0_16 = arith.constant 0 : index
    %c0_17 = arith.constant 0 : index
    %27 = vector.load %arg11[%c4, %c0_16, %c0_17] : memref<8x2x128xf32, #tpu.memory_space<vmem>>, vector<1x2x128xf32>
    %28 = vector.shape_cast %27 : vector<1x2x128xf32> to vector<2x128xf32>
    %29 = vector.shape_cast %26 : vector<2x128xf32> to vector<1x2x128xf32>
    tpu.vector_store %arg11[%c4, %c0_16, %c0_17], %29 {strides = array<i32>} : memref<8x2x128xf32, #tpu.memory_space<vmem>>, vector<1x2x128xf32>,
    %30 = vector.extract_strided_slice %9 {offsets = [10, 0], sizes = [2, 128], strides = [1, 1]} : vector<16x128xf32> to vector<2x128xf32>
    %c5 = arith.constant 5 : index
    %c0_18 = arith.constant 0 : index
    %c0_19 = arith.constant 0 : index
    %31 = vector.load %arg11[%c5, %c0_18, %c0_19] : memref<8x2x128xf32, #tpu.memory_space<vmem>>, vector<1x2x128xf32>
    %32 = vector.shape_cast %31 : vector<1x2x128xf32> to vector<2x128xf32>
    %33 = vector.shape_cast %30 : vector<2x128xf32> to vector<1x2x128xf32>
    tpu.vector_store %arg11[%c5, %c0_18, %c0_19], %33 {strides = array<i32>} : memref<8x2x128xf32, #tpu.memory_space<vmem>>, vector<1x2x128xf32>,
    %34 = vector.extract_strided_slice %9 {offsets = [12, 0], sizes = [2, 128], strides = [1, 1]} : vector<16x128xf32> to vector<2x128xf32>
    %c6 = arith.constant 6 : index
    %c0_20 = arith.constant 0 : index
    %c0_21 = arith.constant 0 : index
    %35 = vector.load %arg11[%c6, %c0_20, %c0_21] : memref<8x2x128xf32, #tpu.memory_space<vmem>>, vector<1x2x128xf32>
    %36 = vector.shape_cast %35 : vector<1x2x128xf32> to vector<2x128xf32>
    %37 = vector.shape_cast %34 : vector<2x128xf32> to vector<1x2x128xf32>
    tpu.vector_store %arg11[%c6, %c0_20, %c0_21], %37 {strides = array<i32>} : memref<8x2x128xf32, #tpu.memory_space<vmem>>, vector<1x2x128xf32>,
    %38 = vector.extract_strided_slice %9 {offsets = [14, 0], sizes = [2, 128], strides = [1, 1]} : vector<16x128xf32> to vector<2x128xf32>
    %c7 = arith.constant 7 : index
    %c0_22 = arith.constant 0 : index
    %c0_23 = arith.constant 0 : index
    %39 = vector.load %arg11[%c7, %c0_22, %c0_23] : memref<8x2x128xf32, #tpu.memory_space<vmem>>, vector<1x2x128xf32>
    %40 = vector.shape_cast %39 : vector<1x2x128xf32> to vector<2x128xf32>
    %41 = vector.shape_cast %38 : vector<2x128xf32> to vector<1x2x128xf32>
    tpu.vector_store %arg11[%c7, %c0_22, %c0_23], %41 {strides = array<i32>} : memref<8x2x128xf32, #tpu.memory_space<vmem>>, vector<1x2x128xf32>,
    %c0_24 = arith.constant 0 : index
    %c0_25 = arith.constant 0 : index
    %42 = vector.load %arg4[%c0_24, %c0_25] : memref<32x128xbf16, #tpu.memory_space<vmem>>, vector<32x128xbf16>
    %c0_26 = arith.constant 0 : index
    %c0_27 = arith.constant 0 : index
    %43 = vector.load %arg9[%c0_26, %c0_27] : memref<2x32xf32, #tpu.memory_space<vmem>>, vector<2x32xf32>
    %c0_28 = arith.constant 0 : index
    %c0_29 = arith.constant 0 : index
    %44 = vector.load %arg10[%c0_28, %c0_29] : memref<2x32xf32, #tpu.memory_space<vmem>>, vector<2x32xf32>
    %c0_i32_30 = arith.constant 0 : i32
    %45 = arith.index_cast %c0_i32_30 : i32 to index
    %c0_31 = arith.constant 0 : index
    %c0_32 = arith.constant 0 : index
    %46 = vector.load %arg11[%45, %c0_31, %c0_32] : memref<8x2x128xf32, #tpu.memory_space<vmem>>, vector<1x2x128xf32>
    %47 = vector.shape_cast %46 : vector<1x2x128xf32> to vector<2x128xf32>
    %48 = arith.truncf %43 : vector<2x32xf32> to vector<2x32xbf16>
    %cst_33 = arith.constant dense<0.000000e+00> : vector<2x128xf32>
    %49 = tpu.matmul %48, %42, %cst_33 {dimension_numbers = #tpu.dot_dimension_numbers<[1], [0], [0], [1], [0, 0, 1, 1], [], []>} : vector<2x32xbf16>, vector<32x128xbf16>, vector<2x128xf32> -> vector<2x128xf32>
    %50 = arith.addf %47, %49 : vector<2x128xf32>
    %51 = vector.extract_strided_slice %50 {offsets = [0, 0], sizes = [2, 32], strides = [1, 1]} : vector<2x128xf32> to vector<2x32xf32>
    %52 = arith.negf %51 : vector<2x32xf32>
    %53 = math.exp %52 : vector<2x32xf32>
    %cst_34 = arith.constant 1.000000e+00 : f32
    %54 = vector.broadcast %cst_34 : f32 to vector<2x32xf32>
    %55 = arith.addf %54, %53 : vector<2x32xf32>
    %56 = arith.divf %54, %55 : vector<2x32xf32>
    %57 = vector.extract_strided_slice %50 {offsets = [0, 32], sizes = [2, 32], strides = [1, 1]} : vector<2x128xf32> to vector<2x32xf32>
    %58 = arith.negf %57 : vector<2x32xf32>
    %59 = math.exp %58 : vector<2x32xf32>
    %cst_35 = arith.constant 1.000000e+00 : f32
    %60 = vector.broadcast %cst_35 : f32 to vector<2x32xf32>
    %61 = arith.addf %60, %59 : vector<2x32xf32>
    %62 = arith.divf %60, %61 : vector<2x32xf32>
    %63 = vector.extract_strided_slice %50 {offsets = [0, 64], sizes = [2, 32], strides = [1, 1]} : vector<2x128xf32> to vector<2x32xf32>
    %64 = math.tanh %63 : vector<2x32xf32>
    %65 = vector.extract_strided_slice %50 {offsets = [0, 96], sizes = [2, 32], strides = [1, 1]} : vector<2x128xf32> to vector<2x32xf32>
    %66 = arith.negf %65 : vector<2x32xf32>
    %67 = math.exp %66 : vector<2x32xf32>
    %cst_36 = arith.constant 1.000000e+00 : f32
    %68 = vector.broadcast %cst_36 : f32 to vector<2x32xf32>
    %69 = arith.addf %68, %67 : vector<2x32xf32>
    %70 = arith.divf %68, %69 : vector<2x32xf32>
    %71 = arith.mulf %62, %44 : vector<2x32xf32>
    %72 = arith.mulf %56, %64 : vector<2x32xf32>
    %73 = arith.addf %71, %72 : vector<2x32xf32>
    %74 = math.tanh %73 : vector<2x32xf32>
    %75 = arith.mulf %70, %74 : vector<2x32xf32>
    %76 = arith.index_cast %c0_i32_30 : i32 to index
    %c0_37 = arith.constant 0 : index
    %c0_38 = arith.constant 0 : index
    %77 = vector.load %arg12[%76, %c0_37, %c0_38] : memref<8x2x32xf32, #tpu.memory_space<vmem>>, vector<1x2x32xf32>
    %78 = vector.shape_cast %77 : vector<1x2x32xf32> to vector<2x32xf32>
    %79 = vector.shape_cast %75 : vector<2x32xf32> to vector<1x2x32xf32>
    tpu.vector_store %arg12[%76, %c0_37, %c0_38], %79 {strides = array<i32>} : memref<8x2x32xf32, #tpu.memory_space<vmem>>, vector<1x2x32xf32>,
    %c1_i32 = arith.constant 1 : i32
    %80 = arith.index_cast %c1_i32 : i32 to index
    %c0_39 = arith.constant 0 : index
    %c0_40 = arith.constant 0 : index
    %81 = vector.load %arg11[%80, %c0_39, %c0_40] : memref<8x2x128xf32, #tpu.memory_space<vmem>>, vector<1x2x128xf32>
    %82 = vector.shape_cast %81 : vector<1x2x128xf32> to vector<2x128xf32>
    %83 = arith.truncf %75 : vector<2x32xf32> to vector<2x32xbf16>
    %cst_41 = arith.constant dense<0.000000e+00> : vector<2x128xf32>
    %84 = tpu.matmul %83, %42, %cst_41 {dimension_numbers = #tpu.dot_dimension_numbers<[1], [0], [0], [1], [0, 0, 1, 1], [], []>} : vector<2x32xbf16>, vector<32x128xbf16>, vector<2x128xf32> -> vector<2x128xf32>
    %85 = arith.addf %82, %84 : vector<2x128xf32>
    %86 = vector.extract_strided_slice %85 {offsets = [0, 0], sizes = [2, 32], strides = [1, 1]} : vector<2x128xf32> to vector<2x32xf32>
    %87 = arith.negf %86 : vector<2x32xf32>
    %88 = math.exp %87 : vector<2x32xf32>
    %cst_42 = arith.constant 1.000000e+00 : f32
    %89 = vector.broadcast %cst_42 : f32 to vector<2x32xf32>
    %90 = arith.addf %89, %88 : vector<2x32xf32>
    %91 = arith.divf %89, %90 : vector<2x32xf32>
    %92 = vector.extract_strided_slice %85 {offsets = [0, 32], sizes = [2, 32], strides = [1, 1]} : vector<2x128xf32> to vector<2x32xf32>
    %93 = arith.negf %92 : vector<2x32xf32>
    %94 = math.exp %93 : vector<2x32xf32>
    %cst_43 = arith.constant 1.000000e+00 : f32
    %95 = vector.broadcast %cst_43 : f32 to vector<2x32xf32>
    %96 = arith.addf %95, %94 : vector<2x32xf32>
    %97 = arith.divf %95, %96 : vector<2x32xf32>
    %98 = vector.extract_strided_slice %85 {offsets = [0, 64], sizes = [2, 32], strides = [1, 1]} : vector<2x128xf32> to vector<2x32xf32>
    %99 = math.tanh %98 : vector<2x32xf32>
    %100 = vector.extract_strided_slice %85 {offsets = [0, 96], sizes = [2, 32], strides = [1, 1]} : vector<2x128xf32> to vector<2x32xf32>
    %101 = arith.negf %100 : vector<2x32xf32>
    %102 = math.exp %101 : vector<2x32xf32>
    %cst_44 = arith.constant 1.000000e+00 : f32
    %103 = vector.broadcast %cst_44 : f32 to vector<2x32xf32>
    %104 = arith.addf %103, %102 : vector<2x32xf32>
    %105 = arith.divf %103, %104 : vector<2x32xf32>
    %106 = arith.mulf %97, %73 : vector<2x32xf32>
    %107 = arith.mulf %91, %99 : vector<2x32xf32>
    %108 = arith.addf %106, %107 : vector<2x32xf32>
    %109 = math.tanh %108 : vector<2x32xf32>
    %110 = arith.mulf %105, %109 : vector<2x32xf32>
    %111 = arith.index_cast %c1_i32 : i32 to index
    %c0_45 = arith.constant 0 : index
    %c0_46 = arith.constant 0 : index
    %112 = vector.load %arg12[%111, %c0_45, %c0_46] : memref<8x2x32xf32, #tpu.memory_space<vmem>>, vector<1x2x32xf32>
    %113 = vector.shape_cast %112 : vector<1x2x32xf32> to vector<2x32xf32>
    %114 = vector.shape_cast %110 : vector<2x32xf32> to vector<1x2x32xf32>
    tpu.vector_store %arg12[%111, %c0_45, %c0_46], %114 {strides = array<i32>} : memref<8x2x32xf32, #tpu.memory_space<vmem>>, vector<1x2x32xf32>,
    %c2_i32 = arith.constant 2 : i32
    %115 = arith.index_cast %c2_i32 : i32 to index
    %c0_47 = arith.constant 0 : index
    %c0_48 = arith.constant 0 : index
    %116 = vector.load %arg11[%115, %c0_47, %c0_48] : memref<8x2x128xf32, #tpu.memory_space<vmem>>, vector<1x2x128xf32>
    %117 = vector.shape_cast %116 : vector<1x2x128xf32> to vector<2x128xf32>
    %118 = arith.truncf %110 : vector<2x32xf32> to vector<2x32xbf16>
    %cst_49 = arith.constant dense<0.000000e+00> : vector<2x128xf32>
    %119 = tpu.matmul %118, %42, %cst_49 {dimension_numbers = #tpu.dot_dimension_numbers<[1], [0], [0], [1], [0, 0, 1, 1], [], []>} : vector<2x32xbf16>, vector<32x128xbf16>, vector<2x128xf32> -> vector<2x128xf32>
    %120 = arith.addf %117, %119 : vector<2x128xf32>
    %121 = vector.extract_strided_slice %120 {offsets = [0, 0], sizes = [2, 32], strides = [1, 1]} : vector<2x128xf32> to vector<2x32xf32>
    %122 = arith.negf %121 : vector<2x32xf32>
    %123 = math.exp %122 : vector<2x32xf32>
    %cst_50 = arith.constant 1.000000e+00 : f32
    %124 = vector.broadcast %cst_50 : f32 to vector<2x32xf32>
    %125 = arith.addf %124, %123 : vector<2x32xf32>
    %126 = arith.divf %124, %125 : vector<2x32xf32>
    %127 = vector.extract_strided_slice %120 {offsets = [0, 32], sizes = [2, 32], strides = [1, 1]} : vector<2x128xf32> to vector<2x32xf32>
    %128 = arith.negf %127 : vector<2x32xf32>
    %129 = math.exp %128 : vector<2x32xf32>
    %cst_51 = arith.constant 1.000000e+00 : f32
    %130 = vector.broadcast %cst_51 : f32 to vector<2x32xf32>
    %131 = arith.addf %130, %129 : vector<2x32xf32>
    %132 = arith.divf %130, %131 : vector<2x32xf32>
    %133 = vector.extract_strided_slice %120 {offsets = [0, 64], sizes = [2, 32], strides = [1, 1]} : vector<2x128xf32> to vector<2x32xf32>
    %134 = math.tanh %133 : vector<2x32xf32>
    %135 = vector.extract_strided_slice %120 {offsets = [0, 96], sizes = [2, 32], strides = [1, 1]} : vector<2x128xf32> to vector<2x32xf32>
    %136 = arith.negf %135 : vector<2x32xf32>
    %137 = math.exp %136 : vector<2x32xf32>
    %cst_52 = arith.constant 1.000000e+00 : f32
    %138 = vector.broadcast %cst_52 : f32 to vector<2x32xf32>
    %139 = arith.addf %138, %137 : vector<2x32xf32>
    %140 = arith.divf %138, %139 : vector<2x32xf32>
    %141 = arith.mulf %132, %108 : vector<2x32xf32>
    %142 = arith.mulf %126, %134 : vector<2x32xf32>
    %143 = arith.addf %141, %142 : vector<2x32xf32>
    %144 = math.tanh %143 : vector<2x32xf32>
    %145 = arith.mulf %140, %144 : vector<2x32xf32>
    %146 = arith.index_cast %c2_i32 : i32 to index
    %c0_53 = arith.constant 0 : index
    %c0_54 = arith.constant 0 : index
    %147 = vector.load %arg12[%146, %c0_53, %c0_54] : memref<8x2x32xf32, #tpu.memory_space<vmem>>, vector<1x2x32xf32>
    %148 = vector.shape_cast %147 : vector<1x2x32xf32> to vector<2x32xf32>
    %149 = vector.shape_cast %145 : vector<2x32xf32> to vector<1x2x32xf32>
    tpu.vector_store %arg12[%146, %c0_53, %c0_54], %149 {strides = array<i32>} : memref<8x2x32xf32, #tpu.memory_space<vmem>>, vector<1x2x32xf32>,
    %c3_i32 = arith.constant 3 : i32
    %150 = arith.index_cast %c3_i32 : i32 to index
    %c0_55 = arith.constant 0 : index
    %c0_56 = arith.constant 0 : index
    %151 = vector.load %arg11[%150, %c0_55, %c0_56] : memref<8x2x128xf32, #tpu.memory_space<vmem>>, vector<1x2x128xf32>
    %152 = vector.shape_cast %151 : vector<1x2x128xf32> to vector<2x128xf32>
    %153 = arith.truncf %145 : vector<2x32xf32> to vector<2x32xbf16>
    %cst_57 = arith.constant dense<0.000000e+00> : vector<2x128xf32>
    %154 = tpu.matmul %153, %42, %cst_57 {dimension_numbers = #tpu.dot_dimension_numbers<[1], [0], [0], [1], [0, 0, 1, 1], [], []>} : vector<2x32xbf16>, vector<32x128xbf16>, vector<2x128xf32> -> vector<2x128xf32>
    %155 = arith.addf %152, %154 : vector<2x128xf32>
    %156 = vector.extract_strided_slice %155 {offsets = [0, 0], sizes = [2, 32], strides = [1, 1]} : vector<2x128xf32> to vector<2x32xf32>
    %157 = arith.negf %156 : vector<2x32xf32>
    %158 = math.exp %157 : vector<2x32xf32>
    %cst_58 = arith.constant 1.000000e+00 : f32
    %159 = vector.broadcast %cst_58 : f32 to vector<2x32xf32>
    %160 = arith.addf %159, %158 : vector<2x32xf32>
    %161 = arith.divf %159, %160 : vector<2x32xf32>
    %162 = vector.extract_strided_slice %155 {offsets = [0, 32], sizes = [2, 32], strides = [1, 1]} : vector<2x128xf32> to vector<2x32xf32>
    %163 = arith.negf %162 : vector<2x32xf32>
    %164 = math.exp %163 : vector<2x32xf32>
    %cst_59 = arith.constant 1.000000e+00 : f32
    %165 = vector.broadcast %cst_59 : f32 to vector<2x32xf32>
    %166 = arith.addf %165, %164 : vector<2x32xf32>
    %167 = arith.divf %165, %166 : vector<2x32xf32>
    %168 = vector.extract_strided_slice %155 {offsets = [0, 64], sizes = [2, 32], strides = [1, 1]} : vector<2x128xf32> to vector<2x32xf32>
    %169 = math.tanh %168 : vector<2x32xf32>
    %170 = vector.extract_strided_slice %155 {offsets = [0, 96], sizes = [2, 32], strides = [1, 1]} : vector<2x128xf32> to vector<2x32xf32>
    %171 = arith.negf %170 : vector<2x32xf32>
    %172 = math.exp %171 : vector<2x32xf32>
    %cst_60 = arith.constant 1.000000e+00 : f32
    %173 = vector.broadcast %cst_60 : f32 to vector<2x32xf32>
    %174 = arith.addf %173, %172 : vector<2x32xf32>
    %175 = arith.divf %173, %174 : vector<2x32xf32>
    %176 = arith.mulf %167, %143 : vector<2x32xf32>
    %177 = arith.mulf %161, %169 : vector<2x32xf32>
    %178 = arith.addf %176, %177 : vector<2x32xf32>
    %179 = math.tanh %178 : vector<2x32xf32>
    %180 = arith.mulf %175, %179 : vector<2x32xf32>
    %181 = arith.index_cast %c3_i32 : i32 to index
    %c0_61 = arith.constant 0 : index
    %c0_62 = arith.constant 0 : index
    %182 = vector.load %arg12[%181, %c0_61, %c0_62] : memref<8x2x32xf32, #tpu.memory_space<vmem>>, vector<1x2x32xf32>
    %183 = vector.shape_cast %182 : vector<1x2x32xf32> to vector<2x32xf32>
    %184 = vector.shape_cast %180 : vector<2x32xf32> to vector<1x2x32xf32>
    tpu.vector_store %arg12[%181, %c0_61, %c0_62], %184 {strides = array<i32>} : memref<8x2x32xf32, #tpu.memory_space<vmem>>, vector<1x2x32xf32>,
    %c4_i32 = arith.constant 4 : i32
    %185 = arith.index_cast %c4_i32 : i32 to index
    %c0_63 = arith.constant 0 : index
    %c0_64 = arith.constant 0 : index
    %186 = vector.load %arg11[%185, %c0_63, %c0_64] : memref<8x2x128xf32, #tpu.memory_space<vmem>>, vector<1x2x128xf32>
    %187 = vector.shape_cast %186 : vector<1x2x128xf32> to vector<2x128xf32>
    %188 = arith.truncf %180 : vector<2x32xf32> to vector<2x32xbf16>
    %cst_65 = arith.constant dense<0.000000e+00> : vector<2x128xf32>
    %189 = tpu.matmul %188, %42, %cst_65 {dimension_numbers = #tpu.dot_dimension_numbers<[1], [0], [0], [1], [0, 0, 1, 1], [], []>} : vector<2x32xbf16>, vector<32x128xbf16>, vector<2x128xf32> -> vector<2x128xf32>
    %190 = arith.addf %187, %189 : vector<2x128xf32>
    %191 = vector.extract_strided_slice %190 {offsets = [0, 0], sizes = [2, 32], strides = [1, 1]} : vector<2x128xf32> to vector<2x32xf32>
    %192 = arith.negf %191 : vector<2x32xf32>
    %193 = math.exp %192 : vector<2x32xf32>
    %cst_66 = arith.constant 1.000000e+00 : f32
    %194 = vector.broadcast %cst_66 : f32 to vector<2x32xf32>
    %195 = arith.addf %194, %193 : vector<2x32xf32>
    %196 = arith.divf %194, %195 : vector<2x32xf32>
    %197 = vector.extract_strided_slice %190 {offsets = [0, 32], sizes = [2, 32], strides = [1, 1]} : vector<2x128xf32> to vector<2x32xf32>
    %198 = arith.negf %197 : vector<2x32xf32>
    %199 = math.exp %198 : vector<2x32xf32>
    %cst_67 = arith.constant 1.000000e+00 : f32
    %200 = vector.broadcast %cst_67 : f32 to vector<2x32xf32>
    %201 = arith.addf %200, %199 : vector<2x32xf32>
    %202 = arith.divf %200, %201 : vector<2x32xf32>
    %203 = vector.extract_strided_slice %190 {offsets = [0, 64], sizes = [2, 32], strides = [1, 1]} : vector<2x128xf32> to vector<2x32xf32>
    %204 = math.tanh %203 : vector<2x32xf32>
    %205 = vector.extract_strided_slice %190 {offsets = [0, 96], sizes = [2, 32], strides = [1, 1]} : vector<2x128xf32> to vector<2x32xf32>
    %206 = arith.negf %205 : vector<2x32xf32>
    %207 = math.exp %206 : vector<2x32xf32>
    %cst_68 = arith.constant 1.000000e+00 : f32
    %208 = vector.broadcast %cst_68 : f32 to vector<2x32xf32>
    %209 = arith.addf %208, %207 : vector<2x32xf32>
    %210 = arith.divf %208, %209 : vector<2x32xf32>
    %211 = arith.mulf %202, %178 : vector<2x32xf32>
    %212 = arith.mulf %196, %204 : vector<2x32xf32>
    %213 = arith.addf %211, %212 : vector<2x32xf32>
    %214 = math.tanh %213 : vector<2x32xf32>
    %215 = arith.mulf %210, %214 : vector<2x32xf32>
    %216 = arith.index_cast %c4_i32 : i32 to index
    %c0_69 = arith.constant 0 : index
    %c0_70 = arith.constant 0 : index
    %217 = vector.load %arg12[%216, %c0_69, %c0_70] : memref<8x2x32xf32, #tpu.memory_space<vmem>>, vector<1x2x32xf32>
    %218 = vector.shape_cast %217 : vector<1x2x32xf32> to vector<2x32xf32>
    %219 = vector.shape_cast %215 : vector<2x32xf32> to vector<1x2x32xf32>
    tpu.vector_store %arg12[%216, %c0_69, %c0_70], %219 {strides = array<i32>} : memref<8x2x32xf32, #tpu.memory_space<vmem>>, vector<1x2x32xf32>,
    %c5_i32 = arith.constant 5 : i32
    %220 = arith.index_cast %c5_i32 : i32 to index
    %c0_71 = arith.constant 0 : index
    %c0_72 = arith.constant 0 : index
    %221 = vector.load %arg11[%220, %c0_71, %c0_72] : memref<8x2x128xf32, #tpu.memory_space<vmem>>, vector<1x2x128xf32>
    %222 = vector.shape_cast %221 : vector<1x2x128xf32> to vector<2x128xf32>
    %223 = arith.truncf %215 : vector<2x32xf32> to vector<2x32xbf16>
    %cst_73 = arith.constant dense<0.000000e+00> : vector<2x128xf32>
    %224 = tpu.matmul %223, %42, %cst_73 {dimension_numbers = #tpu.dot_dimension_numbers<[1], [0], [0], [1], [0, 0, 1, 1], [], []>} : vector<2x32xbf16>, vector<32x128xbf16>, vector<2x128xf32> -> vector<2x128xf32>
    %225 = arith.addf %222, %224 : vector<2x128xf32>
    %226 = vector.extract_strided_slice %225 {offsets = [0, 0], sizes = [2, 32], strides = [1, 1]} : vector<2x128xf32> to vector<2x32xf32>
    %227 = arith.negf %226 : vector<2x32xf32>
    %228 = math.exp %227 : vector<2x32xf32>
    %cst_74 = arith.constant 1.000000e+00 : f32
    %229 = vector.broadcast %cst_74 : f32 to vector<2x32xf32>
    %230 = arith.addf %229, %228 : vector<2x32xf32>
    %231 = arith.divf %229, %230 : vector<2x32xf32>
    %232 = vector.extract_strided_slice %225 {offsets = [0, 32], sizes = [2, 32], strides = [1, 1]} : vector<2x128xf32> to vector<2x32xf32>
    %233 = arith.negf %232 : vector<2x32xf32>
    %234 = math.exp %233 : vector<2x32xf32>
    %cst_75 = arith.constant 1.000000e+00 : f32
    %235 = vector.broadcast %cst_75 : f32 to vector<2x32xf32>
    %236 = arith.addf %235, %234 : vector<2x32xf32>
    %237 = arith.divf %235, %236 : vector<2x32xf32>
    %238 = vector.extract_strided_slice %225 {offsets = [0, 64], sizes = [2, 32], strides = [1, 1]} : vector<2x128xf32> to vector<2x32xf32>
    %239 = math.tanh %238 : vector<2x32xf32>
    %240 = vector.extract_strided_slice %225 {offsets = [0, 96], sizes = [2, 32], strides = [1, 1]} : vector<2x128xf32> to vector<2x32xf32>
    %241 = arith.negf %240 : vector<2x32xf32>
    %242 = math.exp %241 : vector<2x32xf32>
    %cst_76 = arith.constant 1.000000e+00 : f32
    %243 = vector.broadcast %cst_76 : f32 to vector<2x32xf32>
    %244 = arith.addf %243, %242 : vector<2x32xf32>
    %245 = arith.divf %243, %244 : vector<2x32xf32>
    %246 = arith.mulf %237, %213 : vector<2x32xf32>
    %247 = arith.mulf %231, %239 : vector<2x32xf32>
    %248 = arith.addf %246, %247 : vector<2x32xf32>
    %249 = math.tanh %248 : vector<2x32xf32>
    %250 = arith.mulf %245, %249 : vector<2x32xf32>
    %251 = arith.index_cast %c5_i32 : i32 to index
    %c0_77 = arith.constant 0 : index
    %c0_78 = arith.constant 0 : index
    %252 = vector.load %arg12[%251, %c0_77, %c0_78] : memref<8x2x32xf32, #tpu.memory_space<vmem>>, vector<1x2x32xf32>
    %253 = vector.shape_cast %252 : vector<1x2x32xf32> to vector<2x32xf32>
    %254 = vector.shape_cast %250 : vector<2x32xf32> to vector<1x2x32xf32>
    tpu.vector_store %arg12[%251, %c0_77, %c0_78], %254 {strides = array<i32>} : memref<8x2x32xf32, #tpu.memory_space<vmem>>, vector<1x2x32xf32>,
    %c6_i32 = arith.constant 6 : i32
    %255 = arith.index_cast %c6_i32 : i32 to index
    %c0_79 = arith.constant 0 : index
    %c0_80 = arith.constant 0 : index
    %256 = vector.load %arg11[%255, %c0_79, %c0_80] : memref<8x2x128xf32, #tpu.memory_space<vmem>>, vector<1x2x128xf32>
    %257 = vector.shape_cast %256 : vector<1x2x128xf32> to vector<2x128xf32>
    %258 = arith.truncf %250 : vector<2x32xf32> to vector<2x32xbf16>
    %cst_81 = arith.constant dense<0.000000e+00> : vector<2x128xf32>
    %259 = tpu.matmul %258, %42, %cst_81 {dimension_numbers = #tpu.dot_dimension_numbers<[1], [0], [0], [1], [0, 0, 1, 1], [], []>} : vector<2x32xbf16>, vector<32x128xbf16>, vector<2x128xf32> -> vector<2x128xf32>
    %260 = arith.addf %257, %259 : vector<2x128xf32>
    %261 = vector.extract_strided_slice %260 {offsets = [0, 0], sizes = [2, 32], strides = [1, 1]} : vector<2x128xf32> to vector<2x32xf32>
    %262 = arith.negf %261 : vector<2x32xf32>
    %263 = math.exp %262 : vector<2x32xf32>
    %cst_82 = arith.constant 1.000000e+00 : f32
    %264 = vector.broadcast %cst_82 : f32 to vector<2x32xf32>
    %265 = arith.addf %264, %263 : vector<2x32xf32>
    %266 = arith.divf %264, %265 : vector<2x32xf32>
    %267 = vector.extract_strided_slice %260 {offsets = [0, 32], sizes = [2, 32], strides = [1, 1]} : vector<2x128xf32> to vector<2x32xf32>
    %268 = arith.negf %267 : vector<2x32xf32>
    %269 = math.exp %268 : vector<2x32xf32>
    %cst_83 = arith.constant 1.000000e+00 : f32
    %270 = vector.broadcast %cst_83 : f32 to vector<2x32xf32>
    %271 = arith.addf %270, %269 : vector<2x32xf32>
    %272 = arith.divf %270, %271 : vector<2x32xf32>
    %273 = vector.extract_strided_slice %260 {offsets = [0, 64], sizes = [2, 32], strides = [1, 1]} : vector<2x128xf32> to vector<2x32xf32>
    %274 = math.tanh %273 : vector<2x32xf32>
    %275 = vector.extract_strided_slice %260 {offsets = [0, 96], sizes = [2, 32], strides = [1, 1]} : vector<2x128xf32> to vector<2x32xf32>
    %276 = arith.negf %275 : vector<2x32xf32>
    %277 = math.exp %276 : vector<2x32xf32>
    %cst_84 = arith.constant 1.000000e+00 : f32
    %278 = vector.broadcast %cst_84 : f32 to vector<2x32xf32>
    %279 = arith.addf %278, %277 : vector<2x32xf32>
    %280 = arith.divf %278, %279 : vector<2x32xf32>
    %281 = arith.mulf %272, %248 : vector<2x32xf32>
    %282 = arith.mulf %266, %274 : vector<2x32xf32>
    %283 = arith.addf %281, %282 : vector<2x32xf32>
    %284 = math.tanh %283 : vector<2x32xf32>
    %285 = arith.mulf %280, %284 : vector<2x32xf32>
    %286 = arith.index_cast %c6_i32 : i32 to index
    %c0_85 = arith.constant 0 : index
    %c0_86 = arith.constant 0 : index
    %287 = vector.load %arg12[%286, %c0_85, %c0_86] : memref<8x2x32xf32, #tpu.memory_space<vmem>>, vector<1x2x32xf32>
    %288 = vector.shape_cast %287 : vector<1x2x32xf32> to vector<2x32xf32>
    %289 = vector.shape_cast %285 : vector<2x32xf32> to vector<1x2x32xf32>
    tpu.vector_store %arg12[%286, %c0_85, %c0_86], %289 {strides = array<i32>} : memref<8x2x32xf32, #tpu.memory_space<vmem>>, vector<1x2x32xf32>,
    %c7_i32 = arith.constant 7 : i32
    %290 = arith.index_cast %c7_i32 : i32 to index
    %c0_87 = arith.constant 0 : index
    %c0_88 = arith.constant 0 : index
    %291 = vector.load %arg11[%290, %c0_87, %c0_88] : memref<8x2x128xf32, #tpu.memory_space<vmem>>, vector<1x2x128xf32>
    %292 = vector.shape_cast %291 : vector<1x2x128xf32> to vector<2x128xf32>
    %293 = arith.truncf %285 : vector<2x32xf32> to vector<2x32xbf16>
    %cst_89 = arith.constant dense<0.000000e+00> : vector<2x128xf32>
    %294 = tpu.matmul %293, %42, %cst_89 {dimension_numbers = #tpu.dot_dimension_numbers<[1], [0], [0], [1], [0, 0, 1, 1], [], []>} : vector<2x32xbf16>, vector<32x128xbf16>, vector<2x128xf32> -> vector<2x128xf32>
    %295 = arith.addf %292, %294 : vector<2x128xf32>
    %296 = vector.extract_strided_slice %295 {offsets = [0, 0], sizes = [2, 32], strides = [1, 1]} : vector<2x128xf32> to vector<2x32xf32>
    %297 = arith.negf %296 : vector<2x32xf32>
    %298 = math.exp %297 : vector<2x32xf32>
    %cst_90 = arith.constant 1.000000e+00 : f32
    %299 = vector.broadcast %cst_90 : f32 to vector<2x32xf32>
    %300 = arith.addf %299, %298 : vector<2x32xf32>
    %301 = arith.divf %299, %300 : vector<2x32xf32>
    %302 = vector.extract_strided_slice %295 {offsets = [0, 32], sizes = [2, 32], strides = [1, 1]} : vector<2x128xf32> to vector<2x32xf32>
    %303 = arith.negf %302 : vector<2x32xf32>
    %304 = math.exp %303 : vector<2x32xf32>
    %cst_91 = arith.constant 1.000000e+00 : f32
    %305 = vector.broadcast %cst_91 : f32 to vector<2x32xf32>
    %306 = arith.addf %305, %304 : vector<2x32xf32>
    %307 = arith.divf %305, %306 : vector<2x32xf32>
    %308 = vector.extract_strided_slice %295 {offsets = [0, 64], sizes = [2, 32], strides = [1, 1]} : vector<2x128xf32> to vector<2x32xf32>
    %309 = math.tanh %308 : vector<2x32xf32>
    %310 = vector.extract_strided_slice %295 {offsets = [0, 96], sizes = [2, 32], strides = [1, 1]} : vector<2x128xf32> to vector<2x32xf32>
    %311 = arith.negf %310 : vector<2x32xf32>
    %312 = math.exp %311 : vector<2x32xf32>
    %cst_92 = arith.constant 1.000000e+00 : f32
    %313 = vector.broadcast %cst_92 : f32 to vector<2x32xf32>
    %314 = arith.addf %313, %312 : vector<2x32xf32>
    %315 = arith.divf %313, %314 : vector<2x32xf32>
    %316 = arith.mulf %307, %283 : vector<2x32xf32>
    %317 = arith.mulf %301, %309 : vector<2x32xf32>
    %318 = arith.addf %316, %317 : vector<2x32xf32>
    %319 = math.tanh %318 : vector<2x32xf32>
    %320 = arith.mulf %315, %319 : vector<2x32xf32>
    %321 = arith.index_cast %c7_i32 : i32 to index
    %c0_93 = arith.constant 0 : index
    %c0_94 = arith.constant 0 : index
    %322 = vector.load %arg12[%321, %c0_93, %c0_94] : memref<8x2x32xf32, #tpu.memory_space<vmem>>, vector<1x2x32xf32>
    %323 = vector.shape_cast %322 : vector<1x2x32xf32> to vector<2x32xf32>
    %324 = vector.shape_cast %320 : vector<2x32xf32> to vector<1x2x32xf32>
    tpu.vector_store %arg12[%321, %c0_93, %c0_94], %324 {strides = array<i32>} : memref<8x2x32xf32, #tpu.memory_space<vmem>>, vector<1x2x32xf32>,
    %c8_i32 = arith.constant 8 : i32
    %c0_95 = arith.constant 0 : index
    %c0_96 = arith.constant 0 : index
    %325 = vector.load %arg9[%c0_95, %c0_96] : memref<2x32xf32, #tpu.memory_space<vmem>>, vector<2x32xf32>
    tpu.vector_store %arg9[%c0_95, %c0_96], %320 {strides = array<i32>} : memref<2x32xf32, #tpu.memory_space<vmem>>, vector<2x32xf32>,
    %c0_97 = arith.constant 0 : index
    %c0_98 = arith.constant 0 : index
    %326 = vector.load %arg10[%c0_97, %c0_98] : memref<2x32xf32, #tpu.memory_space<vmem>>, vector<2x32xf32>
    tpu.vector_store %arg10[%c0_97, %c0_98], %318 {strides = array<i32>} : memref<2x32xf32, #tpu.memory_space<vmem>>, vector<2x32xf32>,
    %c0_99 = arith.constant 0 : index
    %c0_100 = arith.constant 0 : index
    %c0_101 = arith.constant 0 : index
    %327 = vector.load %arg12[%c0_99, %c0_100, %c0_101] : memref<8x2x32xf32, #tpu.memory_space<vmem>>, vector<1x2x32xf32>
    %328 = vector.shape_cast %327 : vector<1x2x32xf32> to vector<2x32xf32>
    %c1_102 = arith.constant 1 : index
    %c0_103 = arith.constant 0 : index
    %c0_104 = arith.constant 0 : index
    %329 = vector.load %arg12[%c1_102, %c0_103, %c0_104] : memref<8x2x32xf32, #tpu.memory_space<vmem>>, vector<1x2x32xf32>
    %330 = vector.shape_cast %329 : vector<1x2x32xf32> to vector<2x32xf32>
    %c2_105 = arith.constant 2 : index
    %c0_106 = arith.constant 0 : index
    %c0_107 = arith.constant 0 : index
    %331 = vector.load %arg12[%c2_105, %c0_106, %c0_107] : memref<8x2x32xf32, #tpu.memory_space<vmem>>, vector<1x2x32xf32>
    %332 = vector.shape_cast %331 : vector<1x2x32xf32> to vector<2x32xf32>
    %c3_108 = arith.constant 3 : index
    %c0_109 = arith.constant 0 : index
    %c0_110 = arith.constant 0 : index
    %333 = vector.load %arg12[%c3_108, %c0_109, %c0_110] : memref<8x2x32xf32, #tpu.memory_space<vmem>>, vector<1x2x32xf32>
    %334 = vector.shape_cast %333 : vector<1x2x32xf32> to vector<2x32xf32>
    %c4_111 = arith.constant 4 : index
    %c0_112 = arith.constant 0 : index
    %c0_113 = arith.constant 0 : index
    %335 = vector.load %arg12[%c4_111, %c0_112, %c0_113] : memref<8x2x32xf32, #tpu.memory_space<vmem>>, vector<1x2x32xf32>
    %336 = vector.shape_cast %335 : vector<1x2x32xf32> to vector<2x32xf32>
    %c5_114 = arith.constant 5 : index
    %c0_115 = arith.constant 0 : index
    %c0_116 = arith.constant 0 : index
    %337 = vector.load %arg12[%c5_114, %c0_115, %c0_116] : memref<8x2x32xf32, #tpu.memory_space<vmem>>, vector<1x2x32xf32>
    %338 = vector.shape_cast %337 : vector<1x2x32xf32> to vector<2x32xf32>
    %c6_117 = arith.constant 6 : index
    %c0_118 = arith.constant 0 : index
    %c0_119 = arith.constant 0 : index
    %339 = vector.load %arg12[%c6_117, %c0_118, %c0_119] : memref<8x2x32xf32, #tpu.memory_space<vmem>>, vector<1x2x32xf32>
    %340 = vector.shape_cast %339 : vector<1x2x32xf32> to vector<2x32xf32>
    %c7_120 = arith.constant 7 : index
    %c0_121 = arith.constant 0 : index
    %c0_122 = arith.constant 0 : index
    %341 = vector.load %arg12[%c7_120, %c0_121, %c0_122] : memref<8x2x32xf32, #tpu.memory_space<vmem>>, vector<1x2x32xf32>
    %342 = vector.shape_cast %341 : vector<1x2x32xf32> to vector<2x32xf32>
    %343 = tpu.concatenate %328, %330, %332, %334, %336, %338, %340, %342 in 0 : vector<2x32xf32>, vector<2x32xf32>, vector<2x32xf32>, vector<2x32xf32>, vector<2x32xf32>, vector<2x32xf32>, vector<2x32xf32>, vector<2x32xf32> -> vector<16x32xf32>
    %344 = arith.truncf %343 : vector<16x32xf32> to vector<16x32xbf16>
    %c0_123 = arith.constant 0 : index
    %c0_124 = arith.constant 0 : index
    %345 = vector.load %arg6[%c0_123, %c0_124] : memref<32x4xbf16, #tpu.memory_space<vmem>>, vector<32x4xbf16>
    %cst_125 = arith.constant dense<0.000000e+00> : vector<16x4xf32>
    %346 = tpu.matmul %344, %345, %cst_125 {dimension_numbers = #tpu.dot_dimension_numbers<[1], [0], [0], [1], [0, 0, 1, 1], [], []>} : vector<16x32xbf16>, vector<32x4xbf16>, vector<16x4xf32> -> vector<16x4xf32>
    %c0_126 = arith.constant 0 : index
    %c0_127 = arith.constant 0 : index
    %347 = vector.load %arg7[%c0_126, %c0_127] : memref<1x4xf32, #tpu.memory_space<vmem>>, vector<1x4xf32>
    %348 = vector.broadcast %347 : vector<1x4xf32> to vector<16x4xf32>
    %349 = arith.addf %346, %348 : vector<16x4xf32>
    %c0_128 = arith.constant 0 : index
    %c0_129 = arith.constant 0 : index
    %c0_130 = arith.constant 0 : index
    %350 = vector.load %arg8[%c0_128, %c0_129, %c0_130] : memref<1x16x4xf32, #tpu.memory_space<vmem>>, vector<1x16x4xf32>
    %351 = vector.shape_cast %350 : vector<1x16x4xf32> to vector<16x4xf32>
    %352 = vector.shape_cast %349 : vector<16x4xf32> to vector<1x16x4xf32>
    tpu.vector_store %arg8[%c0_128, %c0_129, %c0_130], %352 {strides = array<i32>} : memref<1x16x4xf32, #tpu.memory_space<vmem>>, vector<1x16x4xf32>,
    return
  }
  func.func @transform_0(%arg0: i32, %arg1: i32) -> (i32, i32, i32) {
    %c0_i32 = arith.constant 0 : i32
    %c0_i32_0 = arith.constant 0 : i32
    return %arg0, %arg1, %c0_i32 : i32, i32, i32
  }
  func.func @transform_1(%arg0: i32, %arg1: i32) -> (i32, i32) {
    %c0_i32 = arith.constant 0 : i32
    %c0_i32_0 = arith.constant 0 : i32
    %c0_i32_1 = arith.constant 0 : i32
    return %c0_i32, %c0_i32_0 : i32, i32
  }
  func.func @transform_2(%arg0: i32, %arg1: i32) -> (i32, i32) {
    %c0_i32 = arith.constant 0 : i32
    %c0_i32_0 = arith.constant 0 : i32
    %c0_i32_1 = arith.constant 0 : i32
    return %c0_i32, %c0_i32_0 : i32, i32
  }
  func.func @transform_3(%arg0: i32, %arg1: i32) -> (i32, i32) {
    %c0_i32 = arith.constant 0 : i32
    %c0_i32_0 = arith.constant 0 : i32
    %c0_i32_1 = arith.constant 0 : i32
    return %c0_i32, %c0_i32_0 : i32, i32
  }
  func.func @transform_4(%arg0: i32, %arg1: i32) -> (i32, i32) {
    %c0_i32 = arith.constant 0 : i32
    %c0_i32_0 = arith.constant 0 : i32
    %c0_i32_1 = arith.constant 0 : i32
    return %c0_i32, %c0_i32_0 : i32, i32
  }
  func.func @transform_5(%arg0: i32, %arg1: i32) -> (i32, i32) {
    %c0_i32 = arith.constant 0 : i32
    %c0_i32_0 = arith.constant 0 : i32
    %c0_i32_1 = arith.constant 0 : i32
    return %c0_i32, %c0_i32_0 : i32, i32
  }
  func.func @transform_6(%arg0: i32, %arg1: i32) -> (i32, i32, i32) {
    %c0_i32 = arith.constant 0 : i32
    %c0_i32_0 = arith.constant 0 : i32
    return %arg0, %arg1, %c0_i32 : i32, i32, i32
  }
}

</mosaic_0001>

<llo_original>
// kernel: lstm_model_forward.2
$region0: #{lstm_model_forward.2}
  #allocation0 [shape = 'u32[]', space=smem, size = 0x4, offset = 0x4, fixed_abs, tag = 'smem constant byte address 0x4 - core index']
  #allocation1 [shape = 'u32[144,128]{1,0:T(1,128)}', space=vmem, size = 0x12000, scoped, tag = 'internal scratch']
  #allocation2 [shape = 'f32[2,32]{1,0:T(2,128)}', space=vmem, size = 0x400, scoped, tag = 'scratch operand']
  #allocation3 [shape = 'f32[2,32]{1,0:T(2,128)}', space=vmem, size = 0x400, scoped, tag = 'scratch operand']
  #allocation4 [shape = 'f32[8,2,128]{2,1,0:T(2,128)}', space=vmem, size = 0x2000, scoped, tag = 'scratch operand']
  #allocation5 [shape = 'f32[8,2,32]{2,1,0:T(2,128)}', space=vmem, size = 0x2000, scoped, tag = 'scratch operand']
  %s0 = inlined_call_operand.vmem [shape: f32[1,16,8], index: 0, kind: input, shape index: {}]
  %s1 = inlined_call_operand.vmem [shape: bf16[8,128], index: 1, kind: input, shape index: {}]
  %s2 = inlined_call_operand.vmem [shape: bf16[32,128], index: 2, kind: input, shape index: {}]
  %s3 = inlined_call_operand.vmem [shape: f32[1,128], index: 3, kind: input, shape index: {}]
  %s4 = inlined_call_operand.vmem [shape: bf16[1,16,32], index: 4, kind: output, shape index: {}]
  %s5 = sld [smem:[#allocation0]]
  $region30: #{lstm_model_forward.2} parent=0
    _
  %s7 = ssub.s32 1, %s5
  %s8 = scalar_select 0, %s7, %s5
  // Predicated region
  $region2: #{lstm_model_forward.2} parent=0 // pred_check
    _
  $region3: #{lstm_model_forward.2} parent=0 // pred_check_branch
    %10 = sbr.rel (0) target = $region5
  $region4: #{lstm_model_forward.2} parent=0 // pred_region
    _
  $region5: #{lstm_model_forward.2} parent=0 // pred_fallthru
    _
  // Predicated region
  $region6: #{lstm_model_forward.2} parent=0 // pred_check
    _
  $region7: #{lstm_model_forward.2} parent=0 // pred_check_branch
    %12 = sbr.rel (0) target = $region9
  $region8: #{lstm_model_forward.2} parent=0 // pred_region
    _
  $region9: #{lstm_model_forward.2} parent=0 // pred_fallthru
    _
  // Predicated region
  $region10: #{lstm_model_forward.2} parent=0 // pred_check
    _
  $region11: #{lstm_model_forward.2} parent=0 // pred_check_branch
    %14 = sbr.rel (0) target = $region13
  $region12: #{lstm_model_forward.2} parent=0 // pred_region
    _
  $region13: #{lstm_model_forward.2} parent=0 // pred_fallthru
    _
  // Predicated region
  $region14: #{lstm_model_forward.2} parent=0 // pred_check
    _
  $region15: #{lstm_model_forward.2} parent=0 // pred_check_branch
    %16 = sbr.rel (0) target = $region17
  $region16: #{lstm_model_forward.2} parent=0 // pred_region
    _
  $region17: #{lstm_model_forward.2} parent=0 // pred_fallthru
    _
  %p18 = scmp.eq.s32.totalorder 0, 0
  // Predicated region
  $region18: #{lstm_model_forward.2} parent=0 // pred_check
    %p19 = pneg %p18
  $region19: #{lstm_model_forward.2} parent=0 // pred_check_branch
    %21 = sbr.rel (%p19) target = $region21
  $region20: #{lstm_model_forward.2} parent=0 // pred_region
    %vm22 = vcmask 254976
    %23 = vst.msk [vmem:[#allocation2] sm:$0x3] %vm22, 0.0
    %24 = vst.msk [vmem:[#allocation3] sm:$0x3] %vm22, 0.0
  $region21: #{lstm_model_forward.2} parent=0 // pred_fallthru
    _
  %v25 = vld [vmem:[%s0] sm:$0xff]
  %v26 = vld [vmem:[%s0 + $0x8] sm:$0xff]
  %v27 = vpack.c.bf16 %v26, %v25
  %v28 = vld [vmem:[%s1] sm:$0xf]
  %v29 = vld [vmem:[%s3] sm:$0x1]
  %v31 = vlaneseq
  %v32 = vshrl.u32 %v31, 7
  %v33 = vsub.s32 0, %v32
  %v34 = vrot.slane %v29, %v33
  %vm36 = vcmask 64512
  %v38 = vsel %vm36, %v27, 0
  %vm40 = vcmask 1043456
  %v42 = vsel %vm40, %v28, 0
  %44 = vmatprep.subr.bf16.mxu0 0
  %45 = vmatpush1.bf16.msra.mxu0 %v42
  %46 = vmatprep.subr.bf16.mxu0 0
  %47 = vmatpush1.bf16.msra.mxu0 0
  %48 = vmatprep.subr.bf16.mxu0 0
  %49 = vmatpush1.bf16.msra.mxu0 0
  %50 = vmatprep.subr.bf16.mxu0 0
  %51 = vmatpush1.bf16.msra.mxu0 0
  %52 = vmatprep.subr.bf16.mxu0 0
  %53 = vmatpush1.bf16.msra.mxu0 0
  %54 = vmatprep.subr.bf16.mxu0 0
  %55 = vmatpush1.bf16.msra.mxu0 0
  %56 = vmatprep.subr.bf16.mxu0 0
  %57 = vmatpush1.bf16.msra.mxu0 0
  %58 = vmatprep.subr.bf16.mxu0 0
  %59 = vmatpush1.bf16.msra.mxu0 0
  %60 = vmatprep.subr.bf16.mxu0 0
  %61 = vmatpush1.bf16.msra.mxu0 0
  %62 = vmatprep.subr.bf16.mxu0 0
  %63 = vmatpush1.bf16.msra.mxu0 0
  %64 = vmatprep.subr.bf16.mxu0 0
  %65 = vmatpush1.bf16.msra.mxu0 0
  %66 = vmatprep.subr.bf16.mxu0 0
  %67 = vmatpush1.bf16.msra.mxu0 0
  %68 = vmatprep.subr.bf16.mxu0 0
  %69 = vmatpush1.bf16.msra.mxu0 0
  %70 = vmatprep.subr.bf16.mxu0 0
  %71 = vmatpush1.bf16.msra.mxu0 0
  %72 = vmatprep.subr.bf16.mxu0 0
  %73 = vmatpush1.bf16.msra.mxu0 0
  %74 = vmatprep.subr.bf16.mxu0 0
  %75 = vmatpush1.bf16.msra.mxu0 0
  %76 = vmatprep.mubr.bf16.mxu0 0
  %77 = vmatmul.mubr.bf16.gmra.mrb[0].mxu0 %v38
  %v78 = vpop.f32.mrb[0].mxu0
  %v79 = vadd.f32 %v34, %v78
  %v80 = vpop.f32.mrb[0].mxu0
  %v81 = vpop.f32.mrb[0].mxu0
  %v82 = vadd.f32 %v34, %v81
  %v83 = vpop.f32.mrb[0].mxu0
  %84 = vdwg.mxu0
  %85 = vst [vmem:[#allocation4] sm:$0x3] %v79
  %s86 = scalar_lea.vmem [#allocation4], 2
  %87 = vst [vmem:[%s86 - $0x2] sm:$0xc] %v79
  %s88 = scalar_lea.vmem [#allocation4], 4
  %89 = vst [vmem:[%s88 - $0x4] sm:$0x30] %v79
  %s90 = scalar_lea.vmem [#allocation4], 6
  %91 = vst [vmem:[%s90 - $0x6] sm:$0xc0] %v79
  %s92 = scalar_lea.vmem [#allocation4], 8
  %93 = vst [vmem:[%s92] sm:$0x3] %v82
  %s94 = scalar_lea.vmem [#allocation4], 10
  %95 = vst [vmem:[%s94 - $0x2] sm:$0xc] %v82
  %s96 = scalar_lea.vmem [#allocation4], 12
  %97 = vst [vmem:[%s96 - $0x4] sm:$0x30] %v82
  %s98 = scalar_lea.vmem [#allocation4], 14
  %99 = vst [vmem:[%s98 - $0x6] sm:$0xc0] %v82
  %v100 = vld [vmem:[%s2] sm:$0xf]
  %v101 = vld [vmem:[%s2 + $0x4] sm:$0xf]
  %v102 = vld [vmem:[%s2 + $0x8] sm:$0xf]
  %v103 = vld [vmem:[%s2 + $0xc] sm:$0xf]
  %v104 = vld [vmem:[#allocation2] sm:$0x3]
  %v105 = vld [vmem:[#allocation3] sm:$0x3]
  %v106 = vld [vmem:[#allocation4] sm:$0x3]
  %v107 = vpack.c.bf16 %v104, %v104
  %v112 = vunpack.c.l.b16 %v100
  %v113 = vunpack.c.l.b16 %v101
  %v114 = vunpack.c.l.b16 %v102
  %v115 = vunpack.c.l.b16 %v103
  %v116 = vpack.c.b16 %v113, %v112
  %v117 = vpack.c.b16 %v115, %v114
  %vm120 = vcmask 261120
  %v122 = vsel %vm120, %v107, 0
  %124 = vmatprep.subr.bf16.mxu0 0
  %125 = vmatpush1.bf16.msra.mxu0 %v116
  %126 = vmatprep.subr.bf16.mxu0 0
  %127 = vmatpush1.bf16.msra.mxu0 %v117
  %128 = vmatprep.subr.bf16.mxu0 0
  %129 = vmatpush1.bf16.msra.mxu0 0
  %130 = vmatprep.subr.bf16.mxu0 0
  %131 = vmatpush1.bf16.msra.mxu0 0
  %132 = vmatprep.subr.bf16.mxu0 0
  %133 = vmatpush1.bf16.msra.mxu0 0
  %134 = vmatprep.subr.bf16.mxu0 0
  %135 = vmatpush1.bf16.msra.mxu0 0
  %136 = vmatprep.subr.bf16.mxu0 0
  %137 = vmatpush1.bf16.msra.mxu0 0
  %138 = vmatprep.subr.bf16.mxu0 0
  %139 = vmatpush1.bf16.msra.mxu0 0
  %140 = vmatprep.subr.bf16.mxu0 0
  %141 = vmatpush1.bf16.msra.mxu0 0
  %142 = vmatprep.subr.bf16.mxu0 0
  %143 = vmatpush1.bf16.msra.mxu0 0
  %144 = vmatprep.subr.bf16.mxu0 0
  %145 = vmatpush1.bf16.msra.mxu0 0
  %146 = vmatprep.subr.bf16.mxu0 0
  %147 = vmatpush1.bf16.msra.mxu0 0
  %148 = vmatprep.subr.bf16.mxu0 0
  %149 = vmatpush1.bf16.msra.mxu0 0
  %150 = vmatprep.subr.bf16.mxu0 0
  %151 = vmatpush1.bf16.msra.mxu0 0
  %152 = vmatprep.subr.bf16.mxu0 0
  %153 = vmatpush1.bf16.msra.mxu0 0
  %154 = vmatprep.subr.bf16.mxu0 0
  %155 = vmatpush1.bf16.msra.mxu0 0
  %156 = vmatprep.mubr.bf16.mxu0 0
  %157 = vmatmul.mubr.bf16.gmra.mrb[0].mxu0 %v122
  %v158 = vpop.f32.mrb[0].mxu0
  %v159 = vadd.f32 0.0, %v158
  %v160 = vpop.f32.mrb[0].mxu0
  %v161 = vpop.f32.mrb[0].mxu0
  %v162 = vpop.f32.mrb[0].mxu0
  %163 = vdwg.mxu0
  %v164 = vadd.f32 %v106, %v159
  %v165 = vxor.u32 %v164, 2147483648
  %v166 = vmul.f32 %v165, 1.442695
  %v167 = vpow.pop %v166
  %v168 = vadd.f32 %v167, 1.0
  %v169 = vrcp.pop %v168
  %v170 = vmul.f32 1.0, %v169
  %v171 = vtanh.pop %v164
  %173 = vrot.lane.b32.xlu0 %v105, 32
  %v174 = vpop.permute.xlu0 %173
  %v176 = vmul.f32 %v170, %v174
  %178 = vrot.lane.b32.xlu0 %v171, 64
  %v179 = vpop.permute.xlu0 %178
  %v181 = vmul.f32 %v170, %v179
  %183 = vrot.lane.b32.xlu0 %v181, 32
  %v184 = vpop.permute.xlu0 %183
  %v186 = vadd.f32 %v176, %v184
  %v187 = vtanh.pop %v186
  %189 = vrot.lane.b32.xlu0 %v187, 64
  %v190 = vpop.permute.xlu0 %189
  %v192 = vmul.f32 %v170, %v190
  %194 = vrot.lane.b32.xlu0 %v192, 32
  %v195 = vpop.permute.xlu0 %194
  %vm197 = vcmask 254976
  %198 = vst.msk [vmem:[#allocation5] sm:$0x3] %vm197, %v195
  %v199 = vld [vmem:[%s86] sm:$0x3]
  %v200 = vpack.c.bf16 %v192, %v192
  %202 = vrot.lane.b32.xlu0 %v200, 32
  %v203 = vpop.permute.xlu0 %202
  %v205 = vsel %vm120, %v203, 0
  %207 = vmatprep.subr.bf16.mxu0 0
  %208 = vmatpush1.bf16.msra.mxu0 %v116
  %209 = vmatprep.subr.bf16.mxu0 0
  %210 = vmatpush1.bf16.msra.mxu0 %v117
  %211 = vmatprep.subr.bf16.mxu0 0
  %212 = vmatpush1.bf16.msra.mxu0 0
  %213 = vmatprep.subr.bf16.mxu0 0
  %214 = vmatpush1.bf16.msra.mxu0 0
  %215 = vmatprep.subr.bf16.mxu0 0
  %216 = vmatpush1.bf16.msra.mxu0 0
  %217 = vmatprep.subr.bf16.mxu0 0
  %218 = vmatpush1.bf16.msra.mxu0 0
  %219 = vmatprep.subr.bf16.mxu0 0
  %220 = vmatpush1.bf16.msra.mxu0 0
  %221 = vmatprep.subr.bf16.mxu0 0
  %222 = vmatpush1.bf16.msra.mxu0 0
  %223 = vmatprep.subr.bf16.mxu0 0
  %224 = vmatpush1.bf16.msra.mxu0 0
  %225 = vmatprep.subr.bf16.mxu0 0
  %226 = vmatpush1.bf16.msra.mxu0 0
  %227 = vmatprep.subr.bf16.mxu0 0
  %228 = vmatpush1.bf16.msra.mxu0 0
  %229 = vmatprep.subr.bf16.mxu0 0
  %230 = vmatpush1.bf16.msra.mxu0 0
  %231 = vmatprep.subr.bf16.mxu0 0
  %232 = vmatpush1.bf16.msra.mxu0 0
  %233 = vmatprep.subr.bf16.mxu0 0
  %234 = vmatpush1.bf16.msra.mxu0 0
  %235 = vmatprep.subr.bf16.mxu0 0
  %236 = vmatpush1.bf16.msra.mxu0 0
  %237 = vmatprep.subr.bf16.mxu0 0
  %238 = vmatpush1.bf16.msra.mxu0 0
  %239 = vmatprep.mubr.bf16.mxu0 0
  %240 = vmatmul.mubr.bf16.gmra.mrb[0].mxu0 %v205
  %v241 = vpop.f32.mrb[0].mxu0
  %v242 = vadd.f32 0.0, %v241
  %v243 = vpop.f32.mrb[0].mxu0
  %v244 = vpop.f32.mrb[0].mxu0
  %v245 = vpop.f32.mrb[0].mxu0
  %246 = vdwg.mxu0
  %v247 = vadd.f32 %v199, %v242
  %v248 = vxor.u32 %v247, 2147483648
  %v249 = vmul.f32 %v248, 1.442695
  %v250 = vpow.pop %v249
  %v251 = vadd.f32 %v250, 1.0
  %v252 = vrcp.pop %v251
  %v253 = vmul.f32 1.0, %v252
  %v254 = vtanh.pop %v247
  %v255 = vmul.f32 %v253, %v186
  %257 = vrot.lane.b32.xlu0 %v254, 64
  %v258 = vpop.permute.xlu0 %257
  %v260 = vmul.f32 %v253, %v258
  %262 = vrot.lane.b32.xlu0 %v260, 32
  %v263 = vpop.permute.xlu0 %262
  %v265 = vadd.f32 %v255, %v263
  %v266 = vtanh.pop %v265
  %268 = vrot.lane.b32.xlu0 %v266, 64
  %v269 = vpop.permute.xlu0 %268
  %v271 = vmul.f32 %v253, %v269
  %273 = vrot.lane.b32.xlu0 %v271, 32
  %v274 = vpop.permute.xlu0 %273
  %s276 = scalar_lea.vmem [#allocation5], 2
  %277 = vst.msk [vmem:[%s276] sm:$0x3] %vm197, %v274
  %v278 = vld [vmem:[%s88] sm:$0x3]
  %v279 = vpack.c.bf16 %v271, %v271
  %281 = vrot.lane.b32.xlu0 %v279, 32
  %v282 = vpop.permute.xlu0 %281
  %v284 = vsel %vm120, %v282, 0
  %286 = vmatprep.subr.bf16.mxu0 0
  %287 = vmatpush1.bf16.msra.mxu0 %v116
  %288 = vmatprep.subr.bf16.mxu0 0
  %289 = vmatpush1.bf16.msra.mxu0 %v117
  %290 = vmatprep.subr.bf16.mxu0 0
  %291 = vmatpush1.bf16.msra.mxu0 0
  %292 = vmatprep.subr.bf16.mxu0 0
  %293 = vmatpush1.bf16.msra.mxu0 0
  %294 = vmatprep.subr.bf16.mxu0 0
  %295 = vmatpush1.bf16.msra.mxu0 0
  %296 = vmatprep.subr.bf16.mxu0 0
  %297 = vmatpush1.bf16.msra.mxu0 0
  %298 = vmatprep.subr.bf16.mxu0 0
  %299 = vmatpush1.bf16.msra.mxu0 0
  %300 = vmatprep.subr.bf16.mxu0 0
  %301 = vmatpush1.bf16.msra.mxu0 0
  %302 = vmatprep.subr.bf16.mxu0 0
  %303 = vmatpush1.bf16.msra.mxu0 0
  %304 = vmatprep.subr.bf16.mxu0 0
  %305 = vmatpush1.bf16.msra.mxu0 0
  %306 = vmatprep.subr.bf16.mxu0 0
  %307 = vmatpush1.bf16.msra.mxu0 0
  %308 = vmatprep.subr.bf16.mxu0 0
  %309 = vmatpush1.bf16.msra.mxu0 0
  %310 = vmatprep.subr.bf16.mxu0 0
  %311 = vmatpush1.bf16.msra.mxu0 0
  %312 = vmatprep.subr.bf16.mxu0 0
  %313 = vmatpush1.bf16.msra.mxu0 0
  %314 = vmatprep.subr.bf16.mxu0 0
  %315 = vmatpush1.bf16.msra.mxu0 0
  %316 = vmatprep.subr.bf16.mxu0 0
  %317 = vmatpush1.bf16.msra.mxu0 0
  %318 = vmatprep.mubr.bf16.mxu0 0
  %319 = vmatmul.mubr.bf16.gmra.mrb[0].mxu0 %v284
  %v320 = vpop.f32.mrb[0].mxu0
  %v321 = vadd.f32 0.0, %v320
  %v322 = vpop.f32.mrb[0].mxu0
  %v323 = vpop.f32.mrb[0].mxu0
  %v324 = vpop.f32.mrb[0].mxu0
  %325 = vdwg.mxu0
  %v326 = vadd.f32 %v278, %v321
  %v327 = vxor.u32 %v326, 2147483648
  %v328 = vmul.f32 %v327, 1.442695
  %v329 = vpow.pop %v328
  %v330 = vadd.f32 %v329, 1.0
  %v331 = vrcp.pop %v330
  %v332 = vmul.f32 1.0, %v331
  %v333 = vtanh.pop %v326
  %v334 = vmul.f32 %v332, %v265
  %336 = vrot.lane.b32.xlu0 %v333, 64
  %v337 = vpop.permute.xlu0 %336
  %v339 = vmul.f32 %v332, %v337
  %341 = vrot.lane.b32.xlu0 %v339, 32
  %v342 = vpop.permute.xlu0 %341
  %v344 = vadd.f32 %v334, %v342
  %v345 = vtanh.pop %v344
  %347 = vrot.lane.b32.xlu0 %v345, 64
  %v348 = vpop.permute.xlu0 %347
  %v350 = vmul.f32 %v332, %v348
  %352 = vrot.lane.b32.xlu0 %v350, 32
  %v353 = vpop.permute.xlu0 %352
  %s355 = scalar_lea.vmem [#allocation5], 4
  %356 = vst.msk [vmem:[%s355] sm:$0x3] %vm197, %v353
  %v357 = vld [vmem:[%s90] sm:$0x3]
  %v358 = vpack.c.bf16 %v350, %v350
  %360 = vrot.lane.b32.xlu0 %v358, 32
  %v361 = vpop.permute.xlu0 %360
  %v363 = vsel %vm120, %v361, 0
  %365 = vmatprep.subr.bf16.mxu0 0
  %366 = vmatpush1.bf16.msra.mxu0 %v116
  %367 = vmatprep.subr.bf16.mxu0 0
  %368 = vmatpush1.bf16.msra.mxu0 %v117
  %369 = vmatprep.subr.bf16.mxu0 0
  %370 = vmatpush1.bf16.msra.mxu0 0
  %371 = vmatprep.subr.bf16.mxu0 0
  %372 = vmatpush1.bf16.msra.mxu0 0
  %373 = vmatprep.subr.bf16.mxu0 0
  %374 = vmatpush1.bf16.msra.mxu0 0
  %375 = vmatprep.subr.bf16.mxu0 0
  %376 = vmatpush1.bf16.msra.mxu0 0
  %377 = vmatprep.subr.bf16.mxu0 0
  %378 = vmatpush1.bf16.msra.mxu0 0
  %379 = vmatprep.subr.bf16.mxu0 0
  %380 = vmatpush1.bf16.msra.mxu0 0
  %381 = vmatprep.subr.bf16.mxu0 0
  %382 = vmatpush1.bf16.msra.mxu0 0
  %383 = vmatprep.subr.bf16.mxu0 0
  %384 = vmatpush1.bf16.msra.mxu0 0
  %385 = vmatprep.subr.bf16.mxu0 0
  %386 = vmatpush1.bf16.msra.mxu0 0
  %387 = vmatprep.subr.bf16.mxu0 0
  %388 = vmatpush1.bf16.msra.mxu0 0
  %389 = vmatprep.subr.bf16.mxu0 0
  %390 = vmatpush1.bf16.msra.mxu0 0
  %391 = vmatprep.subr.bf16.mxu0 0
  %392 = vmatpush1.bf16.msra.mxu0 0
  %393 = vmatprep.subr.bf16.mxu0 0
  %394 = vmatpush1.bf16.msra.mxu0 0
  %395 = vmatprep.subr.bf16.mxu0 0
  %396 = vmatpush1.bf16.msra.mxu0 0
  %397 = vmatprep.mubr.bf16.mxu0 0
  %398 = vmatmul.mubr.bf16.gmra.mrb[0].mxu0 %v363
  %v399 = vpop.f32.mrb[0].mxu0
  %v400 = vadd.f32 0.0, %v399
  %v401 = vpop.f32.mrb[0].mxu0
  %v402 = vpop.f32.mrb[0].mxu0
  %v403 = vpop.f32.mrb[0].mxu0
  %404 = vdwg.mxu0
  %v405 = vadd.f32 %v357, %v400
  %v406 = vxor.u32 %v405, 2147483648
  %v407 = vmul.f32 %v406, 1.442695
  %v408 = vpow.pop %v407
  %v409 = vadd.f32 %v408, 1.0
  %v410 = vrcp.pop %v409
  %v411 = vmul.f32 1.0, %v410
  %v412 = vtanh.pop %v405
  %v413 = vmul.f32 %v411, %v344
  %415 = vrot.lane.b32.xlu0 %v412, 64
  %v416 = vpop.permute.xlu0 %415
  %v418 = vmul.f32 %v411, %v416
  %420 = vrot.lane.b32.xlu0 %v418, 32
  %v421 = vpop.permute.xlu0 %420
  %v423 = vadd.f32 %v413, %v421
  %v424 = vtanh.pop %v423
  %426 = vrot.lane.b32.xlu0 %v424, 64
  %v427 = vpop.permute.xlu0 %426
  %v429 = vmul.f32 %v411, %v427
  %431 = vrot.lane.b32.xlu0 %v429, 32
  %v432 = vpop.permute.xlu0 %431
  %s434 = scalar_lea.vmem [#allocation5], 6
  %435 = vst.msk [vmem:[%s434] sm:$0x3] %vm197, %v432
  %v436 = vld [vmem:[%s92] sm:$0x3]
  %v437 = vpack.c.bf16 %v429, %v429
  %439 = vrot.lane.b32.xlu0 %v437, 32
  %v440 = vpop.permute.xlu0 %439
  %v442 = vsel %vm120, %v440, 0
  %444 = vmatprep.subr.bf16.mxu0 0
  %445 = vmatpush1.bf16.msra.mxu0 %v116
  %446 = vmatprep.subr.bf16.mxu0 0
  %447 = vmatpush1.bf16.msra.mxu0 %v117
  %448 = vmatprep.subr.bf16.mxu0 0
  %449 = vmatpush1.bf16.msra.mxu0 0
  %450 = vmatprep.subr.bf16.mxu0 0
  %451 = vmatpush1.bf16.msra.mxu0 0
  %452 = vmatprep.subr.bf16.mxu0 0
  %453 = vmatpush1.bf16.msra.mxu0 0
  %454 = vmatprep.subr.bf16.mxu0 0
  %455 = vmatpush1.bf16.msra.mxu0 0
  %456 = vmatprep.subr.bf16.mxu0 0
  %457 = vmatpush1.bf16.msra.mxu0 0
  %458 = vmatprep.subr.bf16.mxu0 0
  %459 = vmatpush1.bf16.msra.mxu0 0
  %460 = vmatprep.subr.bf16.mxu0 0
  %461 = vmatpush1.bf16.msra.mxu0 0
  %462 = vmatprep.subr.bf16.mxu0 0
  %463 = vmatpush1.bf16.msra.mxu0 0
  %464 = vmatprep.subr.bf16.mxu0 0
  %465 = vmatpush1.bf16.msra.mxu0 0
  %466 = vmatprep.subr.bf16.mxu0 0
  %467 = vmatpush1.bf16.msra.mxu0 0
  %468 = vmatprep.subr.bf16.mxu0 0
  %469 = vmatpush1.bf16.msra.mxu0 0
  %470 = vmatprep.subr.bf16.mxu0 0
  %471 = vmatpush1.bf16.msra.mxu0 0
  %472 = vmatprep.subr.bf16.mxu0 0
  %473 = vmatpush1.bf16.msra.mxu0 0
  %474 = vmatprep.subr.bf16.mxu0 0
  %475 = vmatpush1.bf16.msra.mxu0 0
  %476 = vmatprep.mubr.bf16.mxu0 0
  %477 = vmatmul.mubr.bf16.gmra.mrb[0].mxu0 %v442
  %v478 = vpop.f32.mrb[0].mxu0
  %v479 = vadd.f32 0.0, %v478
  %v480 = vpop.f32.mrb[0].mxu0
  %v481 = vpop.f32.mrb[0].mxu0
  %v482 = vpop.f32.mrb[0].mxu0
  %483 = vdwg.mxu0
  %v484 = vadd.f32 %v436, %v479
  %v485 = vxor.u32 %v484, 2147483648
  %v486 = vmul.f32 %v485, 1.442695
  %v487 = vpow.pop %v486
  %v488 = vadd.f32 %v487, 1.0
  %v489 = vrcp.pop %v488
  %v490 = vmul.f32 1.0, %v489
  %v491 = vtanh.pop %v484
  %v492 = vmul.f32 %v490, %v423
  %494 = vrot.lane.b32.xlu0 %v491, 64
  %v495 = vpop.permute.xlu0 %494
  %v497 = vmul.f32 %v490, %v495
  %499 = vrot.lane.b32.xlu0 %v497, 32
  %v500 = vpop.permute.xlu0 %499
  %v502 = vadd.f32 %v492, %v500
  %v503 = vtanh.pop %v502
  %505 = vrot.lane.b32.xlu0 %v503, 64
  %v506 = vpop.permute.xlu0 %505
  %v508 = vmul.f32 %v490, %v506
  %510 = vrot.lane.b32.xlu0 %v508, 32
  %v511 = vpop.permute.xlu0 %510
  %s513 = scalar_lea.vmem [#allocation5], 8
  %514 = vst.msk [vmem:[%s513] sm:$0x3] %vm197, %v511
  %v515 = vld [vmem:[%s94] sm:$0x3]
  %v516 = vpack.c.bf16 %v508, %v508
  %518 = vrot.lane.b32.xlu0 %v516, 32
  %v519 = vpop.permute.xlu0 %518
  %v521 = vsel %vm120, %v519, 0
  %523 = vmatprep.subr.bf16.mxu0 0
  %524 = vmatpush1.bf16.msra.mxu0 %v116
  %525 = vmatprep.subr.bf16.mxu0 0
  %526 = vmatpush1.bf16.msra.mxu0 %v117
  %527 = vmatprep.subr.bf16.mxu0 0
  %528 = vmatpush1.bf16.msra.mxu0 0
  %529 = vmatprep.subr.bf16.mxu0 0
  %530 = vmatpush1.bf16.msra.mxu0 0
  %531 = vmatprep.subr.bf16.mxu0 0
  %532 = vmatpush1.bf16.msra.mxu0 0
  %533 = vmatprep.subr.bf16.mxu0 0
  %534 = vmatpush1.bf16.msra.mxu0 0
  %535 = vmatprep.subr.bf16.mxu0 0
  %536 = vmatpush1.bf16.msra.mxu0 0
  %537 = vmatprep.subr.bf16.mxu0 0
  %538 = vmatpush1.bf16.msra.mxu0 0
  %539 = vmatprep.subr.bf16.mxu0 0
  %540 = vmatpush1.bf16.msra.mxu0 0
  %541 = vmatprep.subr.bf16.mxu0 0
  %542 = vmatpush1.bf16.msra.mxu0 0
  %543 = vmatprep.subr.bf16.mxu0 0
  %544 = vmatpush1.bf16.msra.mxu0 0
  %545 = vmatprep.subr.bf16.mxu0 0
  %546 = vmatpush1.bf16.msra.mxu0 0
  %547 = vmatprep.subr.bf16.mxu0 0
  %548 = vmatpush1.bf16.msra.mxu0 0
  %549 = vmatprep.subr.bf16.mxu0 0
  %550 = vmatpush1.bf16.msra.mxu0 0
  %551 = vmatprep.subr.bf16.mxu0 0
  %552 = vmatpush1.bf16.msra.mxu0 0
  %553 = vmatprep.subr.bf16.mxu0 0
  %554 = vmatpush1.bf16.msra.mxu0 0
  %555 = vmatprep.mubr.bf16.mxu0 0
  %556 = vmatmul.mubr.bf16.gmra.mrb[0].mxu0 %v521
  %v557 = vpop.f32.mrb[0].mxu0
  %v558 = vadd.f32 0.0, %v557
  %v559 = vpop.f32.mrb[0].mxu0
  %v560 = vpop.f32.mrb[0].mxu0
  %v561 = vpop.f32.mrb[0].mxu0
  %562 = vdwg.mxu0
  %v563 = vadd.f32 %v515, %v558
  %v564 = vxor.u32 %v563, 2147483648
  %v565 = vmul.f32 %v564, 1.442695
  %v566 = vpow.pop %v565
  %v567 = vadd.f32 %v566, 1.0
  %v568 = vrcp.pop %v567
  %v569 = vmul.f32 1.0, %v568
  %v570 = vtanh.pop %v563
  %v571 = vmul.f32 %v569, %v502
  %573 = vrot.lane.b32.xlu0 %v570, 64
  %v574 = vpop.permute.xlu0 %573
  %v576 = vmul.f32 %v569, %v574
  %578 = vrot.lane.b32.xlu0 %v576, 32
  %v579 = vpop.permute.xlu0 %578
  %v581 = vadd.f32 %v571, %v579
  %v582 = vtanh.pop %v581
  %584 = vrot.lane.b32.xlu0 %v582, 64
  %v585 = vpop.permute.xlu0 %584
  %v587 = vmul.f32 %v569, %v585
  %589 = vrot.lane.b32.xlu0 %v587, 32
  %v590 = vpop.permute.xlu0 %589
  %s592 = scalar_lea.vmem [#allocation5], 10
  %593 = vst.msk [vmem:[%s592] sm:$0x3] %vm197, %v590
  %v594 = vld [vmem:[%s96] sm:$0x3]
  %v595 = vpack.c.bf16 %v587, %v587
  %597 = vrot.lane.b32.xlu0 %v595, 32
  %v598 = vpop.permute.xlu0 %597
  %v600 = vsel %vm120, %v598, 0
  %602 = vmatprep.subr.bf16.mxu0 0
  %603 = vmatpush1.bf16.msra.mxu0 %v116
  %604 = vmatprep.subr.bf16.mxu0 0
  %605 = vmatpush1.bf16.msra.mxu0 %v117
  %606 = vmatprep.subr.bf16.mxu0 0
  %607 = vmatpush1.bf16.msra.mxu0 0
  %608 = vmatprep.subr.bf16.mxu0 0
  %609 = vmatpush1.bf16.msra.mxu0 0
  %610 = vmatprep.subr.bf16.mxu0 0
  %611 = vmatpush1.bf16.msra.mxu0 0
  %612 = vmatprep.subr.bf16.mxu0 0
  %613 = vmatpush1.bf16.msra.mxu0 0
  %614 = vmatprep.subr.bf16.mxu0 0
  %615 = vmatpush1.bf16.msra.mxu0 0
  %616 = vmatprep.subr.bf16.mxu0 0
  %617 = vmatpush1.bf16.msra.mxu0 0
  %618 = vmatprep.subr.bf16.mxu0 0
  %619 = vmatpush1.bf16.msra.mxu0 0
  %620 = vmatprep.subr.bf16.mxu0 0
  %621 = vmatpush1.bf16.msra.mxu0 0
  %622 = vmatprep.subr.bf16.mxu0 0
  %623 = vmatpush1.bf16.msra.mxu0 0
  %624 = vmatprep.subr.bf16.mxu0 0
  %625 = vmatpush1.bf16.msra.mxu0 0
  %626 = vmatprep.subr.bf16.mxu0 0
  %627 = vmatpush1.bf16.msra.mxu0 0
  %628 = vmatprep.subr.bf16.mxu0 0
  %629 = vmatpush1.bf16.msra.mxu0 0
  %630 = vmatprep.subr.bf16.mxu0 0
  %631 = vmatpush1.bf16.msra.mxu0 0
  %632 = vmatprep.subr.bf16.mxu0 0
  %633 = vmatpush1.bf16.msra.mxu0 0
  %634 = vmatprep.mubr.bf16.mxu0 0
  %635 = vmatmul.mubr.bf16.gmra.mrb[0].mxu0 %v600
  %v636 = vpop.f32.mrb[0].mxu0
  %v637 = vadd.f32 0.0, %v636
  %v638 = vpop.f32.mrb[0].mxu0
  %v639 = vpop.f32.mrb[0].mxu0
  %v640 = vpop.f32.mrb[0].mxu0
  %641 = vdwg.mxu0
  %v642 = vadd.f32 %v594, %v637
  %v643 = vxor.u32 %v642, 2147483648
  %v644 = vmul.f32 %v643, 1.442695
  %v645 = vpow.pop %v644
  %v646 = vadd.f32 %v645, 1.0
  %v647 = vrcp.pop %v646
  %v648 = vmul.f32 1.0, %v647
  %v649 = vtanh.pop %v642
  %v650 = vmul.f32 %v648, %v581
  %652 = vrot.lane.b32.xlu0 %v649, 64
  %v653 = vpop.permute.xlu0 %652
  %v655 = vmul.f32 %v648, %v653
  %657 = vrot.lane.b32.xlu0 %v655, 32
  %v658 = vpop.permute.xlu0 %657
  %v660 = vadd.f32 %v650, %v658
  %v661 = vtanh.pop %v660
  %663 = vrot.lane.b32.xlu0 %v661, 64
  %v664 = vpop.permute.xlu0 %663
  %v666 = vmul.f32 %v648, %v664
  %668 = vrot.lane.b32.xlu0 %v666, 32
  %v669 = vpop.permute.xlu0 %668
  %s671 = scalar_lea.vmem [#allocation5], 12
  %672 = vst.msk [vmem:[%s671] sm:$0x3] %vm197, %v669
  %v673 = vld [vmem:[%s98] sm:$0x3]
  %v674 = vpack.c.bf16 %v666, %v666
  %676 = vrot.lane.b32.xlu0 %v674, 32
  %v677 = vpop.permute.xlu0 %676
  %v679 = vsel %vm120, %v677, 0
  %681 = vmatprep.subr.bf16.mxu0 0
  %682 = vmatpush1.bf16.msra.mxu0 %v116
  %683 = vmatprep.subr.bf16.mxu0 0
  %684 = vmatpush1.bf16.msra.mxu0 %v117
  %685 = vmatprep.subr.bf16.mxu0 0
  %686 = vmatpush1.bf16.msra.mxu0 0
  %687 = vmatprep.subr.bf16.mxu0 0
  %688 = vmatpush1.bf16.msra.mxu0 0
  %689 = vmatprep.subr.bf16.mxu0 0
  %690 = vmatpush1.bf16.msra.mxu0 0
  %691 = vmatprep.subr.bf16.mxu0 0
  %692 = vmatpush1.bf16.msra.mxu0 0
  %693 = vmatprep.subr.bf16.mxu0 0
  %694 = vmatpush1.bf16.msra.mxu0 0
  %695 = vmatprep.subr.bf16.mxu0 0
  %696 = vmatpush1.bf16.msra.mxu0 0
  %697 = vmatprep.subr.bf16.mxu0 0
  %698 = vmatpush1.bf16.msra.mxu0 0
  %699 = vmatprep.subr.bf16.mxu0 0
  %700 = vmatpush1.bf16.msra.mxu0 0
  %701 = vmatprep.subr.bf16.mxu0 0
  %702 = vmatpush1.bf16.msra.mxu0 0
  %703 = vmatprep.subr.bf16.mxu0 0
  %704 = vmatpush1.bf16.msra.mxu0 0
  %705 = vmatprep.subr.bf16.mxu0 0
  %706 = vmatpush1.bf16.msra.mxu0 0
  %707 = vmatprep.subr.bf16.mxu0 0
  %708 = vmatpush1.bf16.msra.mxu0 0
  %709 = vmatprep.subr.bf16.mxu0 0
  %710 = vmatpush1.bf16.msra.mxu0 0
  %711 = vmatprep.subr.bf16.mxu0 0
  %712 = vmatpush1.bf16.msra.mxu0 0
  %713 = vmatprep.mubr.bf16.mxu0 0
  %714 = vmatmul.mubr.bf16.gmra.mrb[0].mxu0 %v679
  %v715 = vpop.f32.mrb[0].mxu0
  %v716 = vadd.f32 0.0, %v715
  %v717 = vpop.f32.mrb[0].mxu0
  %v718 = vpop.f32.mrb[0].mxu0
  %v719 = vpop.f32.mrb[0].mxu0
  %720 = vdwg.mxu0
  %v721 = vadd.f32 %v673, %v716
  %v722 = vxor.u32 %v721, 2147483648
  %v723 = vmul.f32 %v722, 1.442695
  %v724 = vpow.pop %v723
  %v725 = vadd.f32 %v724, 1.0
  %v726 = vrcp.pop %v725
  %v727 = vmul.f32 1.0, %v726
  %v728 = vtanh.pop %v721
  %v729 = vmul.f32 %v727, %v660
  %731 = vrot.lane.b32.xlu0 %v728, 64
  %v732 = vpop.permute.xlu0 %731
  %v734 = vmul.f32 %v727, %v732
  %736 = vrot.lane.b32.xlu0 %v734, 32
  %v737 = vpop.permute.xlu0 %736
  %v739 = vadd.f32 %v729, %v737
  %v740 = vtanh.pop %v739
  %742 = vrot.lane.b32.xlu0 %v740, 64
  %v743 = vpop.permute.xlu0 %742
  %v745 = vmul.f32 %v727, %v743
  %747 = vrot.lane.b32.xlu0 %v745, 32
  %v748 = vpop.permute.xlu0 %747
  %s750 = scalar_lea.vmem [#allocation5], 14
  %751 = vst.msk [vmem:[%s750] sm:$0x3] %vm197, %v748
  %752 = vst.msk [vmem:[#allocation2] sm:$0x3] %vm197, %v748
  %754 = vrot.lane.b32.xlu0 %v739, 96
  %v755 = vpop.permute.xlu0 %754
  %757 = vst.msk [vmem:[#allocation3] sm:$0x3] %vm197, %v755
  %v758 = vld [vmem:[#allocation5] sm:$0x3]
  %v759 = vld [vmem:[%s276] sm:$0x3]
  %v760 = vld [vmem:[%s355] sm:$0x3]
  %v761 = vld [vmem:[%s434] sm:$0x3]
  %v762 = vld [vmem:[%s513] sm:$0x3]
  %v763 = vld [vmem:[%s592] sm:$0x3]
  %v764 = vld [vmem:[%s671] sm:$0x3]
  %v765 = vld [vmem:[%s750] sm:$0x3]
  %v767 = vrot.slane %v759, 6
  %v770 = vrot.slane %v760, 4
  %v773 = vrot.slane %v761, 2
  %v776 = vrot.slane %v763, 6
  %v779 = vrot.slane %v764, 4
  %v782 = vrot.slane %v765, 2
  %vm784 = vcmask 1041408
  %v785 = vsel %vm784, %v758, %v767
  %v786 = vsel %vm40, %v785, %v770
  %vm787 = vcmask 1045504
  %v788 = vsel %vm787, %v786, %v773
  %v789 = vsel %vm784, %v762, %v776
  %v790 = vsel %vm40, %v789, %v779
  %v791 = vsel %vm787, %v790, %v782
  %v792 = vpack.c.bf16 %v791, %v788
  %v794 = vunpack.c.l.b16 %v792
  %v795 = vunpack.c.h.b16 %v792
  %v796 = vpack.c.b16 %v794, %v794
  %v797 = vpack.c.b16 %v795, %v795
  %vm800 = vcmask 257024
  %801 = vst.msk [vmem:[%s4] sm:$0xf] %vm800, %v796
  %802 = vst.msk [vmem:[%s4 + $0x4] sm:$0xf] %vm800, %v797
  // Predicated region
  $region22: #{lstm_model_forward.2} parent=0 // pred_check
    _
  $region23: #{lstm_model_forward.2} parent=0 // pred_check_branch
    %804 = sbr.rel (0) target = $region25
  $region24: #{lstm_model_forward.2} parent=0 // pred_region
    _
  $region25: #{lstm_model_forward.2} parent=0 // pred_fallthru
    _
  // Predicated region
  $region26: #{lstm_model_forward.2} parent=0 // pred_check
    _
  $region27: #{lstm_model_forward.2} parent=0 // pred_check_branch
    %806 = sbr.rel (0) target = $region29
  $region28: #{lstm_model_forward.2} parent=0 // pred_region
    _
  $region29: #{lstm_model_forward.2} parent=0 // pred_fallthru
    _

// kernel: lstm_model_forward.3
$region0: #{lstm_model_forward.3}
  #allocation0 [shape = 'u32[]', space=smem, size = 0x4, offset = 0x4, fixed_abs, tag = 'smem constant byte address 0x4 - core index']
  #allocation1 [shape = 'u32[144,128]{1,0:T(1,128)}', space=vmem, size = 0x12000, scoped, tag = 'internal scratch']
  #allocation2 [shape = 'f32[2,32]{1,0:T(2,128)}', space=vmem, size = 0x400, scoped, tag = 'scratch operand']
  #allocation3 [shape = 'f32[2,32]{1,0:T(2,128)}', space=vmem, size = 0x400, scoped, tag = 'scratch operand']
  #allocation4 [shape = 'f32[8,2,128]{2,1,0:T(2,128)}', space=vmem, size = 0x2000, scoped, tag = 'scratch operand']
  #allocation5 [shape = 'f32[8,2,32]{2,1,0:T(2,128)}', space=vmem, size = 0x2000, scoped, tag = 'scratch operand']
  %s0 = inlined_call_operand.vmem [shape: bf16[1,16,32], index: 0, kind: input, shape index: {}]
  %s1 = inlined_call_operand.vmem [shape: bf16[32,128], index: 1, kind: input, shape index: {}]
  %s2 = inlined_call_operand.vmem [shape: bf16[32,128], index: 2, kind: input, shape index: {}]
  %s3 = inlined_call_operand.vmem [shape: f32[1,128], index: 3, kind: input, shape index: {}]
  %s4 = inlined_call_operand.vmem [shape: bf16[32,4], index: 4, kind: input, shape index: {}]
  %s5 = inlined_call_operand.vmem [shape: f32[1,4], index: 5, kind: input, shape index: {}]
  %s6 = inlined_call_operand.vmem [shape: f32[1,16,4], index: 6, kind: output, shape index: {}]
  %s7 = sld [smem:[#allocation0]]
  $region38: #{lstm_model_forward.3} parent=0
    _
  %s9 = ssub.s32 1, %s7
  %s10 = scalar_select 0, %s9, %s7
  // Predicated region
  $region2: #{lstm_model_forward.3} parent=0 // pred_check
    _
  $region3: #{lstm_model_forward.3} parent=0 // pred_check_branch
    %12 = sbr.rel (0) target = $region5
  $region4: #{lstm_model_forward.3} parent=0 // pred_region
    _
  $region5: #{lstm_model_forward.3} parent=0 // pred_fallthru
    _
  // Predicated region
  $region6: #{lstm_model_forward.3} parent=0 // pred_check
    _
  $region7: #{lstm_model_forward.3} parent=0 // pred_check_branch
    %14 = sbr.rel (0) target = $region9
  $region8: #{lstm_model_forward.3} parent=0 // pred_region
    _
  $region9: #{lstm_model_forward.3} parent=0 // pred_fallthru
    _
  // Predicated region
  $region10: #{lstm_model_forward.3} parent=0 // pred_check
    _
  $region11: #{lstm_model_forward.3} parent=0 // pred_check_branch
    %16 = sbr.rel (0) target = $region13
  $region12: #{lstm_model_forward.3} parent=0 // pred_region
    _
  $region13: #{lstm_model_forward.3} parent=0 // pred_fallthru
    _
  // Predicated region
  $region14: #{lstm_model_forward.3} parent=0 // pred_check
    _
  $region15: #{lstm_model_forward.3} parent=0 // pred_check_branch
    %18 = sbr.rel (0) target = $region17
  $region16: #{lstm_model_forward.3} parent=0 // pred_region
    _
  $region17: #{lstm_model_forward.3} parent=0 // pred_fallthru
    _
  // Predicated region
  $region18: #{lstm_model_forward.3} parent=0 // pred_check
    _
  $region19: #{lstm_model_forward.3} parent=0 // pred_check_branch
    %20 = sbr.rel (0) target = $region21
  $region20: #{lstm_model_forward.3} parent=0 // pred_region
    _
  $region21: #{lstm_model_forward.3} parent=0 // pred_fallthru
    _
  // Predicated region
  $region22: #{lstm_model_forward.3} parent=0 // pred_check
    _
  $region23: #{lstm_model_forward.3} parent=0 // pred_check_branch
    %22 = sbr.rel (0) target = $region25
  $region24: #{lstm_model_forward.3} parent=0 // pred_region
    _
  $region25: #{lstm_model_forward.3} parent=0 // pred_fallthru
    _
  %p24 = scmp.eq.s32.totalorder 0, 0
  // Predicated region
  $region26: #{lstm_model_forward.3} parent=0 // pred_check
    %p25 = pneg %p24
  $region27: #{lstm_model_forward.3} parent=0 // pred_check_branch
    %27 = sbr.rel (%p25) target = $region29
  $region28: #{lstm_model_forward.3} parent=0 // pred_region
    %vm28 = vcmask 254976
    %29 = vst.msk [vmem:[#allocation2] sm:$0x3] %vm28, 0.0
    %30 = vst.msk [vmem:[#allocation3] sm:$0x3] %vm28, 0.0
  $region29: #{lstm_model_forward.3} parent=0 // pred_fallthru
    _
  %v31 = vld [vmem:[%s0] sm:$0xf]
  %v32 = vld [vmem:[%s0 + $0x4] sm:$0xf]
  %v33 = vld [vmem:[%s1] sm:$0xf]
  %v34 = vld [vmem:[%s1 + $0x4] sm:$0xf]
  %v35 = vld [vmem:[%s1 + $0x8] sm:$0xf]
  %v36 = vld [vmem:[%s1 + $0xc] sm:$0xf]
  %v37 = vld [vmem:[%s3] sm:$0x1]
  %v39 = vlaneseq
  %v40 = vshrl.u32 %v39, 7
  %v41 = vsub.s32 0, %v40
  %v42 = vrot.slane %v37, %v41
  %v46 = vunpack.c.l.b16 %v31
  %v47 = vunpack.c.l.b16 %v32
  %v48 = vpack.c.b16 %v47, %v46
  %v53 = vunpack.c.l.b16 %v33
  %v54 = vunpack.c.l.b16 %v34
  %v55 = vunpack.c.l.b16 %v35
  %v56 = vunpack.c.l.b16 %v36
  %v57 = vpack.c.b16 %v54, %v53
  %v58 = vpack.c.b16 %v56, %v55
  %vm61 = vcmask 261120
  %v63 = vsel %vm61, %v48, 0
  %65 = vmatprep.subr.bf16.mxu0 0
  %66 = vmatpush1.bf16.msra.mxu0 %v57
  %67 = vmatprep.subr.bf16.mxu0 0
  %68 = vmatpush1.bf16.msra.mxu0 %v58
  %69 = vmatprep.subr.bf16.mxu0 0
  %70 = vmatpush1.bf16.msra.mxu0 0
  %71 = vmatprep.subr.bf16.mxu0 0
  %72 = vmatpush1.bf16.msra.mxu0 0
  %73 = vmatprep.subr.bf16.mxu0 0
  %74 = vmatpush1.bf16.msra.mxu0 0
  %75 = vmatprep.subr.bf16.mxu0 0
  %76 = vmatpush1.bf16.msra.mxu0 0
  %77 = vmatprep.subr.bf16.mxu0 0
  %78 = vmatpush1.bf16.msra.mxu0 0
  %79 = vmatprep.subr.bf16.mxu0 0
  %80 = vmatpush1.bf16.msra.mxu0 0
  %81 = vmatprep.subr.bf16.mxu0 0
  %82 = vmatpush1.bf16.msra.mxu0 0
  %83 = vmatprep.subr.bf16.mxu0 0
  %84 = vmatpush1.bf16.msra.mxu0 0
  %85 = vmatprep.subr.bf16.mxu0 0
  %86 = vmatpush1.bf16.msra.mxu0 0
  %87 = vmatprep.subr.bf16.mxu0 0
  %88 = vmatpush1.bf16.msra.mxu0 0
  %89 = vmatprep.subr.bf16.mxu0 0
  %90 = vmatpush1.bf16.msra.mxu0 0
  %91 = vmatprep.subr.bf16.mxu0 0
  %92 = vmatpush1.bf16.msra.mxu0 0
  %93 = vmatprep.subr.bf16.mxu0 0
  %94 = vmatpush1.bf16.msra.mxu0 0
  %95 = vmatprep.subr.bf16.mxu0 0
  %96 = vmatpush1.bf16.msra.mxu0 0
  %97 = vmatprep.mubr.bf16.mxu0 0
  %98 = vmatmul.mubr.bf16.gmra.mrb[0].mxu0 %v63
  %v99 = vpop.f32.mrb[0].mxu0
  %v100 = vadd.f32 %v42, %v99
  %v101 = vpop.f32.mrb[0].mxu0
  %v102 = vpop.f32.mrb[0].mxu0
  %v103 = vadd.f32 %v42, %v102
  %v104 = vpop.f32.mrb[0].mxu0
  %105 = vdwg.mxu0
  %106 = vst [vmem:[#allocation4] sm:$0x3] %v100
  %s107 = scalar_lea.vmem [#allocation4], 2
  %108 = vst [vmem:[%s107 - $0x2] sm:$0xc] %v100
  %s109 = scalar_lea.vmem [#allocation4], 4
  %110 = vst [vmem:[%s109 - $0x4] sm:$0x30] %v100
  %s111 = scalar_lea.vmem [#allocation4], 6
  %112 = vst [vmem:[%s111 - $0x6] sm:$0xc0] %v100
  %s113 = scalar_lea.vmem [#allocation4], 8
  %114 = vst [vmem:[%s113] sm:$0x3] %v103
  %s115 = scalar_lea.vmem [#allocation4], 10
  %116 = vst [vmem:[%s115 - $0x2] sm:$0xc] %v103
  %s117 = scalar_lea.vmem [#allocation4], 12
  %118 = vst [vmem:[%s117 - $0x4] sm:$0x30] %v103
  %s119 = scalar_lea.vmem [#allocation4], 14
  %120 = vst [vmem:[%s119 - $0x6] sm:$0xc0] %v103
  %v121 = vld [vmem:[%s2] sm:$0xf]
  %v122 = vld [vmem:[%s2 + $0x4] sm:$0xf]
  %v123 = vld [vmem:[%s2 + $0x8] sm:$0xf]
  %v124 = vld [vmem:[%s2 + $0xc] sm:$0xf]
  %v125 = vld [vmem:[#allocation2] sm:$0x3]
  %v126 = vld [vmem:[#allocation3] sm:$0x3]
  %v127 = vld [vmem:[#allocation4] sm:$0x3]
  %v128 = vpack.c.bf16 %v125, %v125
  %v133 = vunpack.c.l.b16 %v121
  %v134 = vunpack.c.l.b16 %v122
  %v135 = vunpack.c.l.b16 %v123
  %v136 = vunpack.c.l.b16 %v124
  %v137 = vpack.c.b16 %v134, %v133
  %v138 = vpack.c.b16 %v136, %v135
  %v142 = vsel %vm61, %v128, 0
  %144 = vmatprep.subr.bf16.mxu0 0
  %145 = vmatpush1.bf16.msra.mxu0 %v137
  %146 = vmatprep.subr.bf16.mxu0 0
  %147 = vmatpush1.bf16.msra.mxu0 %v138
  %148 = vmatprep.subr.bf16.mxu0 0
  %149 = vmatpush1.bf16.msra.mxu0 0
  %150 = vmatprep.subr.bf16.mxu0 0
  %151 = vmatpush1.bf16.msra.mxu0 0
  %152 = vmatprep.subr.bf16.mxu0 0
  %153 = vmatpush1.bf16.msra.mxu0 0
  %154 = vmatprep.subr.bf16.mxu0 0
  %155 = vmatpush1.bf16.msra.mxu0 0
  %156 = vmatprep.subr.bf16.mxu0 0
  %157 = vmatpush1.bf16.msra.mxu0 0
  %158 = vmatprep.subr.bf16.mxu0 0
  %159 = vmatpush1.bf16.msra.mxu0 0
  %160 = vmatprep.subr.bf16.mxu0 0
  %161 = vmatpush1.bf16.msra.mxu0 0
  %162 = vmatprep.subr.bf16.mxu0 0
  %163 = vmatpush1.bf16.msra.mxu0 0
  %164 = vmatprep.subr.bf16.mxu0 0
  %165 = vmatpush1.bf16.msra.mxu0 0
  %166 = vmatprep.subr.bf16.mxu0 0
  %167 = vmatpush1.bf16.msra.mxu0 0
  %168 = vmatprep.subr.bf16.mxu0 0
  %169 = vmatpush1.bf16.msra.mxu0 0
  %170 = vmatprep.subr.bf16.mxu0 0
  %171 = vmatpush1.bf16.msra.mxu0 0
  %172 = vmatprep.subr.bf16.mxu0 0
  %173 = vmatpush1.bf16.msra.mxu0 0
  %174 = vmatprep.subr.bf16.mxu0 0
  %175 = vmatpush1.bf16.msra.mxu0 0
  %176 = vmatprep.mubr.bf16.mxu0 0
  %177 = vmatmul.mubr.bf16.gmra.mrb[0].mxu0 %v142
  %v178 = vpop.f32.mrb[0].mxu0
  %v179 = vadd.f32 0.0, %v178
  %v180 = vpop.f32.mrb[0].mxu0
  %v181 = vpop.f32.mrb[0].mxu0
  %v182 = vpop.f32.mrb[0].mxu0
  %183 = vdwg.mxu0
  %v184 = vadd.f32 %v127, %v179
  %v185 = vxor.u32 %v184, 2147483648
  %v186 = vmul.f32 %v185, 1.442695
  %v187 = vpow.pop %v186
  %v188 = vadd.f32 %v187, 1.0
  %v189 = vrcp.pop %v188
  %v190 = vmul.f32 1.0, %v189
  %v191 = vtanh.pop %v184
  %193 = vrot.lane.b32.xlu0 %v126, 32
  %v194 = vpop.permute.xlu0 %193
  %v196 = vmul.f32 %v190, %v194
  %198 = vrot.lane.b32.xlu0 %v191, 64
  %v199 = vpop.permute.xlu0 %198
  %v201 = vmul.f32 %v190, %v199
  %203 = vrot.lane.b32.xlu0 %v201, 32
  %v204 = vpop.permute.xlu0 %203
  %v206 = vadd.f32 %v196, %v204
  %v207 = vtanh.pop %v206
  %209 = vrot.lane.b32.xlu0 %v207, 64
  %v210 = vpop.permute.xlu0 %209
  %v212 = vmul.f32 %v190, %v210
  %214 = vrot.lane.b32.xlu0 %v212, 32
  %v215 = vpop.permute.xlu0 %214
  %vm217 = vcmask 254976
  %218 = vst.msk [vmem:[#allocation5] sm:$0x3] %vm217, %v215
  %v219 = vld [vmem:[%s107] sm:$0x3]
  %v220 = vpack.c.bf16 %v212, %v212
  %222 = vrot.lane.b32.xlu0 %v220, 32
  %v223 = vpop.permute.xlu0 %222
  %v225 = vsel %vm61, %v223, 0
  %227 = vmatprep.subr.bf16.mxu0 0
  %228 = vmatpush1.bf16.msra.mxu0 %v137
  %229 = vmatprep.subr.bf16.mxu0 0
  %230 = vmatpush1.bf16.msra.mxu0 %v138
  %231 = vmatprep.subr.bf16.mxu0 0
  %232 = vmatpush1.bf16.msra.mxu0 0
  %233 = vmatprep.subr.bf16.mxu0 0
  %234 = vmatpush1.bf16.msra.mxu0 0
  %235 = vmatprep.subr.bf16.mxu0 0
  %236 = vmatpush1.bf16.msra.mxu0 0
  %237 = vmatprep.subr.bf16.mxu0 0
  %238 = vmatpush1.bf16.msra.mxu0 0
  %239 = vmatprep.subr.bf16.mxu0 0
  %240 = vmatpush1.bf16.msra.mxu0 0
  %241 = vmatprep.subr.bf16.mxu0 0
  %242 = vmatpush1.bf16.msra.mxu0 0
  %243 = vmatprep.subr.bf16.mxu0 0
  %244 = vmatpush1.bf16.msra.mxu0 0
  %245 = vmatprep.subr.bf16.mxu0 0
  %246 = vmatpush1.bf16.msra.mxu0 0
  %247 = vmatprep.subr.bf16.mxu0 0
  %248 = vmatpush1.bf16.msra.mxu0 0
  %249 = vmatprep.subr.bf16.mxu0 0
  %250 = vmatpush1.bf16.msra.mxu0 0
  %251 = vmatprep.subr.bf16.mxu0 0
  %252 = vmatpush1.bf16.msra.mxu0 0
  %253 = vmatprep.subr.bf16.mxu0 0
  %254 = vmatpush1.bf16.msra.mxu0 0
  %255 = vmatprep.subr.bf16.mxu0 0
  %256 = vmatpush1.bf16.msra.mxu0 0
  %257 = vmatprep.subr.bf16.mxu0 0
  %258 = vmatpush1.bf16.msra.mxu0 0
  %259 = vmatprep.mubr.bf16.mxu0 0
  %260 = vmatmul.mubr.bf16.gmra.mrb[0].mxu0 %v225
  %v261 = vpop.f32.mrb[0].mxu0
  %v262 = vadd.f32 0.0, %v261
  %v263 = vpop.f32.mrb[0].mxu0
  %v264 = vpop.f32.mrb[0].mxu0
  %v265 = vpop.f32.mrb[0].mxu0
  %266 = vdwg.mxu0
  %v267 = vadd.f32 %v219, %v262
  %v268 = vxor.u32 %v267, 2147483648
  %v269 = vmul.f32 %v268, 1.442695
  %v270 = vpow.pop %v269
  %v271 = vadd.f32 %v270, 1.0
  %v272 = vrcp.pop %v271
  %v273 = vmul.f32 1.0, %v272
  %v274 = vtanh.pop %v267
  %v275 = vmul.f32 %v273, %v206
  %277 = vrot.lane.b32.xlu0 %v274, 64
  %v278 = vpop.permute.xlu0 %277
  %v280 = vmul.f32 %v273, %v278
  %282 = vrot.lane.b32.xlu0 %v280, 32
  %v283 = vpop.permute.xlu0 %282
  %v285 = vadd.f32 %v275, %v283
  %v286 = vtanh.pop %v285
  %288 = vrot.lane.b32.xlu0 %v286, 64
  %v289 = vpop.permute.xlu0 %288
  %v291 = vmul.f32 %v273, %v289
  %293 = vrot.lane.b32.xlu0 %v291, 32
  %v294 = vpop.permute.xlu0 %293
  %s296 = scalar_lea.vmem [#allocation5], 2
  %297 = vst.msk [vmem:[%s296] sm:$0x3] %vm217, %v294
  %v298 = vld [vmem:[%s109] sm:$0x3]
  %v299 = vpack.c.bf16 %v291, %v291
  %301 = vrot.lane.b32.xlu0 %v299, 32
  %v302 = vpop.permute.xlu0 %301
  %v304 = vsel %vm61, %v302, 0
  %306 = vmatprep.subr.bf16.mxu0 0
  %307 = vmatpush1.bf16.msra.mxu0 %v137
  %308 = vmatprep.subr.bf16.mxu0 0
  %309 = vmatpush1.bf16.msra.mxu0 %v138
  %310 = vmatprep.subr.bf16.mxu0 0
  %311 = vmatpush1.bf16.msra.mxu0 0
  %312 = vmatprep.subr.bf16.mxu0 0
  %313 = vmatpush1.bf16.msra.mxu0 0
  %314 = vmatprep.subr.bf16.mxu0 0
  %315 = vmatpush1.bf16.msra.mxu0 0
  %316 = vmatprep.subr.bf16.mxu0 0
  %317 = vmatpush1.bf16.msra.mxu0 0
  %318 = vmatprep.subr.bf16.mxu0 0
  %319 = vmatpush1.bf16.msra.mxu0 0
  %320 = vmatprep.subr.bf16.mxu0 0
  %321 = vmatpush1.bf16.msra.mxu0 0
  %322 = vmatprep.subr.bf16.mxu0 0
  %323 = vmatpush1.bf16.msra.mxu0 0
  %324 = vmatprep.subr.bf16.mxu0 0
  %325 = vmatpush1.bf16.msra.mxu0 0
  %326 = vmatprep.subr.bf16.mxu0 0
  %327 = vmatpush1.bf16.msra.mxu0 0
  %328 = vmatprep.subr.bf16.mxu0 0
  %329 = vmatpush1.bf16.msra.mxu0 0
  %330 = vmatprep.subr.bf16.mxu0 0
  %331 = vmatpush1.bf16.msra.mxu0 0
  %332 = vmatprep.subr.bf16.mxu0 0
  %333 = vmatpush1.bf16.msra.mxu0 0
  %334 = vmatprep.subr.bf16.mxu0 0
  %335 = vmatpush1.bf16.msra.mxu0 0
  %336 = vmatprep.subr.bf16.mxu0 0
  %337 = vmatpush1.bf16.msra.mxu0 0
  %338 = vmatprep.mubr.bf16.mxu0 0
  %339 = vmatmul.mubr.bf16.gmra.mrb[0].mxu0 %v304
  %v340 = vpop.f32.mrb[0].mxu0
  %v341 = vadd.f32 0.0, %v340
  %v342 = vpop.f32.mrb[0].mxu0
  %v343 = vpop.f32.mrb[0].mxu0
  %v344 = vpop.f32.mrb[0].mxu0
  %345 = vdwg.mxu0
  %v346 = vadd.f32 %v298, %v341
  %v347 = vxor.u32 %v346, 2147483648
  %v348 = vmul.f32 %v347, 1.442695
  %v349 = vpow.pop %v348
  %v350 = vadd.f32 %v349, 1.0
  %v351 = vrcp.pop %v350
  %v352 = vmul.f32 1.0, %v351
  %v353 = vtanh.pop %v346
  %v354 = vmul.f32 %v352, %v285
  %356 = vrot.lane.b32.xlu0 %v353, 64
  %v357 = vpop.permute.xlu0 %356
  %v359 = vmul.f32 %v352, %v357
  %361 = vrot.lane.b32.xlu0 %v359, 32
  %v362 = vpop.permute.xlu0 %361
  %v364 = vadd.f32 %v354, %v362
  %v365 = vtanh.pop %v364
  %367 = vrot.lane.b32.xlu0 %v365, 64
  %v368 = vpop.permute.xlu0 %367
  %v370 = vmul.f32 %v352, %v368
  %372 = vrot.lane.b32.xlu0 %v370, 32
  %v373 = vpop.permute.xlu0 %372
  %s375 = scalar_lea.vmem [#allocation5], 4
  %376 = vst.msk [vmem:[%s375] sm:$0x3] %vm217, %v373
  %v377 = vld [vmem:[%s111] sm:$0x3]
  %v378 = vpack.c.bf16 %v370, %v370
  %380 = vrot.lane.b32.xlu0 %v378, 32
  %v381 = vpop.permute.xlu0 %380
  %v383 = vsel %vm61, %v381, 0
  %385 = vmatprep.subr.bf16.mxu0 0
  %386 = vmatpush1.bf16.msra.mxu0 %v137
  %387 = vmatprep.subr.bf16.mxu0 0
  %388 = vmatpush1.bf16.msra.mxu0 %v138
  %389 = vmatprep.subr.bf16.mxu0 0
  %390 = vmatpush1.bf16.msra.mxu0 0
  %391 = vmatprep.subr.bf16.mxu0 0
  %392 = vmatpush1.bf16.msra.mxu0 0
  %393 = vmatprep.subr.bf16.mxu0 0
  %394 = vmatpush1.bf16.msra.mxu0 0
  %395 = vmatprep.subr.bf16.mxu0 0
  %396 = vmatpush1.bf16.msra.mxu0 0
  %397 = vmatprep.subr.bf16.mxu0 0
  %398 = vmatpush1.bf16.msra.mxu0 0
  %399 = vmatprep.subr.bf16.mxu0 0
  %400 = vmatpush1.bf16.msra.mxu0 0
  %401 = vmatprep.subr.bf16.mxu0 0
  %402 = vmatpush1.bf16.msra.mxu0 0
  %403 = vmatprep.subr.bf16.mxu0 0
  %404 = vmatpush1.bf16.msra.mxu0 0
  %405 = vmatprep.subr.bf16.mxu0 0
  %406 = vmatpush1.bf16.msra.mxu0 0
  %407 = vmatprep.subr.bf16.mxu0 0
  %408 = vmatpush1.bf16.msra.mxu0 0
  %409 = vmatprep.subr.bf16.mxu0 0
  %410 = vmatpush1.bf16.msra.mxu0 0
  %411 = vmatprep.subr.bf16.mxu0 0
  %412 = vmatpush1.bf16.msra.mxu0 0
  %413 = vmatprep.subr.bf16.mxu0 0
  %414 = vmatpush1.bf16.msra.mxu0 0
  %415 = vmatprep.subr.bf16.mxu0 0
  %416 = vmatpush1.bf16.msra.mxu0 0
  %417 = vmatprep.mubr.bf16.mxu0 0
  %418 = vmatmul.mubr.bf16.gmra.mrb[0].mxu0 %v383
  %v419 = vpop.f32.mrb[0].mxu0
  %v420 = vadd.f32 0.0, %v419
  %v421 = vpop.f32.mrb[0].mxu0
  %v422 = vpop.f32.mrb[0].mxu0
  %v423 = vpop.f32.mrb[0].mxu0
  %424 = vdwg.mxu0
  %v425 = vadd.f32 %v377, %v420
  %v426 = vxor.u32 %v425, 2147483648
  %v427 = vmul.f32 %v426, 1.442695
  %v428 = vpow.pop %v427
  %v429 = vadd.f32 %v428, 1.0
  %v430 = vrcp.pop %v429
  %v431 = vmul.f32 1.0, %v430
  %v432 = vtanh.pop %v425
  %v433 = vmul.f32 %v431, %v364
  %435 = vrot.lane.b32.xlu0 %v432, 64
  %v436 = vpop.permute.xlu0 %435
  %v438 = vmul.f32 %v431, %v436
  %440 = vrot.lane.b32.xlu0 %v438, 32
  %v441 = vpop.permute.xlu0 %440
  %v443 = vadd.f32 %v433, %v441
  %v444 = vtanh.pop %v443
  %446 = vrot.lane.b32.xlu0 %v444, 64
  %v447 = vpop.permute.xlu0 %446
  %v449 = vmul.f32 %v431, %v447
  %451 = vrot.lane.b32.xlu0 %v449, 32
  %v452 = vpop.permute.xlu0 %451
  %s454 = scalar_lea.vmem [#allocation5], 6
  %455 = vst.msk [vmem:[%s454] sm:$0x3] %vm217, %v452
  %v456 = vld [vmem:[%s113] sm:$0x3]
  %v457 = vpack.c.bf16 %v449, %v449
  %459 = vrot.lane.b32.xlu0 %v457, 32
  %v460 = vpop.permute.xlu0 %459
  %v462 = vsel %vm61, %v460, 0
  %464 = vmatprep.subr.bf16.mxu0 0
  %465 = vmatpush1.bf16.msra.mxu0 %v137
  %466 = vmatprep.subr.bf16.mxu0 0
  %467 = vmatpush1.bf16.msra.mxu0 %v138
  %468 = vmatprep.subr.bf16.mxu0 0
  %469 = vmatpush1.bf16.msra.mxu0 0
  %470 = vmatprep.subr.bf16.mxu0 0
  %471 = vmatpush1.bf16.msra.mxu0 0
  %472 = vmatprep.subr.bf16.mxu0 0
  %473 = vmatpush1.bf16.msra.mxu0 0
  %474 = vmatprep.subr.bf16.mxu0 0
  %475 = vmatpush1.bf16.msra.mxu0 0
  %476 = vmatprep.subr.bf16.mxu0 0
  %477 = vmatpush1.bf16.msra.mxu0 0
  %478 = vmatprep.subr.bf16.mxu0 0
  %479 = vmatpush1.bf16.msra.mxu0 0
  %480 = vmatprep.subr.bf16.mxu0 0
  %481 = vmatpush1.bf16.msra.mxu0 0
  %482 = vmatprep.subr.bf16.mxu0 0
  %483 = vmatpush1.bf16.msra.mxu0 0
  %484 = vmatprep.subr.bf16.mxu0 0
  %485 = vmatpush1.bf16.msra.mxu0 0
  %486 = vmatprep.subr.bf16.mxu0 0
  %487 = vmatpush1.bf16.msra.mxu0 0
  %488 = vmatprep.subr.bf16.mxu0 0
  %489 = vmatpush1.bf16.msra.mxu0 0
  %490 = vmatprep.subr.bf16.mxu0 0
  %491 = vmatpush1.bf16.msra.mxu0 0
  %492 = vmatprep.subr.bf16.mxu0 0
  %493 = vmatpush1.bf16.msra.mxu0 0
  %494 = vmatprep.subr.bf16.mxu0 0
  %495 = vmatpush1.bf16.msra.mxu0 0
  %496 = vmatprep.mubr.bf16.mxu0 0
  %497 = vmatmul.mubr.bf16.gmra.mrb[0].mxu0 %v462
  %v498 = vpop.f32.mrb[0].mxu0
  %v499 = vadd.f32 0.0, %v498
  %v500 = vpop.f32.mrb[0].mxu0
  %v501 = vpop.f32.mrb[0].mxu0
  %v502 = vpop.f32.mrb[0].mxu0
  %503 = vdwg.mxu0
  %v504 = vadd.f32 %v456, %v499
  %v505 = vxor.u32 %v504, 2147483648
  %v506 = vmul.f32 %v505, 1.442695
  %v507 = vpow.pop %v506
  %v508 = vadd.f32 %v507, 1.0
  %v509 = vrcp.pop %v508
  %v510 = vmul.f32 1.0, %v509
  %v511 = vtanh.pop %v504
  %v512 = vmul.f32 %v510, %v443
  %514 = vrot.lane.b32.xlu0 %v511, 64
  %v515 = vpop.permute.xlu0 %514
  %v517 = vmul.f32 %v510, %v515
  %519 = vrot.lane.b32.xlu0 %v517, 32
  %v520 = vpop.permute.xlu0 %519
  %v522 = vadd.f32 %v512, %v520
  %v523 = vtanh.pop %v522
  %525 = vrot.lane.b32.xlu0 %v523, 64
  %v526 = vpop.permute.xlu0 %525
  %v528 = vmul.f32 %v510, %v526
  %530 = vrot.lane.b32.xlu0 %v528, 32
  %v531 = vpop.permute.xlu0 %530
  %s533 = scalar_lea.vmem [#allocation5], 8
  %534 = vst.msk [vmem:[%s533] sm:$0x3] %vm217, %v531
  %v535 = vld [vmem:[%s115] sm:$0x3]
  %v536 = vpack.c.bf16 %v528, %v528
  %538 = vrot.lane.b32.xlu0 %v536, 32
  %v539 = vpop.permute.xlu0 %538
  %v541 = vsel %vm61, %v539, 0
  %543 = vmatprep.subr.bf16.mxu0 0
  %544 = vmatpush1.bf16.msra.mxu0 %v137
  %545 = vmatprep.subr.bf16.mxu0 0
  %546 = vmatpush1.bf16.msra.mxu0 %v138
  %547 = vmatprep.subr.bf16.mxu0 0
  %548 = vmatpush1.bf16.msra.mxu0 0
  %549 = vmatprep.subr.bf16.mxu0 0
  %550 = vmatpush1.bf16.msra.mxu0 0
  %551 = vmatprep.subr.bf16.mxu0 0
  %552 = vmatpush1.bf16.msra.mxu0 0
  %553 = vmatprep.subr.bf16.mxu0 0
  %554 = vmatpush1.bf16.msra.mxu0 0
  %555 = vmatprep.subr.bf16.mxu0 0
  %556 = vmatpush1.bf16.msra.mxu0 0
  %557 = vmatprep.subr.bf16.mxu0 0
  %558 = vmatpush1.bf16.msra.mxu0 0
  %559 = vmatprep.subr.bf16.mxu0 0
  %560 = vmatpush1.bf16.msra.mxu0 0
  %561 = vmatprep.subr.bf16.mxu0 0
  %562 = vmatpush1.bf16.msra.mxu0 0
  %563 = vmatprep.subr.bf16.mxu0 0
  %564 = vmatpush1.bf16.msra.mxu0 0
  %565 = vmatprep.subr.bf16.mxu0 0
  %566 = vmatpush1.bf16.msra.mxu0 0
  %567 = vmatprep.subr.bf16.mxu0 0
  %568 = vmatpush1.bf16.msra.mxu0 0
  %569 = vmatprep.subr.bf16.mxu0 0
  %570 = vmatpush1.bf16.msra.mxu0 0
  %571 = vmatprep.subr.bf16.mxu0 0
  %572 = vmatpush1.bf16.msra.mxu0 0
  %573 = vmatprep.subr.bf16.mxu0 0
  %574 = vmatpush1.bf16.msra.mxu0 0
  %575 = vmatprep.mubr.bf16.mxu0 0
  %576 = vmatmul.mubr.bf16.gmra.mrb[0].mxu0 %v541
  %v577 = vpop.f32.mrb[0].mxu0
  %v578 = vadd.f32 0.0, %v577
  %v579 = vpop.f32.mrb[0].mxu0
  %v580 = vpop.f32.mrb[0].mxu0
  %v581 = vpop.f32.mrb[0].mxu0
  %582 = vdwg.mxu0
  %v583 = vadd.f32 %v535, %v578
  %v584 = vxor.u32 %v583, 2147483648
  %v585 = vmul.f32 %v584, 1.442695
  %v586 = vpow.pop %v585
  %v587 = vadd.f32 %v586, 1.0
  %v588 = vrcp.pop %v587
  %v589 = vmul.f32 1.0, %v588
  %v590 = vtanh.pop %v583
  %v591 = vmul.f32 %v589, %v522
  %593 = vrot.lane.b32.xlu0 %v590, 64
  %v594 = vpop.permute.xlu0 %593
  %v596 = vmul.f32 %v589, %v594
  %598 = vrot.lane.b32.xlu0 %v596, 32
  %v599 = vpop.permute.xlu0 %598
  %v601 = vadd.f32 %v591, %v599
  %v602 = vtanh.pop %v601
  %604 = vrot.lane.b32.xlu0 %v602, 64
  %v605 = vpop.permute.xlu0 %604
  %v607 = vmul.f32 %v589, %v605
  %609 = vrot.lane.b32.xlu0 %v607, 32
  %v610 = vpop.permute.xlu0 %609
  %s612 = scalar_lea.vmem [#allocation5], 10
  %613 = vst.msk [vmem:[%s612] sm:$0x3] %vm217, %v610
  %v614 = vld [vmem:[%s117] sm:$0x3]
  %v615 = vpack.c.bf16 %v607, %v607
  %617 = vrot.lane.b32.xlu0 %v615, 32
  %v618 = vpop.permute.xlu0 %617
  %v620 = vsel %vm61, %v618, 0
  %622 = vmatprep.subr.bf16.mxu0 0
  %623 = vmatpush1.bf16.msra.mxu0 %v137
  %624 = vmatprep.subr.bf16.mxu0 0
  %625 = vmatpush1.bf16.msra.mxu0 %v138
  %626 = vmatprep.subr.bf16.mxu0 0
  %627 = vmatpush1.bf16.msra.mxu0 0
  %628 = vmatprep.subr.bf16.mxu0 0
  %629 = vmatpush1.bf16.msra.mxu0 0
  %630 = vmatprep.subr.bf16.mxu0 0
  %631 = vmatpush1.bf16.msra.mxu0 0
  %632 = vmatprep.subr.bf16.mxu0 0
  %633 = vmatpush1.bf16.msra.mxu0 0
  %634 = vmatprep.subr.bf16.mxu0 0
  %635 = vmatpush1.bf16.msra.mxu0 0
  %636 = vmatprep.subr.bf16.mxu0 0
  %637 = vmatpush1.bf16.msra.mxu0 0
  %638 = vmatprep.subr.bf16.mxu0 0
  %639 = vmatpush1.bf16.msra.mxu0 0
  %640 = vmatprep.subr.bf16.mxu0 0
  %641 = vmatpush1.bf16.msra.mxu0 0
  %642 = vmatprep.subr.bf16.mxu0 0
  %643 = vmatpush1.bf16.msra.mxu0 0
  %644 = vmatprep.subr.bf16.mxu0 0
  %645 = vmatpush1.bf16.msra.mxu0 0
  %646 = vmatprep.subr.bf16.mxu0 0
  %647 = vmatpush1.bf16.msra.mxu0 0
  %648 = vmatprep.subr.bf16.mxu0 0
  %649 = vmatpush1.bf16.msra.mxu0 0
  %650 = vmatprep.subr.bf16.mxu0 0
  %651 = vmatpush1.bf16.msra.mxu0 0
  %652 = vmatprep.subr.bf16.mxu0 0
  %653 = vmatpush1.bf16.msra.mxu0 0
  %654 = vmatprep.mubr.bf16.mxu0 0
  %655 = vmatmul.mubr.bf16.gmra.mrb[0].mxu0 %v620
  %v656 = vpop.f32.mrb[0].mxu0
  %v657 = vadd.f32 0.0, %v656
  %v658 = vpop.f32.mrb[0].mxu0
  %v659 = vpop.f32.mrb[0].mxu0
  %v660 = vpop.f32.mrb[0].mxu0
  %661 = vdwg.mxu0
  %v662 = vadd.f32 %v614, %v657
  %v663 = vxor.u32 %v662, 2147483648
  %v664 = vmul.f32 %v663, 1.442695
  %v665 = vpow.pop %v664
  %v666 = vadd.f32 %v665, 1.0
  %v667 = vrcp.pop %v666
  %v668 = vmul.f32 1.0, %v667
  %v669 = vtanh.pop %v662
  %v670 = vmul.f32 %v668, %v601
  %672 = vrot.lane.b32.xlu0 %v669, 64
  %v673 = vpop.permute.xlu0 %672
  %v675 = vmul.f32 %v668, %v673
  %677 = vrot.lane.b32.xlu0 %v675, 32
  %v678 = vpop.permute.xlu0 %677
  %v680 = vadd.f32 %v670, %v678
  %v681 = vtanh.pop %v680
  %683 = vrot.lane.b32.xlu0 %v681, 64
  %v684 = vpop.permute.xlu0 %683
  %v686 = vmul.f32 %v668, %v684
  %688 = vrot.lane.b32.xlu0 %v686, 32
  %v689 = vpop.permute.xlu0 %688
  %s691 = scalar_lea.vmem [#allocation5], 12
  %692 = vst.msk [vmem:[%s691] sm:$0x3] %vm217, %v689
  %v693 = vld [vmem:[%s119] sm:$0x3]
  %v694 = vpack.c.bf16 %v686, %v686
  %696 = vrot.lane.b32.xlu0 %v694, 32
  %v697 = vpop.permute.xlu0 %696
  %v699 = vsel %vm61, %v697, 0
  %701 = vmatprep.subr.bf16.mxu0 0
  %702 = vmatpush1.bf16.msra.mxu0 %v137
  %703 = vmatprep.subr.bf16.mxu0 0
  %704 = vmatpush1.bf16.msra.mxu0 %v138
  %705 = vmatprep.subr.bf16.mxu0 0
  %706 = vmatpush1.bf16.msra.mxu0 0
  %707 = vmatprep.subr.bf16.mxu0 0
  %708 = vmatpush1.bf16.msra.mxu0 0
  %709 = vmatprep.subr.bf16.mxu0 0
  %710 = vmatpush1.bf16.msra.mxu0 0
  %711 = vmatprep.subr.bf16.mxu0 0
  %712 = vmatpush1.bf16.msra.mxu0 0
  %713 = vmatprep.subr.bf16.mxu0 0
  %714 = vmatpush1.bf16.msra.mxu0 0
  %715 = vmatprep.subr.bf16.mxu0 0
  %716 = vmatpush1.bf16.msra.mxu0 0
  %717 = vmatprep.subr.bf16.mxu0 0
  %718 = vmatpush1.bf16.msra.mxu0 0
  %719 = vmatprep.subr.bf16.mxu0 0
  %720 = vmatpush1.bf16.msra.mxu0 0
  %721 = vmatprep.subr.bf16.mxu0 0
  %722 = vmatpush1.bf16.msra.mxu0 0
  %723 = vmatprep.subr.bf16.mxu0 0
  %724 = vmatpush1.bf16.msra.mxu0 0
  %725 = vmatprep.subr.bf16.mxu0 0
  %726 = vmatpush1.bf16.msra.mxu0 0
  %727 = vmatprep.subr.bf16.mxu0 0
  %728 = vmatpush1.bf16.msra.mxu0 0
  %729 = vmatprep.subr.bf16.mxu0 0
  %730 = vmatpush1.bf16.msra.mxu0 0
  %731 = vmatprep.subr.bf16.mxu0 0
  %732 = vmatpush1.bf16.msra.mxu0 0
  %733 = vmatprep.mubr.bf16.mxu0 0
  %734 = vmatmul.mubr.bf16.gmra.mrb[0].mxu0 %v699
  %v735 = vpop.f32.mrb[0].mxu0
  %v736 = vadd.f32 0.0, %v735
  %v737 = vpop.f32.mrb[0].mxu0
  %v738 = vpop.f32.mrb[0].mxu0
  %v739 = vpop.f32.mrb[0].mxu0
  %740 = vdwg.mxu0
  %v741 = vadd.f32 %v693, %v736
  %v742 = vxor.u32 %v741, 2147483648
  %v743 = vmul.f32 %v742, 1.442695
  %v744 = vpow.pop %v743
  %v745 = vadd.f32 %v744, 1.0
  %v746 = vrcp.pop %v745
  %v747 = vmul.f32 1.0, %v746
  %v748 = vtanh.pop %v741
  %v749 = vmul.f32 %v747, %v680
  %751 = vrot.lane.b32.xlu0 %v748, 64
  %v752 = vpop.permute.xlu0 %751
  %v754 = vmul.f32 %v747, %v752
  %756 = vrot.lane.b32.xlu0 %v754, 32
  %v757 = vpop.permute.xlu0 %756
  %v759 = vadd.f32 %v749, %v757
  %v760 = vtanh.pop %v759
  %762 = vrot.lane.b32.xlu0 %v760, 64
  %v763 = vpop.permute.xlu0 %762
  %v765 = vmul.f32 %v747, %v763
  %767 = vrot.lane.b32.xlu0 %v765, 32
  %v768 = vpop.permute.xlu0 %767
  %s770 = scalar_lea.vmem [#allocation5], 14
  %771 = vst.msk [vmem:[%s770] sm:$0x3] %vm217, %v768
  %772 = vst.msk [vmem:[#allocation2] sm:$0x3] %vm217, %v768
  %774 = vrot.lane.b32.xlu0 %v759, 96
  %v775 = vpop.permute.xlu0 %774
  %777 = vst.msk [vmem:[#allocation3] sm:$0x3] %vm217, %v775
  %v778 = vld [vmem:[#allocation5] sm:$0x3]
  %v779 = vld [vmem:[%s296] sm:$0x3]
  %v780 = vld [vmem:[%s375] sm:$0x3]
  %v781 = vld [vmem:[%s454] sm:$0x3]
  %v782 = vld [vmem:[%s533] sm:$0x3]
  %v783 = vld [vmem:[%s612] sm:$0x3]
  %v784 = vld [vmem:[%s691] sm:$0x3]
  %v785 = vld [vmem:[%s770] sm:$0x3]
  %v787 = vrot.slane %v779, 6
  %v790 = vrot.slane %v780, 4
  %v793 = vrot.slane %v781, 2
  %v796 = vrot.slane %v783, 6
  %v799 = vrot.slane %v784, 4
  %v802 = vrot.slane %v785, 2
  %vm804 = vcmask 1041408
  %v805 = vsel %vm804, %v778, %v787
  %vm806 = vcmask 1043456
  %v807 = vsel %vm806, %v805, %v790
  %vm808 = vcmask 1045504
  %v809 = vsel %vm808, %v807, %v793
  %v810 = vsel %vm804, %v782, %v796
  %v811 = vsel %vm806, %v810, %v799
  %v812 = vsel %vm808, %v811, %v802
  %v813 = vpack.c.bf16 %v812, %v809
  %v814 = vld [vmem:[%s4] sm:$0xf]
  %v815 = vld [vmem:[%s4 + $0x4] sm:$0xf]
  %v816 = vld [vmem:[%s4 + $0x8] sm:$0xf]
  %v817 = vld [vmem:[%s4 + $0xc] sm:$0xf]
  %v818 = vld [vmem:[%s5] sm:$0x1]
  %v820 = vlaneseq
  %v821 = vshrl.u32 %v820, 7
  %v822 = vsub.s32 0, %v821
  %v823 = vrot.slane %v818, %v822
  %v829 = vunpack.c.l.b16 %v814
  %v830 = vunpack.c.l.b16 %v815
  %v831 = vunpack.c.l.b16 %v816
  %v832 = vunpack.c.l.b16 %v817
  %v833 = vpack.c.b16 %v830, %v829
  %v834 = vpack.c.b16 %v832, %v831
  %v838 = vsel %vm61, %v813, 0
  %840 = vmatprep.subr.bf16.mxu0 0
  %841 = vmatpush1.bf16.msra.mxu0 %v833
  %842 = vmatprep.subr.bf16.mxu0 0
  %843 = vmatpush1.bf16.msra.mxu0 %v834
  %844 = vmatprep.subr.bf16.mxu0 0
  %845 = vmatpush1.bf16.msra.mxu0 0
  %846 = vmatprep.subr.bf16.mxu0 0
  %847 = vmatpush1.bf16.msra.mxu0 0
  %848 = vmatprep.subr.bf16.mxu0 0
  %849 = vmatpush1.bf16.msra.mxu0 0
  %850 = vmatprep.subr.bf16.mxu0 0
  %851 = vmatpush1.bf16.msra.mxu0 0
  %852 = vmatprep.subr.bf16.mxu0 0
  %853 = vmatpush1.bf16.msra.mxu0 0
  %854 = vmatprep.subr.bf16.mxu0 0
  %855 = vmatpush1.bf16.msra.mxu0 0
  %856 = vmatprep.subr.bf16.mxu0 0
  %857 = vmatpush1.bf16.msra.mxu0 0
  %858 = vmatprep.subr.bf16.mxu0 0
  %859 = vmatpush1.bf16.msra.mxu0 0
  %860 = vmatprep.subr.bf16.mxu0 0
  %861 = vmatpush1.bf16.msra.mxu0 0
  %862 = vmatprep.subr.bf16.mxu0 0
  %863 = vmatpush1.bf16.msra.mxu0 0
  %864 = vmatprep.subr.bf16.mxu0 0
  %865 = vmatpush1.bf16.msra.mxu0 0
  %866 = vmatprep.subr.bf16.mxu0 0
  %867 = vmatpush1.bf16.msra.mxu0 0
  %868 = vmatprep.subr.bf16.mxu0 0
  %869 = vmatpush1.bf16.msra.mxu0 0
  %870 = vmatprep.subr.bf16.mxu0 0
  %871 = vmatpush1.bf16.msra.mxu0 0
  %872 = vmatprep.mubr.bf16.mxu0 0
  %873 = vmatmul.mubr.bf16.gmra.mrb[0].mxu0 %v838
  %v874 = vpop.f32.mrb[0].mxu0
  %v875 = vadd.f32 %v823, %v874
  %v876 = vpop.f32.mrb[0].mxu0
  %v877 = vpop.f32.mrb[0].mxu0
  %v878 = vadd.f32 %v823, %v877
  %v879 = vpop.f32.mrb[0].mxu0
  %880 = vdwg.mxu0
  %vm881 = vcmask 31744
  %882 = vst.msk [vmem:[%s6] sm:$0xff] %vm881, %v875
  %883 = vst.msk [vmem:[%s6 + $0x8] sm:$0xff] %vm881, %v878
  // Predicated region
  $region30: #{lstm_model_forward.3} parent=0 // pred_check
    _
  $region31: #{lstm_model_forward.3} parent=0 // pred_check_branch
    %885 = sbr.rel (0) target = $region33
  $region32: #{lstm_model_forward.3} parent=0 // pred_region
    _
  $region33: #{lstm_model_forward.3} parent=0 // pred_fallthru
    _
  // Predicated region
  $region34: #{lstm_model_forward.3} parent=0 // pred_check
    _
  $region35: #{lstm_model_forward.3} parent=0 // pred_check_branch
    %887 = sbr.rel (0) target = $region37
  $region36: #{lstm_model_forward.3} parent=0 // pred_region
    _
  $region37: #{lstm_model_forward.3} parent=0 // pred_fallthru
    _

</llo_original>
